<compile_context>
chip_gen: v7x
topology: tpu7x:2x2x1
jax: 0.10.0
libtpu: 0.0.40
codegen_flags: <defaults>
</compile_context>

<pallas_src>
import functools

import numpy as np
import jax
import jax.numpy as jnp
from jax import lax
from jax.experimental import pallas as pl
from jax.experimental.pallas import tpu as pltpu


LANES = 128


def _round_up(x, m):
    return ((x + m - 1) // m) * m


# --------------------------------------------------------------------------
# Activations (f32 VPU math) -- shared by kernel and reference.
# --------------------------------------------------------------------------

def _apply_act(y, act):
    if act == "relu":
        return jnp.maximum(y, 0.0)
    if act == "hswish":
        # x * relu6(x + 3) / 6
        return jnp.minimum(jnp.maximum(y + 3.0, 0.0), 6.0) * (1.0 / 6.0) * y
    if act == "hsigmoid":
        return jnp.minimum(jnp.maximum(y + 3.0, 0.0), 6.0) * (1.0 / 6.0)
    return y


# --------------------------------------------------------------------------
# Fused Bneck kernel
# --------------------------------------------------------------------------

def _make_bneck_kernel(*, BT, H, W, Cin, E, Cout, k, stride, pad, se, act,
                       shortcut):
    """Cin / Cout are the (possibly lane-padded) channel counts seen in-kernel."""
    Hp, Wp = H + 2 * pad, W + 2 * pad
    Ho = (H + 2 * pad - k) // stride + 1
    Wo = (W + 2 * pad - k) // stride + 1

    def tap_slice(d, size):
        if stride == 1:
            return slice(d, d + size)
        return pl.ds(d, size, stride=stride)

    def kernel(*refs):
        it = iter(refs)
        x_ref = next(it)
        w0_ref = next(it); s0_ref = next(it); b0_ref = next(it)
        wdw_ref = next(it); sdw_ref = next(it); bdw_ref = next(it)
        if se:
            wse0_ref = next(it); bse0_ref = next(it)
            wse1_ref = next(it); bse1_ref = next(it)
        w2_ref = next(it); s2_ref = next(it); b2_ref = next(it)
        out_ref = next(it)
        y0p_ref = next(it)

        # ---- pointwise_0: 1x1 conv (bf16 MXU, f32 acc) + folded BN + act ----
        x2d = x_ref[...].reshape(BT * H * W, Cin)                 # f32
        y0 = jnp.dot(x2d.astype(jnp.bfloat16), w0_ref[...],
                     preferred_element_type=jnp.float32)          # (BT*H*W, E)
        y0 = _apply_act(y0 * s0_ref[...] + b0_ref[...], act)

        # exp-wide activation stays in VMEM: zero only the halo border (the
        # interior is fully overwritten below); no full-tile refill per step.
        if pad > 0:
            y0p_ref[:, 0:pad, :, :] = jnp.zeros((BT, pad, Wp, E), jnp.float32)
            y0p_ref[:, pad + H:Hp, :, :] = jnp.zeros((BT, pad, Wp, E), jnp.float32)
            y0p_ref[:, pad:pad + H, 0:pad, :] = jnp.zeros((BT, H, pad, E), jnp.float32)
            y0p_ref[:, pad:pad + H, pad + W:Wp, :] = jnp.zeros((BT, H, pad, E), jnp.float32)
        y0p_ref[:, pad:pad + H, pad:pad + W, :] = y0.reshape(BT, H, W, E)

        # ---- depthwise kxk conv: k*k shifted (strided if s>1) VMEM reads ----
        wdw = wdw_ref[...]                                        # (k*k, E) f32
        acc = jnp.zeros((BT, Ho, Wo, E), jnp.float32)
        for dy in range(k):
            for dx in range(k):
                tap = y0p_ref[:, tap_slice(dy, Ho), tap_slice(dx, Wo), :]
                acc = acc + tap * wdw[dy * k + dx]
        h1 = _apply_act(acc * sdw_ref[...] + bdw_ref[...], act)   # (BT,Ho,Wo,E)

        # ---- fused squeeze-excite: pool + FC/relu + FC/hsigmoid + gate ----
        if se:
            pooled = jnp.sum(h1, axis=(1, 2)) * (1.0 / (Ho * Wo))  # (BT, E)
            hmid = jnp.maximum(
                jnp.dot(pooled, wse0_ref[...],
                        preferred_element_type=jnp.float32) + bse0_ref[...], 0.0)
            gate = jnp.dot(hmid, wse1_ref[...],
                           preferred_element_type=jnp.float32) + bse1_ref[...]
            gate = jnp.minimum(jnp.maximum(gate + 3.0, 0.0), 6.0) * (1.0 / 6.0)
            h1 = h1 * gate[:, None, None, :]

        # ---- pointwise_2: 1x1 conv (bf16 MXU) + folded BN (+ residual) ----
        h1f = h1.reshape(BT * Ho * Wo, E)
        y2 = jnp.dot(h1f.astype(jnp.bfloat16), w2_ref[...],
                     preferred_element_type=jnp.float32)          # (.., Cout)
        y2 = y2 * s2_ref[...] + b2_ref[...]
        y2 = y2.reshape(BT, Ho * Wo, Cout)
        if shortcut:
            y2 = y2 + x_ref[...]          # x already lane-padded like the output
        out_ref[...] = y2                 # lane-dense store (Cout % 128 == 0)

    return kernel


# --------------------------------------------------------------------------
# Wrapper: one pallas_call per Bneck, grid over batch tiles.
# --------------------------------------------------------------------------

def _choose_batch_tile(n, per_image_bytes, budget_bytes=24 * 1024 * 1024):
    """Largest divisor of n that fits the VMEM budget and keeps >=2 grid steps
    (so megacore / v7x's two TensorCores both get work)."""
    best = 1
    for bt in range(1, n + 1):
        if n % bt:
            continue
        if bt * per_image_bytes > budget_bytes:
            continue
        if n >= 2 and n // bt < 2:
            continue
        best = bt
    return best


def bneck_forward(params, x_nchw, cfg):
    nin, nout, k, exp = cfg["nin"], cfg["nout"], cfg["k"], cfg["exp"]
    se, act, s = cfg["se"], cfg["act"], cfg["s"]
    N, C, H, W = x_nchw.shape
    assert C == nin
    pad = (k - 1) // 2
    Hp, Wp = H + 2 * pad, W + 2 * pad
    Ho = (H + 2 * pad - k) // s + 1
    Wo = (W + 2 * pad - k) // s + 1
    shortcut = (s == 1 and nin == nout)

    # Lane-dense output channels.
    cout_p = _round_up(nout, LANES)

    # NCHW -> NHWC rows (channels on the 128-lane axis).
    x = jnp.transpose(x_nchw, (0, 2, 3, 1)).astype(jnp.float32).reshape(N, H * W, nin)

    w0 = params["w0"]
    cin_eff = nin
    if shortcut:
        # Pad input channels (and w0 rows with zeros) to match the padded
        # output so the in-kernel residual add is a plain full-width add.
        cin_eff = cout_p
        x = jnp.pad(x, ((0, 0), (0, 0), (0, cout_p - nin)))
        w0 = jnp.pad(w0, ((0, cout_p - nin), (0, 0)))

    w2 = jnp.pad(params["w2"], ((0, 0), (0, cout_p - nout)))
    s2 = jnp.pad(params["s2"], ((0, 0), (0, cout_p - nout)))
    b2 = jnp.pad(params["b2"], ((0, 0), (0, cout_p - nout)))

    # Per-image VMEM footprint estimate (blocks + scratch + live f32 temps).
    per_img_bytes = 4 * (H * W * cin_eff + Ho * Wo * cout_p
                         + Hp * Wp * exp + 4 * H * W * exp)
    BT = _choose_batch_tile(N, per_img_bytes)
    grid = (N // BT,)

    kernel = _make_bneck_kernel(BT=BT, H=H, W=W, Cin=cin_eff, E=exp, Cout=cout_p,
                                k=k, stride=s, pad=pad, se=se, act=act,
                                shortcut=shortcut)

    inputs = [x, w0, params["s0"], params["b0"],
              params["wdw"], params["sdw"], params["bdw"]]
    if se:
        inputs += [params["wse0"], params["bse0"], params["wse1"], params["bse1"]]
    inputs += [w2, s2, b2]

    def full_spec(a):
        nd = a.ndim
        return pl.BlockSpec(a.shape, lambda n, _nd=nd: (0,) * _nd)

    in_specs = [pl.BlockSpec((BT, H * W, cin_eff), lambda n: (n, 0, 0))]
    in_specs += [full_spec(a) for a in inputs[1:]]

    # Per-config VMEM limit (double-buffered blocks + weights + scratch),
    # capped so it also fits v7x's 64 MiB physical VMEM.
    weight_bytes = sum(int(np.prod(a.shape)) * a.dtype.itemsize for a in inputs[1:])
    vmem_est = 2 * BT * per_img_bytes + 2 * weight_bytes
    vmem_limit = int(min(48 * 1024 * 1024, max(16 * 1024 * 1024, 2 * vmem_est)))

    out = pl.pallas_call(
        kernel,
        out_shape=jax.ShapeDtypeStruct((N, Ho * Wo, cout_p), jnp.float32),
        grid=grid,
        in_specs=in_specs,
        out_specs=pl.BlockSpec((BT, Ho * Wo, cout_p), lambda n: (n, 0, 0)),
        scratch_shapes=[pltpu.VMEM((BT, Hp, Wp, exp), jnp.float32)],
        compiler_params=pltpu.CompilerParams(
            dimension_semantics=("parallel",),
            vmem_limit_bytes=vmem_limit),
    )(*inputs)

    out = out[:, :, :nout]                                    # drop lane padding
    return jnp.transpose(out.reshape(N, Ho, Wo, nout), (0, 3, 1, 2))


# --------------------------------------------------------------------------
# Deterministic synthetic parameters (BN folded in eval mode)
# --------------------------------------------------------------------------

def init_bneck_params(seed, cfg):
    nin, nout, k, exp, se = cfg["nin"], cfg["nout"], cfg["k"], cfg["exp"], cfg["se"]
    root = jax.random.PRNGKey(seed)
    cnt = [0]

    def nk():
        cnt[0] += 1
        return jax.random.fold_in(root, cnt[0])

    def w_init(shape, fan_in):
        return jax.random.normal(nk(), shape, jnp.float32) / np.float32(np.sqrt(fan_in))

    def bn_init(c):
        gamma = 1.0 + 0.1 * jax.random.normal(nk(), (1, c), jnp.float32)
        beta = 0.1 * jax.random.normal(nk(), (1, c), jnp.float32)
        mean = 0.1 * jax.random.normal(nk(), (1, c), jnp.float32)
        var = 1.0 + 0.1 * jnp.abs(jax.random.normal(nk(), (1, c), jnp.float32))
        scale = gamma * lax.rsqrt(var + 1e-5)
        shift = beta - mean * scale
        return scale, shift

    p = {}
    p["w0"] = w_init((nin, exp), nin).astype(jnp.bfloat16)      # bf16 MXU weights
    p["s0"], p["b0"] = bn_init(exp)
    p["wdw"] = w_init((k * k, exp), k * k)                      # f32 (VPU)
    p["sdw"], p["bdw"] = bn_init(exp)
    if se:
        mid = exp // 4
        p["wse0"] = w_init((exp, mid), exp)
        p["bse0"] = 0.1 * jax.random.normal(nk(), (1, mid), jnp.float32)
        p["wse1"] = w_init((mid, exp), mid)
        p["bse1"] = 0.1 * jax.random.normal(nk(), (1, exp), jnp.float32)
    p["w2"] = w_init((exp, nout), exp).astype(jnp.bfloat16)
    p["s2"], p["b2"] = bn_init(nout)
    return p


# --------------------------------------------------------------------------
# Pure-JAX reference (same bf16 operand quantization, HIGHEST precision)
# --------------------------------------------------------------------------

def bneck_reference(params, x_nchw, cfg):
    nin, nout, k, exp = cfg["nin"], cfg["nout"], cfg["k"], cfg["exp"]
    se, act, s = cfg["se"], cfg["act"], cfg["s"]
    pad = (k - 1) // 2
    hi = lax.Precision.HIGHEST

    x = jnp.transpose(x_nchw, (0, 2, 3, 1)).astype(jnp.float32)
    N, H, W, _ = x.shape

    xq = x.astype(jnp.bfloat16).astype(jnp.float32).reshape(N * H * W, nin)
    y0 = jnp.dot(xq, params["w0"].astype(jnp.float32), precision=hi)
    y0 = _apply_act(y0 * params["s0"] + params["b0"], act).reshape(N, H, W, exp)

    wdw = params["wdw"].reshape(k, k, exp)[:, :, None, :]       # (k,k,1,E) HWIO
    y1 = lax.conv_general_dilated(
        y0, wdw, window_strides=(s, s), padding=((pad, pad), (pad, pad)),
        dimension_numbers=("NHWC", "HWIO", "NHWC"),
        feature_group_count=exp, precision=hi)
    y1 = _apply_act(y1 * params["sdw"] + params["bdw"], act)

    if se:
        pooled = jnp.mean(y1, axis=(1, 2))                      # (N, E)
        hmid = jnp.maximum(jnp.dot(pooled, params["wse0"], precision=hi)
                           + params["bse0"], 0.0)
        gate = jnp.dot(hmid, params["wse1"], precision=hi) + params["bse1"]
        gate = jnp.minimum(jnp.maximum(gate + 3.0, 0.0), 6.0) * (1.0 / 6.0)
        y1 = y1 * gate[:, None, None, :]

    _, Ho, Wo, _ = y1.shape
    y1q = y1.astype(jnp.bfloat16).astype(jnp.float32).reshape(N * Ho * Wo, exp)
    y2 = jnp.dot(y1q, params["w2"].astype(jnp.float32), precision=hi)
    y2 = (y2 * params["s2"] + params["b2"]).reshape(N, Ho, Wo, nout)
    if s == 1 and nin == nout:
        y2 = y2 + x
    return jnp.transpose(y2, (0, 3, 1, 2))


# --------------------------------------------------------------------------

if __name__ == "__main__":
    cfgs = [
        # SE + h-swish + residual, stride 1, k=3 (N=4 exercises batch tile BT=2)
        dict(nin=16, nout=16, k=3, exp=64, se=True, act="hswish", s=1,
             H=16, W=16, N=4),
        # no-SE + relu, stride 2, k=5, no residual (strided-tap depthwise path)
        dict(nin=16, nout=24, k=5, exp=72, se=False, act="relu", s=2,
             H=16, W=16, N=2),
    ]
    xroot = jax.random.PRNGKey(0)
    for idx, cfg in enumerate(cfgs):
        params = init_bneck_params(seed=123 + idx, cfg=cfg)
        x = jax.random.normal(jax.random.fold_in(xroot, idx),
                              (cfg["N"], cfg["nin"], cfg["H"], cfg["W"]),
                              jnp.float32)

        fwd = jax.jit(functools.partial(bneck_forward, cfg=cfg))
        out = jax.block_until_ready(fwd(params, x))

        ref = jax.block_until_ready(bneck_reference(params, x, cfg))
        assert out.shape == ref.shape, (out.shape, ref.shape)
        assert bool(jnp.all(jnp.isfinite(out)))
        np.testing.assert_allclose(np.asarray(out), np.asarray(ref),
                                   rtol=2e-2, atol=2e-2)

    print("KERNEL_OK")
</pallas_src>

<mosaic_0001>
module attributes {stable_mosaic.version = 11 : i64} {
  func.func @kernel(%arg0: i32, %arg1: memref<2x256x128xf32, #tpu.memory_space<vmem>>, %arg2: memref<128x64xbf16, #tpu.memory_space<vmem>>, %arg3: memref<1x64xf32, #tpu.memory_space<vmem>>, %arg4: memref<1x64xf32, #tpu.memory_space<vmem>>, %arg5: memref<9x64xf32, #tpu.memory_space<vmem>>, %arg6: memref<1x64xf32, #tpu.memory_space<vmem>>, %arg7: memref<1x64xf32, #tpu.memory_space<vmem>>, %arg8: memref<64x16xf32, #tpu.memory_space<vmem>>, %arg9: memref<1x16xf32, #tpu.memory_space<vmem>>, %arg10: memref<16x64xf32, #tpu.memory_space<vmem>>, %arg11: memref<1x64xf32, #tpu.memory_space<vmem>>, %arg12: memref<64x128xbf16, #tpu.memory_space<vmem>>, %arg13: memref<1x128xf32, #tpu.memory_space<vmem>>, %arg14: memref<1x128xf32, #tpu.memory_space<vmem>>, %arg15: memref<2x256x128xf32, #tpu.memory_space<vmem>>, %arg16: memref<2x18x18x64xf32, #tpu.memory_space<vmem>>) attributes {dimension_semantics = [#tpu.dimension_semantics<parallel>], iteration_bounds = array<i64: 2>, scalar_prefetch = 0 : i64, scratch_operands = 1 : i64, tpu.core_type = #tpu.core_type<tc>, window_params = [{transform_indices = @transform_0, window_bounds = array<i64: 2, 256, 128>}, {pipeline_mode = #tpu.pipeline_mode<synchronous>, transform_indices = @transform_1, window_bounds = array<i64: 128, 64>}, {pipeline_mode = #tpu.pipeline_mode<synchronous>, transform_indices = @transform_2, window_bounds = array<i64: 1, 64>}, {pipeline_mode = #tpu.pipeline_mode<synchronous>, transform_indices = @transform_3, window_bounds = array<i64: 1, 64>}, {pipeline_mode = #tpu.pipeline_mode<synchronous>, transform_indices = @transform_4, window_bounds = array<i64: 9, 64>}, {pipeline_mode = #tpu.pipeline_mode<synchronous>, transform_indices = @transform_5, window_bounds = array<i64: 1, 64>}, {pipeline_mode = #tpu.pipeline_mode<synchronous>, transform_indices = @transform_6, window_bounds = array<i64: 1, 64>}, {pipeline_mode = #tpu.pipeline_mode<synchronous>, transform_indices = @transform_7, window_bounds = array<i64: 64, 16>}, {pipeline_mode = #tpu.pipeline_mode<synchronous>, transform_indices = @transform_8, window_bounds = array<i64: 1, 16>}, {pipeline_mode = #tpu.pipeline_mode<synchronous>, transform_indices = @transform_9, window_bounds = array<i64: 16, 64>}, {pipeline_mode = #tpu.pipeline_mode<synchronous>, transform_indices = @transform_10, window_bounds = array<i64: 1, 64>}, {pipeline_mode = #tpu.pipeline_mode<synchronous>, transform_indices = @transform_11, window_bounds = array<i64: 64, 128>}, {pipeline_mode = #tpu.pipeline_mode<synchronous>, transform_indices = @transform_12, window_bounds = array<i64: 1, 128>}, {pipeline_mode = #tpu.pipeline_mode<synchronous>, transform_indices = @transform_13, window_bounds = array<i64: 1, 128>}, {transform_indices = @transform_14, window_bounds = array<i64: 2, 256, 128>}]} {
    %c0 = arith.constant 0 : index
    %c0_0 = arith.constant 0 : index
    %c0_1 = arith.constant 0 : index
    %0 = vector.load %arg1[%c0, %c0_0, %c0_1] : memref<2x256x128xf32, #tpu.memory_space<vmem>>, vector<2x256x128xf32>
    %1 = vector.shape_cast %0 : vector<2x256x128xf32> to vector<512x128xf32>
    %2 = arith.truncf %1 : vector<512x128xf32> to vector<512x128xbf16>
    %c0_2 = arith.constant 0 : index
    %c0_3 = arith.constant 0 : index
    %3 = vector.load %arg2[%c0_2, %c0_3] : memref<128x64xbf16, #tpu.memory_space<vmem>>, vector<128x64xbf16>
    %cst = arith.constant dense<0.000000e+00> : vector<512x64xf32>
    %4 = tpu.matmul %2, %3, %cst {dimension_numbers = #tpu.dot_dimension_numbers<[1], [0], [0], [1], [0, 0, 1, 1], [], []>} : vector<512x128xbf16>, vector<128x64xbf16>, vector<512x64xf32> -> vector<512x64xf32>
    %c0_4 = arith.constant 0 : index
    %c0_5 = arith.constant 0 : index
    %5 = vector.load %arg3[%c0_4, %c0_5] : memref<1x64xf32, #tpu.memory_space<vmem>>, vector<1x64xf32>
    %6 = vector.broadcast %5 : vector<1x64xf32> to vector<512x64xf32>
    %7 = arith.mulf %4, %6 : vector<512x64xf32>
    %c0_6 = arith.constant 0 : index
    %c0_7 = arith.constant 0 : index
    %8 = vector.load %arg4[%c0_6, %c0_7] : memref<1x64xf32, #tpu.memory_space<vmem>>, vector<1x64xf32>
    %9 = vector.broadcast %8 : vector<1x64xf32> to vector<512x64xf32>
    %10 = arith.addf %7, %9 : vector<512x64xf32>
    %cst_8 = arith.constant 3.000000e+00 : f32
    %11 = vector.broadcast %cst_8 : f32 to vector<512x64xf32>
    %12 = arith.addf %10, %11 : vector<512x64xf32>
    %cst_9 = arith.constant 0.000000e+00 : f32
    %13 = vector.broadcast %cst_9 : f32 to vector<512x64xf32>
    %14 = arith.maximumf %12, %13 : vector<512x64xf32>
    %cst_10 = arith.constant 6.000000e+00 : f32
    %15 = vector.broadcast %cst_10 : f32 to vector<512x64xf32>
    %16 = arith.minimumf %14, %15 : vector<512x64xf32>
    %cst_11 = arith.constant 0.166666672 : f32
    %17 = vector.broadcast %cst_11 : f32 to vector<512x64xf32>
    %18 = arith.mulf %16, %17 : vector<512x64xf32>
    %19 = arith.mulf %18, %10 : vector<512x64xf32>
    %cst_12 = arith.constant 0.000000e+00 : f32
    %20 = vector.broadcast %cst_12 : f32 to vector<2x1x18x64xf32>
    %c0_13 = arith.constant 0 : index
    %c0_14 = arith.constant 0 : index
    %c0_15 = arith.constant 0 : index
    %c0_16 = arith.constant 0 : index
    %21 = vector.load %arg16[%c0_13, %c0_14, %c0_15, %c0_16] : memref<2x18x18x64xf32, #tpu.memory_space<vmem>>, vector<2x1x18x64xf32>
    tpu.vector_store %arg16[%c0_13, %c0_14, %c0_15, %c0_16], %20 {strides = array<i32>} : memref<2x18x18x64xf32, #tpu.memory_space<vmem>>, vector<2x1x18x64xf32>,
    %cst_17 = arith.constant 0.000000e+00 : f32
    %22 = vector.broadcast %cst_17 : f32 to vector<2x1x18x64xf32>
    %c0_18 = arith.constant 0 : index
    %c17 = arith.constant 17 : index
    %c0_19 = arith.constant 0 : index
    %c0_20 = arith.constant 0 : index
    %23 = vector.load %arg16[%c0_18, %c17, %c0_19, %c0_20] : memref<2x18x18x64xf32, #tpu.memory_space<vmem>>, vector<2x1x18x64xf32>
    tpu.vector_store %arg16[%c0_18, %c17, %c0_19, %c0_20], %22 {strides = array<i32>} : memref<2x18x18x64xf32, #tpu.memory_space<vmem>>, vector<2x1x18x64xf32>,
    %cst_21 = arith.constant 0.000000e+00 : f32
    %24 = vector.broadcast %cst_21 : f32 to vector<2x16x1x64xf32>
    %c0_22 = arith.constant 0 : index
    %c1 = arith.constant 1 : index
    %c0_23 = arith.constant 0 : index
    %c0_24 = arith.constant 0 : index
    %25 = vector.load %arg16[%c0_22, %c1, %c0_23, %c0_24] : memref<2x18x18x64xf32, #tpu.memory_space<vmem>>, vector<2x16x1x64xf32>
    tpu.vector_store %arg16[%c0_22, %c1, %c0_23, %c0_24], %24 {strides = array<i32>} : memref<2x18x18x64xf32, #tpu.memory_space<vmem>>, vector<2x16x1x64xf32>,
    %cst_25 = arith.constant 0.000000e+00 : f32
    %26 = vector.broadcast %cst_25 : f32 to vector<2x16x1x64xf32>
    %c0_26 = arith.constant 0 : index
    %c1_27 = arith.constant 1 : index
    %c17_28 = arith.constant 17 : index
    %c0_29 = arith.constant 0 : index
    %27 = vector.load %arg16[%c0_26, %c1_27, %c17_28, %c0_29] : memref<2x18x18x64xf32, #tpu.memory_space<vmem>>, vector<2x16x1x64xf32>
    tpu.vector_store %arg16[%c0_26, %c1_27, %c17_28, %c0_29], %26 {strides = array<i32>} : memref<2x18x18x64xf32, #tpu.memory_space<vmem>>, vector<2x16x1x64xf32>,
    %28 = vector.shape_cast %19 : vector<512x64xf32> to vector<2x16x16x64xf32>
    %c0_30 = arith.constant 0 : index
    %c1_31 = arith.constant 1 : index
    %c1_32 = arith.constant 1 : index
    %c0_33 = arith.constant 0 : index
    %29 = vector.load %arg16[%c0_30, %c1_31, %c1_32, %c0_33] : memref<2x18x18x64xf32, #tpu.memory_space<vmem>>, vector<2x16x16x64xf32>
    tpu.vector_store %arg16[%c0_30, %c1_31, %c1_32, %c0_33], %28 {strides = array<i32>} : memref<2x18x18x64xf32, #tpu.memory_space<vmem>>, vector<2x16x16x64xf32>,
    %c0_34 = arith.constant 0 : index
    %c0_35 = arith.constant 0 : index
    %30 = vector.load %arg5[%c0_34, %c0_35] : memref<9x64xf32, #tpu.memory_space<vmem>>, vector<9x64xf32>
    %cst_36 = arith.constant 0.000000e+00 : f32
    %31 = vector.broadcast %cst_36 : f32 to vector<2x16x16x64xf32>
    %c0_37 = arith.constant 0 : index
    %c0_38 = arith.constant 0 : index
    %c0_39 = arith.constant 0 : index
    %c0_40 = arith.constant 0 : index
    %32 = vector.load %arg16[%c0_37, %c0_38, %c0_39, %c0_40] : memref<2x18x18x64xf32, #tpu.memory_space<vmem>>, vector<2x16x16x64xf32>
    %33 = vector.extract_strided_slice %30 {offsets = [0, 0], sizes = [1, 64], strides = [1, 1]} : vector<9x64xf32> to vector<1x64xf32>
    %34 = vector.shape_cast %33 : vector<1x64xf32> to vector<64xf32>
    %35 = vector.shape_cast %34 : vector<64xf32> to vector<1x1x1x64xf32>
    %36 = vector.broadcast %35 : vector<1x1x1x64xf32> to vector<2x16x16x64xf32>
    %37 = arith.mulf %32, %36 : vector<2x16x16x64xf32>
    %38 = arith.addf %31, %37 : vector<2x16x16x64xf32>
    %c0_41 = arith.constant 0 : index
    %c0_42 = arith.constant 0 : index
    %c1_43 = arith.constant 1 : index
    %c0_44 = arith.constant 0 : index
    %39 = vector.load %arg16[%c0_41, %c0_42, %c1_43, %c0_44] : memref<2x18x18x64xf32, #tpu.memory_space<vmem>>, vector<2x16x16x64xf32>
    %40 = vector.extract_strided_slice %30 {offsets = [1, 0], sizes = [1, 64], strides = [1, 1]} : vector<9x64xf32> to vector<1x64xf32>
    %41 = vector.shape_cast %40 : vector<1x64xf32> to vector<64xf32>
    %42 = vector.shape_cast %41 : vector<64xf32> to vector<1x1x1x64xf32>
    %43 = vector.broadcast %42 : vector<1x1x1x64xf32> to vector<2x16x16x64xf32>
    %44 = arith.mulf %39, %43 : vector<2x16x16x64xf32>
    %45 = arith.addf %38, %44 : vector<2x16x16x64xf32>
    %c0_45 = arith.constant 0 : index
    %c0_46 = arith.constant 0 : index
    %c2 = arith.constant 2 : index
    %c0_47 = arith.constant 0 : index
    %46 = vector.load %arg16[%c0_45, %c0_46, %c2, %c0_47] : memref<2x18x18x64xf32, #tpu.memory_space<vmem>>, vector<2x16x16x64xf32>
    %47 = vector.extract_strided_slice %30 {offsets = [2, 0], sizes = [1, 64], strides = [1, 1]} : vector<9x64xf32> to vector<1x64xf32>
    %48 = vector.shape_cast %47 : vector<1x64xf32> to vector<64xf32>
    %49 = vector.shape_cast %48 : vector<64xf32> to vector<1x1x1x64xf32>
    %50 = vector.broadcast %49 : vector<1x1x1x64xf32> to vector<2x16x16x64xf32>
    %51 = arith.mulf %46, %50 : vector<2x16x16x64xf32>
    %52 = arith.addf %45, %51 : vector<2x16x16x64xf32>
    %c0_48 = arith.constant 0 : index
    %c1_49 = arith.constant 1 : index
    %c0_50 = arith.constant 0 : index
    %c0_51 = arith.constant 0 : index
    %53 = vector.load %arg16[%c0_48, %c1_49, %c0_50, %c0_51] : memref<2x18x18x64xf32, #tpu.memory_space<vmem>>, vector<2x16x16x64xf32>
    %54 = vector.extract_strided_slice %30 {offsets = [3, 0], sizes = [1, 64], strides = [1, 1]} : vector<9x64xf32> to vector<1x64xf32>
    %55 = vector.shape_cast %54 : vector<1x64xf32> to vector<64xf32>
    %56 = vector.shape_cast %55 : vector<64xf32> to vector<1x1x1x64xf32>
    %57 = vector.broadcast %56 : vector<1x1x1x64xf32> to vector<2x16x16x64xf32>
    %58 = arith.mulf %53, %57 : vector<2x16x16x64xf32>
    %59 = arith.addf %52, %58 : vector<2x16x16x64xf32>
    %c0_52 = arith.constant 0 : index
    %c1_53 = arith.constant 1 : index
    %c1_54 = arith.constant 1 : index
    %c0_55 = arith.constant 0 : index
    %60 = vector.load %arg16[%c0_52, %c1_53, %c1_54, %c0_55] : memref<2x18x18x64xf32, #tpu.memory_space<vmem>>, vector<2x16x16x64xf32>
    %61 = vector.extract_strided_slice %30 {offsets = [4, 0], sizes = [1, 64], strides = [1, 1]} : vector<9x64xf32> to vector<1x64xf32>
    %62 = vector.shape_cast %61 : vector<1x64xf32> to vector<64xf32>
    %63 = vector.shape_cast %62 : vector<64xf32> to vector<1x1x1x64xf32>
    %64 = vector.broadcast %63 : vector<1x1x1x64xf32> to vector<2x16x16x64xf32>
    %65 = arith.mulf %60, %64 : vector<2x16x16x64xf32>
    %66 = arith.addf %59, %65 : vector<2x16x16x64xf32>
    %c0_56 = arith.constant 0 : index
    %c1_57 = arith.constant 1 : index
    %c2_58 = arith.constant 2 : index
    %c0_59 = arith.constant 0 : index
    %67 = vector.load %arg16[%c0_56, %c1_57, %c2_58, %c0_59] : memref<2x18x18x64xf32, #tpu.memory_space<vmem>>, vector<2x16x16x64xf32>
    %68 = vector.extract_strided_slice %30 {offsets = [5, 0], sizes = [1, 64], strides = [1, 1]} : vector<9x64xf32> to vector<1x64xf32>
    %69 = vector.shape_cast %68 : vector<1x64xf32> to vector<64xf32>
    %70 = vector.shape_cast %69 : vector<64xf32> to vector<1x1x1x64xf32>
    %71 = vector.broadcast %70 : vector<1x1x1x64xf32> to vector<2x16x16x64xf32>
    %72 = arith.mulf %67, %71 : vector<2x16x16x64xf32>
    %73 = arith.addf %66, %72 : vector<2x16x16x64xf32>
    %c0_60 = arith.constant 0 : index
    %c2_61 = arith.constant 2 : index
    %c0_62 = arith.constant 0 : index
    %c0_63 = arith.constant 0 : index
    %74 = vector.load %arg16[%c0_60, %c2_61, %c0_62, %c0_63] : memref<2x18x18x64xf32, #tpu.memory_space<vmem>>, vector<2x16x16x64xf32>
    %75 = vector.extract_strided_slice %30 {offsets = [6, 0], sizes = [1, 64], strides = [1, 1]} : vector<9x64xf32> to vector<1x64xf32>
    %76 = vector.shape_cast %75 : vector<1x64xf32> to vector<64xf32>
    %77 = vector.shape_cast %76 : vector<64xf32> to vector<1x1x1x64xf32>
    %78 = vector.broadcast %77 : vector<1x1x1x64xf32> to vector<2x16x16x64xf32>
    %79 = arith.mulf %74, %78 : vector<2x16x16x64xf32>
    %80 = arith.addf %73, %79 : vector<2x16x16x64xf32>
    %c0_64 = arith.constant 0 : index
    %c2_65 = arith.constant 2 : index
    %c1_66 = arith.constant 1 : index
    %c0_67 = arith.constant 0 : index
    %81 = vector.load %arg16[%c0_64, %c2_65, %c1_66, %c0_67] : memref<2x18x18x64xf32, #tpu.memory_space<vmem>>, vector<2x16x16x64xf32>
    %82 = vector.extract_strided_slice %30 {offsets = [7, 0], sizes = [1, 64], strides = [1, 1]} : vector<9x64xf32> to vector<1x64xf32>
    %83 = vector.shape_cast %82 : vector<1x64xf32> to vector<64xf32>
    %84 = vector.shape_cast %83 : vector<64xf32> to vector<1x1x1x64xf32>
    %85 = vector.broadcast %84 : vector<1x1x1x64xf32> to vector<2x16x16x64xf32>
    %86 = arith.mulf %81, %85 : vector<2x16x16x64xf32>
    %87 = arith.addf %80, %86 : vector<2x16x16x64xf32>
    %c0_68 = arith.constant 0 : index
    %c2_69 = arith.constant 2 : index
    %c2_70 = arith.constant 2 : index
    %c0_71 = arith.constant 0 : index
    %88 = vector.load %arg16[%c0_68, %c2_69, %c2_70, %c0_71] : memref<2x18x18x64xf32, #tpu.memory_space<vmem>>, vector<2x16x16x64xf32>
    %89 = vector.extract_strided_slice %30 {offsets = [8, 0], sizes = [1, 64], strides = [1, 1]} : vector<9x64xf32> to vector<1x64xf32>
    %90 = vector.shape_cast %89 : vector<1x64xf32> to vector<64xf32>
    %91 = vector.shape_cast %90 : vector<64xf32> to vector<1x1x1x64xf32>
    %92 = vector.broadcast %91 : vector<1x1x1x64xf32> to vector<2x16x16x64xf32>
    %93 = arith.mulf %88, %92 : vector<2x16x16x64xf32>
    %94 = arith.addf %87, %93 : vector<2x16x16x64xf32>
    %c0_72 = arith.constant 0 : index
    %c0_73 = arith.constant 0 : index
    %95 = vector.load %arg6[%c0_72, %c0_73] : memref<1x64xf32, #tpu.memory_space<vmem>>, vector<1x64xf32>
    %96 = vector.shape_cast %95 : vector<1x64xf32> to vector<1x1x1x64xf32>
    %97 = vector.broadcast %96 : vector<1x1x1x64xf32> to vector<2x16x16x64xf32>
    %98 = arith.mulf %94, %97 : vector<2x16x16x64xf32>
    %c0_74 = arith.constant 0 : index
    %c0_75 = arith.constant 0 : index
    %99 = vector.load %arg7[%c0_74, %c0_75] : memref<1x64xf32, #tpu.memory_space<vmem>>, vector<1x64xf32>
    %100 = vector.shape_cast %99 : vector<1x64xf32> to vector<1x1x1x64xf32>
    %101 = vector.broadcast %100 : vector<1x1x1x64xf32> to vector<2x16x16x64xf32>
    %102 = arith.addf %98, %101 : vector<2x16x16x64xf32>
    %cst_76 = arith.constant 3.000000e+00 : f32
    %103 = vector.broadcast %cst_76 : f32 to vector<2x16x16x64xf32>
    %104 = arith.addf %102, %103 : vector<2x16x16x64xf32>
    %cst_77 = arith.constant 0.000000e+00 : f32
    %105 = vector.broadcast %cst_77 : f32 to vector<2x16x16x64xf32>
    %106 = arith.maximumf %104, %105 : vector<2x16x16x64xf32>
    %cst_78 = arith.constant 6.000000e+00 : f32
    %107 = vector.broadcast %cst_78 : f32 to vector<2x16x16x64xf32>
    %108 = arith.minimumf %106, %107 : vector<2x16x16x64xf32>
    %cst_79 = arith.constant 0.166666672 : f32
    %109 = vector.broadcast %cst_79 : f32 to vector<2x16x16x64xf32>
    %110 = arith.mulf %108, %109 : vector<2x16x16x64xf32>
    %111 = arith.mulf %110, %102 : vector<2x16x16x64xf32>
    %cst_80 = arith.constant dense<0.000000e+00> : vector<2x64xf32>
    %112 = vector.multi_reduction <add>, %111, %cst_80 [1, 2] : vector<2x16x16x64xf32> to vector<2x64xf32>
    %cst_81 = arith.constant 3.906250e-03 : f32
    %113 = vector.broadcast %cst_81 : f32 to vector<2x64xf32>
    %114 = arith.mulf %112, %113 : vector<2x64xf32>
    %c0_82 = arith.constant 0 : index
    %c0_83 = arith.constant 0 : index
    %115 = vector.load %arg8[%c0_82, %c0_83] : memref<64x16xf32, #tpu.memory_space<vmem>>, vector<64x16xf32>
    %cst_84 = arith.constant dense<0.000000e+00> : vector<2x16xf32>
    %116 = tpu.matmul %114, %115, %cst_84 {dimension_numbers = #tpu.dot_dimension_numbers<[1], [0], [0], [1], [0, 0, 1, 1], [], []>} : vector<2x64xf32>, vector<64x16xf32>, vector<2x16xf32> -> vector<2x16xf32>
    %c0_85 = arith.constant 0 : index
    %c0_86 = arith.constant 0 : index
    %117 = vector.load %arg9[%c0_85, %c0_86] : memref<1x16xf32, #tpu.memory_space<vmem>>, vector<1x16xf32>
    %118 = vector.broadcast %117 : vector<1x16xf32> to vector<2x16xf32>
    %119 = arith.addf %116, %118 : vector<2x16xf32>
    %cst_87 = arith.constant 0.000000e+00 : f32
    %120 = vector.broadcast %cst_87 : f32 to vector<2x16xf32>
    %121 = arith.maximumf %119, %120 : vector<2x16xf32>
    %c0_88 = arith.constant 0 : index
    %c0_89 = arith.constant 0 : index
    %122 = vector.load %arg10[%c0_88, %c0_89] : memref<16x64xf32, #tpu.memory_space<vmem>>, vector<16x64xf32>
    %cst_90 = arith.constant dense<0.000000e+00> : vector<2x64xf32>
    %123 = tpu.matmul %121, %122, %cst_90 {dimension_numbers = #tpu.dot_dimension_numbers<[1], [0], [0], [1], [0, 0, 1, 1], [], []>} : vector<2x16xf32>, vector<16x64xf32>, vector<2x64xf32> -> vector<2x64xf32>
    %c0_91 = arith.constant 0 : index
    %c0_92 = arith.constant 0 : index
    %124 = vector.load %arg11[%c0_91, %c0_92] : memref<1x64xf32, #tpu.memory_space<vmem>>, vector<1x64xf32>
    %125 = vector.broadcast %124 : vector<1x64xf32> to vector<2x64xf32>
    %126 = arith.addf %123, %125 : vector<2x64xf32>
    %cst_93 = arith.constant 3.000000e+00 : f32
    %127 = vector.broadcast %cst_93 : f32 to vector<2x64xf32>
    %128 = arith.addf %126, %127 : vector<2x64xf32>
    %cst_94 = arith.constant 0.000000e+00 : f32
    %129 = vector.broadcast %cst_94 : f32 to vector<2x64xf32>
    %130 = arith.maximumf %128, %129 : vector<2x64xf32>
    %cst_95 = arith.constant 6.000000e+00 : f32
    %131 = vector.broadcast %cst_95 : f32 to vector<2x64xf32>
    %132 = arith.minimumf %130, %131 : vector<2x64xf32>
    %cst_96 = arith.constant 0.166666672 : f32
    %133 = vector.broadcast %cst_96 : f32 to vector<2x64xf32>
    %134 = arith.mulf %132, %133 : vector<2x64xf32>
    %135 = vector.shape_cast %134 : vector<2x64xf32> to vector<2x1x1x64xf32>
    %136 = vector.broadcast %135 : vector<2x1x1x64xf32> to vector<2x16x16x64xf32>
    %137 = arith.mulf %111, %136 : vector<2x16x16x64xf32>
    %138 = vector.shape_cast %137 : vector<2x16x16x64xf32> to vector<512x64xf32>
    %139 = arith.truncf %138 : vector<512x64xf32> to vector<512x64xbf16>
    %c0_97 = arith.constant 0 : index
    %c0_98 = arith.constant 0 : index
    %140 = vector.load %arg12[%c0_97, %c0_98] : memref<64x128xbf16, #tpu.memory_space<vmem>>, vector<64x128xbf16>
    %cst_99 = arith.constant dense<0.000000e+00> : vector<512x128xf32>
    %141 = tpu.matmul %139, %140, %cst_99 {dimension_numbers = #tpu.dot_dimension_numbers<[1], [0], [0], [1], [0, 0, 1, 1], [], []>} : vector<512x64xbf16>, vector<64x128xbf16>, vector<512x128xf32> -> vector<512x128xf32>
    %c0_100 = arith.constant 0 : index
    %c0_101 = arith.constant 0 : index
    %142 = vector.load %arg13[%c0_100, %c0_101] : memref<1x128xf32, #tpu.memory_space<vmem>>, vector<1x128xf32>
    %143 = vector.broadcast %142 : vector<1x128xf32> to vector<512x128xf32>
    %144 = arith.mulf %141, %143 : vector<512x128xf32>
    %c0_102 = arith.constant 0 : index
    %c0_103 = arith.constant 0 : index
    %145 = vector.load %arg14[%c0_102, %c0_103] : memref<1x128xf32, #tpu.memory_space<vmem>>, vector<1x128xf32>
    %146 = vector.broadcast %145 : vector<1x128xf32> to vector<512x128xf32>
    %147 = arith.addf %144, %146 : vector<512x128xf32>
    %148 = vector.shape_cast %147 : vector<512x128xf32> to vector<2x256x128xf32>
    %c0_104 = arith.constant 0 : index
    %c0_105 = arith.constant 0 : index
    %c0_106 = arith.constant 0 : index
    %149 = vector.load %arg1[%c0_104, %c0_105, %c0_106] : memref<2x256x128xf32, #tpu.memory_space<vmem>>, vector<2x256x128xf32>
    %150 = arith.addf %148, %149 : vector<2x256x128xf32>
    %c0_107 = arith.constant 0 : index
    %c0_108 = arith.constant 0 : index
    %c0_109 = arith.constant 0 : index
    %151 = vector.load %arg15[%c0_107, %c0_108, %c0_109] : memref<2x256x128xf32, #tpu.memory_space<vmem>>, vector<2x256x128xf32>
    tpu.vector_store %arg15[%c0_107, %c0_108, %c0_109], %150 {strides = array<i32>} : memref<2x256x128xf32, #tpu.memory_space<vmem>>, vector<2x256x128xf32>,
    return
  }
  func.func @transform_0(%arg0: i32) -> (i32, i32, i32) {
    %c0_i32 = arith.constant 0 : i32
    %c0_i32_0 = arith.constant 0 : i32
    %c0_i32_1 = arith.constant 0 : i32
    return %arg0, %c0_i32, %c0_i32_0 : i32, i32, i32
  }
  func.func @transform_1(%arg0: i32) -> (i32, i32) {
    %c0_i32 = arith.constant 0 : i32
    %c0_i32_0 = arith.constant 0 : i32
    %c0_i32_1 = arith.constant 0 : i32
    return %c0_i32, %c0_i32_0 : i32, i32
  }
  func.func @transform_2(%arg0: i32) -> (i32, i32) {
    %c0_i32 = arith.constant 0 : i32
    %c0_i32_0 = arith.constant 0 : i32
    %c0_i32_1 = arith.constant 0 : i32
    return %c0_i32, %c0_i32_0 : i32, i32
  }
  func.func @transform_3(%arg0: i32) -> (i32, i32) {
    %c0_i32 = arith.constant 0 : i32
    %c0_i32_0 = arith.constant 0 : i32
    %c0_i32_1 = arith.constant 0 : i32
    return %c0_i32, %c0_i32_0 : i32, i32
  }
  func.func @transform_4(%arg0: i32) -> (i32, i32) {
    %c0_i32 = arith.constant 0 : i32
    %c0_i32_0 = arith.constant 0 : i32
    %c0_i32_1 = arith.constant 0 : i32
    return %c0_i32, %c0_i32_0 : i32, i32
  }
  func.func @transform_5(%arg0: i32) -> (i32, i32) {
    %c0_i32 = arith.constant 0 : i32
    %c0_i32_0 = arith.constant 0 : i32
    %c0_i32_1 = arith.constant 0 : i32
    return %c0_i32, %c0_i32_0 : i32, i32
  }
  func.func @transform_6(%arg0: i32) -> (i32, i32) {
    %c0_i32 = arith.constant 0 : i32
    %c0_i32_0 = arith.constant 0 : i32
    %c0_i32_1 = arith.constant 0 : i32
    return %c0_i32, %c0_i32_0 : i32, i32
  }
  func.func @transform_7(%arg0: i32) -> (i32, i32) {
    %c0_i32 = arith.constant 0 : i32
    %c0_i32_0 = arith.constant 0 : i32
    %c0_i32_1 = arith.constant 0 : i32
    return %c0_i32, %c0_i32_0 : i32, i32
  }
  func.func @transform_8(%arg0: i32) -> (i32, i32) {
    %c0_i32 = arith.constant 0 : i32
    %c0_i32_0 = arith.constant 0 : i32
    %c0_i32_1 = arith.constant 0 : i32
    return %c0_i32, %c0_i32_0 : i32, i32
  }
  func.func @transform_9(%arg0: i32) -> (i32, i32) {
    %c0_i32 = arith.constant 0 : i32
    %c0_i32_0 = arith.constant 0 : i32
    %c0_i32_1 = arith.constant 0 : i32
    return %c0_i32, %c0_i32_0 : i32, i32
  }
  func.func @transform_10(%arg0: i32) -> (i32, i32) {
    %c0_i32 = arith.constant 0 : i32
    %c0_i32_0 = arith.constant 0 : i32
    %c0_i32_1 = arith.constant 0 : i32
    return %c0_i32, %c0_i32_0 : i32, i32
  }
  func.func @transform_11(%arg0: i32) -> (i32, i32) {
    %c0_i32 = arith.constant 0 : i32
    %c0_i32_0 = arith.constant 0 : i32
    %c0_i32_1 = arith.constant 0 : i32
    return %c0_i32, %c0_i32_0 : i32, i32
  }
  func.func @transform_12(%arg0: i32) -> (i32, i32) {
    %c0_i32 = arith.constant 0 : i32
    %c0_i32_0 = arith.constant 0 : i32
    %c0_i32_1 = arith.constant 0 : i32
    return %c0_i32, %c0_i32_0 : i32, i32
  }
  func.func @transform_13(%arg0: i32) -> (i32, i32) {
    %c0_i32 = arith.constant 0 : i32
    %c0_i32_0 = arith.constant 0 : i32
    %c0_i32_1 = arith.constant 0 : i32
    return %c0_i32, %c0_i32_0 : i32, i32
  }
  func.func @transform_14(%arg0: i32) -> (i32, i32, i32) {
    %c0_i32 = arith.constant 0 : i32
    %c0_i32_0 = arith.constant 0 : i32
    %c0_i32_1 = arith.constant 0 : i32
    return %arg0, %c0_i32, %c0_i32_0 : i32, i32, i32
  }
}

</mosaic_0001>

<llo_original>
// kernel: bneck_forward.1
$region0: #{bneck_forward.1}
  #allocation0 [shape = 'u32[]', space=smem, size = 0x4, offset = 0x4, fixed_abs, tag = 'smem constant byte address 0x4 - core index']
  #allocation1 [shape = 'u32[144,128]{1,0:T(1,128)}', space=vmem, size = 0x12000, scoped, tag = 'internal scratch']
  #allocation2 [shape = 'f32[2,18,18,64]{3,2,1,0:T(8,128)}', space=vmem, size = 0x6c000, scoped, tag = 'scratch operand']
  %s0 = inlined_call_operand.vmem [shape: f32[4,256,128], index: 0, kind: input, shape index: {}]
  %s1 = inlined_call_operand.vmem [shape: bf16[128,64], index: 1, kind: input, shape index: {}]
  %s2 = inlined_call_operand.vmem [shape: f32[1,64], index: 2, kind: input, shape index: {}]
  %s3 = inlined_call_operand.vmem [shape: f32[1,64], index: 3, kind: input, shape index: {}]
  %s4 = inlined_call_operand.vmem [shape: f32[9,64], index: 4, kind: input, shape index: {}]
  %s5 = inlined_call_operand.vmem [shape: f32[1,64], index: 5, kind: input, shape index: {}]
  %s6 = inlined_call_operand.vmem [shape: f32[1,64], index: 6, kind: input, shape index: {}]
  %s7 = inlined_call_operand.vmem [shape: f32[64,16], index: 7, kind: input, shape index: {}]
  %s8 = inlined_call_operand.vmem [shape: f32[1,16], index: 8, kind: input, shape index: {}]
  %s9 = inlined_call_operand.vmem [shape: f32[16,64], index: 9, kind: input, shape index: {}]
  %s10 = inlined_call_operand.vmem [shape: f32[1,64], index: 10, kind: input, shape index: {}]
  %s11 = inlined_call_operand.vmem [shape: bf16[64,128], index: 11, kind: input, shape index: {}]
  %s12 = inlined_call_operand.vmem [shape: f32[1,128], index: 12, kind: input, shape index: {}]
  %s13 = inlined_call_operand.vmem [shape: f32[1,128], index: 13, kind: input, shape index: {}]
  %s14 = inlined_call_operand.vmem [shape: f32[4,256,128], index: 14, kind: output, shape index: {}]
  %s15 = sld [smem:[#allocation0]]
  $region89: #{bneck_forward.1} parent=0
    _
  %s17 = ssub.s32 1, %s15
  %s18 = scalar_select 0, %s17, %s15
  loop: start=0, step=1, limit=4
  $region2: #{bneck_forward.1} parent=0 // loop_pre_header
    _
  $region3: #{bneck_forward.1} parent=0 // loop_header
    %s20 = sphi 0, %s24
    %p21 = scmp.ge.s32.totalorder %s20, 4
    %s30 = sphi 0, %s32
    %s33 = sphi 0, %s30
    %s34 = sphi 0, %s33
    %s50 = sphi 0, %s34
    %s54 = sphi 0, %s54
    %s56 = sphi 0, %s54
    %s57 = sphi 0, %s56
    %s71 = sphi 0, %s57
    %s75 = sphi 0, %s75
    %s77 = sphi 0, %s75
    %s78 = sphi 0, %s77
    %s92 = sphi 0, %s78
    %s96 = sphi 0, %s96
    %s98 = sphi 0, %s96
    %s99 = sphi 0, %s98
    %s113 = sphi 0, %s99
    %s117 = sphi 0, %s117
    %s119 = sphi 0, %s117
    %s120 = sphi 0, %s119
    %s134 = sphi 0, %s120
    %s138 = sphi 0, %s138
    %s140 = sphi 0, %s138
    %s141 = sphi 0, %s140
    %s155 = sphi 0, %s141
    %s159 = sphi 0, %s159
    %s161 = sphi 0, %s159
    %s162 = sphi 0, %s161
    %s176 = sphi 0, %s162
    %s180 = sphi 0, %s180
    %s182 = sphi 0, %s180
    %s183 = sphi 0, %s182
    %s197 = sphi 0, %s183
    %s201 = sphi 0, %s201
    %s203 = sphi 0, %s201
    %s204 = sphi 0, %s203
    %s218 = sphi 0, %s204
    %s222 = sphi 0, %s222
    %s224 = sphi 0, %s222
    %s225 = sphi 0, %s224
    %s239 = sphi 0, %s225
    %s243 = sphi 0, %s243
    %s245 = sphi 0, %s243
    %s246 = sphi 0, %s245
    %s260 = sphi 0, %s246
    %s264 = sphi 0, %s264
    %s266 = sphi 0, %s264
    %s267 = sphi 0, %s266
    %s281 = sphi 0, %s267
    %s285 = sphi 0, %s285
    %s287 = sphi 0, %s285
    %s288 = sphi 0, %s287
    %s302 = sphi 0, %s288
    %s306 = sphi 0, %s306
    %s308 = sphi 0, %s306
    %s309 = sphi 0, %s308
    %s323 = sphi 0, %s309
    %s329 = sphi 0, %s331
    %s332 = sphi 0, %s329
    %s333 = sphi 0, %s332
    %s349 = sphi 0, %s333
  $region4: #{bneck_forward.1} parent=0 // loop_header_branch
    %23 = sbr.rel (%p21) target = $region8
  $region5: #{bneck_forward.1} parent=0 // loop_body
    %s25 = ssub.s32 %s20, 1
    %s26 = ssub.s32 %s20, 2
    %s27 = sadd.s32 %s20, 1
    %s28 = ssub.s32 %s20, %s27
    %p29 = scmp.eq.s32.totalorder %s28, 0
    %s31 = sadd.s32 %s30, 1
    %s32 = scalar_select %p29, %s30, %s31
    %p35 = pneg %p29
    %p36 = scmp.eq.s32.totalorder %s20, 1
    %p37 = por %p35, %p36
    %p38 = scmp.ne.s32.totalorder %s30, %s33
    %p39 = scmp.eq.s32.totalorder %s20, 0
    %p40 = por %p38, %p39
    %p41 = scmp.ne.s32.totalorder %s30, %s33
    %p42 = scmp.eq.s32.totalorder %s25, 1
    %p43 = por %p41, %p42
    %p44 = scmp.ne.s32.totalorder %s33, %s34
    %p45 = scmp.eq.s32.totalorder %s25, 0
    %p46 = por %p44, %p45
    %p47 = scmp.ne.s32.totalorder %s33, %s34
    %p48 = scmp.eq.s32.totalorder %s26, 1
    %p49 = por %p47, %p48
    %p51 = scmp.ne.s32.totalorder %s34, %s50
    %p52 = scmp.eq.s32.totalorder %s26, 0
    %p53 = por %p51, %p52
    %s55 = sadd.s32 %s54, 1
    %p58 = scmp.eq.s32.totalorder %s20, 1
    %p59 = scmp.ne.s32.totalorder %s54, %s56
    %p60 = scmp.eq.s32.totalorder %s20, 0
    %p61 = por %p59, %p60
    %p62 = scmp.ne.s32.totalorder %s54, %s56
    %p63 = scmp.eq.s32.totalorder %s25, 1
    %p64 = por %p62, %p63
    %p65 = scmp.ne.s32.totalorder %s56, %s57
    %p66 = scmp.eq.s32.totalorder %s25, 0
    %p67 = por %p65, %p66
    %p68 = scmp.ne.s32.totalorder %s56, %s57
    %p69 = scmp.eq.s32.totalorder %s26, 1
    %p70 = por %p68, %p69
    %p72 = scmp.ne.s32.totalorder %s57, %s71
    %p73 = scmp.eq.s32.totalorder %s26, 0
    %p74 = por %p72, %p73
    %s76 = sadd.s32 %s75, 1
    %p79 = scmp.eq.s32.totalorder %s20, 1
    %p80 = scmp.ne.s32.totalorder %s75, %s77
    %p81 = scmp.eq.s32.totalorder %s20, 0
    %p82 = por %p80, %p81
    %p83 = scmp.ne.s32.totalorder %s75, %s77
    %p84 = scmp.eq.s32.totalorder %s25, 1
    %p85 = por %p83, %p84
    %p86 = scmp.ne.s32.totalorder %s77, %s78
    %p87 = scmp.eq.s32.totalorder %s25, 0
    %p88 = por %p86, %p87
    %p89 = scmp.ne.s32.totalorder %s77, %s78
    %p90 = scmp.eq.s32.totalorder %s26, 1
    %p91 = por %p89, %p90
    %p93 = scmp.ne.s32.totalorder %s78, %s92
    %p94 = scmp.eq.s32.totalorder %s26, 0
    %p95 = por %p93, %p94
    %s97 = sadd.s32 %s96, 1
    %p100 = scmp.eq.s32.totalorder %s20, 1
    %p101 = scmp.ne.s32.totalorder %s96, %s98
    %p102 = scmp.eq.s32.totalorder %s20, 0
    %p103 = por %p101, %p102
    %p104 = scmp.ne.s32.totalorder %s96, %s98
    %p105 = scmp.eq.s32.totalorder %s25, 1
    %p106 = por %p104, %p105
    %p107 = scmp.ne.s32.totalorder %s98, %s99
    %p108 = scmp.eq.s32.totalorder %s25, 0
    %p109 = por %p107, %p108
    %p110 = scmp.ne.s32.totalorder %s98, %s99
    %p111 = scmp.eq.s32.totalorder %s26, 1
    %p112 = por %p110, %p111
    %p114 = scmp.ne.s32.totalorder %s99, %s113
    %p115 = scmp.eq.s32.totalorder %s26, 0
    %p116 = por %p114, %p115
    %s118 = sadd.s32 %s117, 1
    %p121 = scmp.eq.s32.totalorder %s20, 1
    %p122 = scmp.ne.s32.totalorder %s117, %s119
    %p123 = scmp.eq.s32.totalorder %s20, 0
    %p124 = por %p122, %p123
    %p125 = scmp.ne.s32.totalorder %s117, %s119
    %p126 = scmp.eq.s32.totalorder %s25, 1
    %p127 = por %p125, %p126
    %p128 = scmp.ne.s32.totalorder %s119, %s120
    %p129 = scmp.eq.s32.totalorder %s25, 0
    %p130 = por %p128, %p129
    %p131 = scmp.ne.s32.totalorder %s119, %s120
    %p132 = scmp.eq.s32.totalorder %s26, 1
    %p133 = por %p131, %p132
    %p135 = scmp.ne.s32.totalorder %s120, %s134
    %p136 = scmp.eq.s32.totalorder %s26, 0
    %p137 = por %p135, %p136
    %s139 = sadd.s32 %s138, 1
    %p142 = scmp.eq.s32.totalorder %s20, 1
    %p143 = scmp.ne.s32.totalorder %s138, %s140
    %p144 = scmp.eq.s32.totalorder %s20, 0
    %p145 = por %p143, %p144
    %p146 = scmp.ne.s32.totalorder %s138, %s140
    %p147 = scmp.eq.s32.totalorder %s25, 1
    %p148 = por %p146, %p147
    %p149 = scmp.ne.s32.totalorder %s140, %s141
    %p150 = scmp.eq.s32.totalorder %s25, 0
    %p151 = por %p149, %p150
    %p152 = scmp.ne.s32.totalorder %s140, %s141
    %p153 = scmp.eq.s32.totalorder %s26, 1
    %p154 = por %p152, %p153
    %p156 = scmp.ne.s32.totalorder %s141, %s155
    %p157 = scmp.eq.s32.totalorder %s26, 0
    %p158 = por %p156, %p157
    %s160 = sadd.s32 %s159, 1
    %p163 = scmp.eq.s32.totalorder %s20, 1
    %p164 = scmp.ne.s32.totalorder %s159, %s161
    %p165 = scmp.eq.s32.totalorder %s20, 0
    %p166 = por %p164, %p165
    %p167 = scmp.ne.s32.totalorder %s159, %s161
    %p168 = scmp.eq.s32.totalorder %s25, 1
    %p169 = por %p167, %p168
    %p170 = scmp.ne.s32.totalorder %s161, %s162
    %p171 = scmp.eq.s32.totalorder %s25, 0
    %p172 = por %p170, %p171
    %p173 = scmp.ne.s32.totalorder %s161, %s162
    %p174 = scmp.eq.s32.totalorder %s26, 1
    %p175 = por %p173, %p174
    %p177 = scmp.ne.s32.totalorder %s162, %s176
    %p178 = scmp.eq.s32.totalorder %s26, 0
    %p179 = por %p177, %p178
    %s181 = sadd.s32 %s180, 1
    %p184 = scmp.eq.s32.totalorder %s20, 1
    %p185 = scmp.ne.s32.totalorder %s180, %s182
    %p186 = scmp.eq.s32.totalorder %s20, 0
    %p187 = por %p185, %p186
    %p188 = scmp.ne.s32.totalorder %s180, %s182
    %p189 = scmp.eq.s32.totalorder %s25, 1
    %p190 = por %p188, %p189
    %p191 = scmp.ne.s32.totalorder %s182, %s183
    %p192 = scmp.eq.s32.totalorder %s25, 0
    %p193 = por %p191, %p192
    %p194 = scmp.ne.s32.totalorder %s182, %s183
    %p195 = scmp.eq.s32.totalorder %s26, 1
    %p196 = por %p194, %p195
    %p198 = scmp.ne.s32.totalorder %s183, %s197
    %p199 = scmp.eq.s32.totalorder %s26, 0
    %p200 = por %p198, %p199
    %s202 = sadd.s32 %s201, 1
    %p205 = scmp.eq.s32.totalorder %s20, 1
    %p206 = scmp.ne.s32.totalorder %s201, %s203
    %p207 = scmp.eq.s32.totalorder %s20, 0
    %p208 = por %p206, %p207
    %p209 = scmp.ne.s32.totalorder %s201, %s203
    %p210 = scmp.eq.s32.totalorder %s25, 1
    %p211 = por %p209, %p210
    %p212 = scmp.ne.s32.totalorder %s203, %s204
    %p213 = scmp.eq.s32.totalorder %s25, 0
    %p214 = por %p212, %p213
    %p215 = scmp.ne.s32.totalorder %s203, %s204
    %p216 = scmp.eq.s32.totalorder %s26, 1
    %p217 = por %p215, %p216
    %p219 = scmp.ne.s32.totalorder %s204, %s218
    %p220 = scmp.eq.s32.totalorder %s26, 0
    %p221 = por %p219, %p220
    %s223 = sadd.s32 %s222, 1
    %p226 = scmp.eq.s32.totalorder %s20, 1
    %p227 = scmp.ne.s32.totalorder %s222, %s224
    %p228 = scmp.eq.s32.totalorder %s20, 0
    %p229 = por %p227, %p228
    %p230 = scmp.ne.s32.totalorder %s222, %s224
    %p231 = scmp.eq.s32.totalorder %s25, 1
    %p232 = por %p230, %p231
    %p233 = scmp.ne.s32.totalorder %s224, %s225
    %p234 = scmp.eq.s32.totalorder %s25, 0
    %p235 = por %p233, %p234
    %p236 = scmp.ne.s32.totalorder %s224, %s225
    %p237 = scmp.eq.s32.totalorder %s26, 1
    %p238 = por %p236, %p237
    %p240 = scmp.ne.s32.totalorder %s225, %s239
    %p241 = scmp.eq.s32.totalorder %s26, 0
    %p242 = por %p240, %p241
    %s244 = sadd.s32 %s243, 1
    %p247 = scmp.eq.s32.totalorder %s20, 1
    %p248 = scmp.ne.s32.totalorder %s243, %s245
    %p249 = scmp.eq.s32.totalorder %s20, 0
    %p250 = por %p248, %p249
    %p251 = scmp.ne.s32.totalorder %s243, %s245
    %p252 = scmp.eq.s32.totalorder %s25, 1
    %p253 = por %p251, %p252
    %p254 = scmp.ne.s32.totalorder %s245, %s246
    %p255 = scmp.eq.s32.totalorder %s25, 0
    %p256 = por %p254, %p255
    %p257 = scmp.ne.s32.totalorder %s245, %s246
    %p258 = scmp.eq.s32.totalorder %s26, 1
    %p259 = por %p257, %p258
    %p261 = scmp.ne.s32.totalorder %s246, %s260
    %p262 = scmp.eq.s32.totalorder %s26, 0
    %p263 = por %p261, %p262
    %s265 = sadd.s32 %s264, 1
    %p268 = scmp.eq.s32.totalorder %s20, 1
    %p269 = scmp.ne.s32.totalorder %s264, %s266
    %p270 = scmp.eq.s32.totalorder %s20, 0
    %p271 = por %p269, %p270
    %p272 = scmp.ne.s32.totalorder %s264, %s266
    %p273 = scmp.eq.s32.totalorder %s25, 1
    %p274 = por %p272, %p273
    %p275 = scmp.ne.s32.totalorder %s266, %s267
    %p276 = scmp.eq.s32.totalorder %s25, 0
    %p277 = por %p275, %p276
    %p278 = scmp.ne.s32.totalorder %s266, %s267
    %p279 = scmp.eq.s32.totalorder %s26, 1
    %p280 = por %p278, %p279
    %p282 = scmp.ne.s32.totalorder %s267, %s281
    %p283 = scmp.eq.s32.totalorder %s26, 0
    %p284 = por %p282, %p283
    %s286 = sadd.s32 %s285, 1
    %p289 = scmp.eq.s32.totalorder %s20, 1
    %p290 = scmp.ne.s32.totalorder %s285, %s287
    %p291 = scmp.eq.s32.totalorder %s20, 0
    %p292 = por %p290, %p291
    %p293 = scmp.ne.s32.totalorder %s285, %s287
    %p294 = scmp.eq.s32.totalorder %s25, 1
    %p295 = por %p293, %p294
    %p296 = scmp.ne.s32.totalorder %s287, %s288
    %p297 = scmp.eq.s32.totalorder %s25, 0
    %p298 = por %p296, %p297
    %p299 = scmp.ne.s32.totalorder %s287, %s288
    %p300 = scmp.eq.s32.totalorder %s26, 1
    %p301 = por %p299, %p300
    %p303 = scmp.ne.s32.totalorder %s288, %s302
    %p304 = scmp.eq.s32.totalorder %s26, 0
    %p305 = por %p303, %p304
    %s307 = sadd.s32 %s306, 1
    %p310 = scmp.eq.s32.totalorder %s20, 1
    %p311 = scmp.ne.s32.totalorder %s306, %s308
    %p312 = scmp.eq.s32.totalorder %s20, 0
    %p313 = por %p311, %p312
    %p314 = scmp.ne.s32.totalorder %s306, %s308
    %p315 = scmp.eq.s32.totalorder %s25, 1
    %p316 = por %p314, %p315
    %p317 = scmp.ne.s32.totalorder %s308, %s309
    %p318 = scmp.eq.s32.totalorder %s25, 0
    %p319 = por %p317, %p318
    %p320 = scmp.ne.s32.totalorder %s308, %s309
    %p321 = scmp.eq.s32.totalorder %s26, 1
    %p322 = por %p320, %p321
    %p324 = scmp.ne.s32.totalorder %s309, %s323
    %p325 = scmp.eq.s32.totalorder %s26, 0
    %p326 = por %p324, %p325
    %s327 = ssub.s32 %s20, %s27
    %p328 = scmp.eq.s32.totalorder %s327, 0
    %s330 = sadd.s32 %s329, 1
    %s331 = scalar_select %p328, %s329, %s330
    %p334 = pneg %p328
    %p335 = scmp.eq.s32.totalorder %s20, 1
    %p336 = por %p334, %p335
    %p337 = scmp.ne.s32.totalorder %s329, %s332
    %p338 = scmp.eq.s32.totalorder %s20, 0
    %p339 = por %p337, %p338
    %p340 = scmp.ne.s32.totalorder %s329, %s332
    %p341 = scmp.eq.s32.totalorder %s25, 1
    %p342 = por %p340, %p341
    %p343 = scmp.ne.s32.totalorder %s332, %s333
    %p344 = scmp.eq.s32.totalorder %s25, 0
    %p345 = por %p343, %p344
    %p346 = scmp.ne.s32.totalorder %s332, %s333
    %p347 = scmp.eq.s32.totalorder %s26, 1
    %p348 = por %p346, %p347
    %p350 = scmp.ne.s32.totalorder %s333, %s349
    %p351 = scmp.eq.s32.totalorder %s26, 0
    %p352 = por %p350, %p351
    %p353 = scmp.le.s32.totalorder 1, %s20
    %p354 = scmp.lt.s32.totalorder %s20, 3
    %p355 = pnand %p353, %p354
    %p356 = pneg %p355
    // Predicated region
    $region9: #{bneck_forward.1} parent=5 // pred_check
      _
    $region10: #{bneck_forward.1} parent=5 // pred_check_branch
      %358 = sbr.rel (%p355) target = $region12
    $region11: #{bneck_forward.1} parent=5 // pred_region
      %s359 = ssub.s32 %s20, 1
      // Predicated region
      $region13: #{bneck_forward.1} parent=11 // pred_check
        %p360 = pneg %p67
      $region14: #{bneck_forward.1} parent=11 // pred_check_branch
        %362 = sbr.rel (%p360) target = $region16
      $region15: #{bneck_forward.1} parent=11 // pred_region
        _
      $region16: #{bneck_forward.1} parent=11 // pred_fallthru
        _
      // Predicated region
      $region17: #{bneck_forward.1} parent=11 // pred_check
        %p363 = pneg %p88
      $region18: #{bneck_forward.1} parent=11 // pred_check_branch
        %365 = sbr.rel (%p363) target = $region20
      $region19: #{bneck_forward.1} parent=11 // pred_region
        _
      $region20: #{bneck_forward.1} parent=11 // pred_fallthru
        _
      // Predicated region
      $region21: #{bneck_forward.1} parent=11 // pred_check
        %p366 = pneg %p109
      $region22: #{bneck_forward.1} parent=11 // pred_check_branch
        %368 = sbr.rel (%p366) target = $region24
      $region23: #{bneck_forward.1} parent=11 // pred_region
        _
      $region24: #{bneck_forward.1} parent=11 // pred_fallthru
        _
      // Predicated region
      $region25: #{bneck_forward.1} parent=11 // pred_check
        %p369 = pneg %p130
      $region26: #{bneck_forward.1} parent=11 // pred_check_branch
        %371 = sbr.rel (%p369) target = $region28
      $region27: #{bneck_forward.1} parent=11 // pred_region
        _
      $region28: #{bneck_forward.1} parent=11 // pred_fallthru
        _
      // Predicated region
      $region29: #{bneck_forward.1} parent=11 // pred_check
        %p372 = pneg %p151
      $region30: #{bneck_forward.1} parent=11 // pred_check_branch
        %374 = sbr.rel (%p372) target = $region32
      $region31: #{bneck_forward.1} parent=11 // pred_region
        _
      $region32: #{bneck_forward.1} parent=11 // pred_fallthru
        _
      // Predicated region
      $region33: #{bneck_forward.1} parent=11 // pred_check
        %p375 = pneg %p172
      $region34: #{bneck_forward.1} parent=11 // pred_check_branch
        %377 = sbr.rel (%p375) target = $region36
      $region35: #{bneck_forward.1} parent=11 // pred_region
        _
      $region36: #{bneck_forward.1} parent=11 // pred_fallthru
        _
      // Predicated region
      $region37: #{bneck_forward.1} parent=11 // pred_check
        %p378 = pneg %p193
      $region38: #{bneck_forward.1} parent=11 // pred_check_branch
        %380 = sbr.rel (%p378) target = $region40
      $region39: #{bneck_forward.1} parent=11 // pred_region
        _
      $region40: #{bneck_forward.1} parent=11 // pred_fallthru
        _
      // Predicated region
      $region41: #{bneck_forward.1} parent=11 // pred_check
        %p381 = pneg %p214
      $region42: #{bneck_forward.1} parent=11 // pred_check_branch
        %383 = sbr.rel (%p381) target = $region44
      $region43: #{bneck_forward.1} parent=11 // pred_region
        _
      $region44: #{bneck_forward.1} parent=11 // pred_fallthru
        _
      // Predicated region
      $region45: #{bneck_forward.1} parent=11 // pred_check
        %p384 = pneg %p235
      $region46: #{bneck_forward.1} parent=11 // pred_check_branch
        %386 = sbr.rel (%p384) target = $region48
      $region47: #{bneck_forward.1} parent=11 // pred_region
        _
      $region48: #{bneck_forward.1} parent=11 // pred_fallthru
        _
      // Predicated region
      $region49: #{bneck_forward.1} parent=11 // pred_check
        %p387 = pneg %p256
      $region50: #{bneck_forward.1} parent=11 // pred_check_branch
        %389 = sbr.rel (%p387) target = $region52
      $region51: #{bneck_forward.1} parent=11 // pred_region
        _
      $region52: #{bneck_forward.1} parent=11 // pred_fallthru
        _
      // Predicated region
      $region53: #{bneck_forward.1} parent=11 // pred_check
        %p390 = pneg %p277
      $region54: #{bneck_forward.1} parent=11 // pred_check_branch
        %392 = sbr.rel (%p390) target = $region56
      $region55: #{bneck_forward.1} parent=11 // pred_region
        _
      $region56: #{bneck_forward.1} parent=11 // pred_fallthru
        _
      // Predicated region
      $region57: #{bneck_forward.1} parent=11 // pred_check
        %p393 = pneg %p298
      $region58: #{bneck_forward.1} parent=11 // pred_check_branch
        %395 = sbr.rel (%p393) target = $region60
      $region59: #{bneck_forward.1} parent=11 // pred_region
        _
      $region60: #{bneck_forward.1} parent=11 // pred_fallthru
        _
      // Predicated region
      $region61: #{bneck_forward.1} parent=11 // pred_check
        %p396 = pneg %p319
      $region62: #{bneck_forward.1} parent=11 // pred_check_branch
        %398 = sbr.rel (%p396) target = $region64
      $region63: #{bneck_forward.1} parent=11 // pred_region
        _
      $region64: #{bneck_forward.1} parent=11 // pred_fallthru
        _
    $region12: #{bneck_forward.1} parent=5 // pred_fallthru
      _
    %p399 = scmp.lt.s32.totalorder %s20, 2
    // Predicated region
    $region65: #{bneck_forward.1} parent=5 // pred_check
      %p400 = pneg %p399
    $region66: #{bneck_forward.1} parent=5 // pred_check_branch
      %402 = sbr.rel (%p400) target = $region68
    $region67: #{bneck_forward.1} parent=5 // pred_region
      // Predicated region
      $region69: #{bneck_forward.1} parent=67 // pred_check
        %p403 = pneg %p40
      $region70: #{bneck_forward.1} parent=67 // pred_check_branch
        %405 = sbr.rel (%p403) target = $region72
      $region71: #{bneck_forward.1} parent=67 // pred_region
        %s406 = smul.u32 2, %s20
        %p407 = scmp.lt.s32.totalorder %s406, 3
        %s408 = scalar_select %p407, %s406, 3
        %s409 = smul.addr %s408, 32
        %s410 = smul.addr %s409, 8
        %s411 = scalar_lea.vmem %s0, %s410
        %s412 = smul.u32 2, %s20
      $region72: #{bneck_forward.1} parent=67 // pred_fallthru
        _
    $region68: #{bneck_forward.1} parent=5 // pred_fallthru
      _
    %p413 = scmp.le.s32.totalorder 1, %s20
    %p414 = scmp.lt.s32.totalorder %s20, 3
    %p415 = pnand %p413, %p414
    %p416 = pneg %p415
    // Predicated region
    $region73: #{bneck_forward.1} parent=5 // pred_check
      _
    $region74: #{bneck_forward.1} parent=5 // pred_check_branch
      %418 = sbr.rel (%p415) target = $region76
    $region75: #{bneck_forward.1} parent=5 // pred_region
      %s419 = ssub.s32 %s20, 1
      %s420 = smul.u32 2, %s25
      %p421 = scmp.lt.s32.totalorder %s420, 3
      %s422 = scalar_select %p421, %s420, 3
      %s423 = smul.addr %s422, 32
      %s424 = smul.addr %s423, 8
      %s425 = scalar_lea.vmem %s0, %s424
      %p426 = pneg %p46
      %p427 = pneg %p43
      %p428 = pneg %p67
      %p429 = pneg %p64
      %p430 = pneg %p88
      %p431 = pneg %p85
      %p432 = pneg %p109
      %p433 = pneg %p106
      %p434 = pneg %p130
      %p435 = pneg %p127
      %p436 = pneg %p151
      %p437 = pneg %p148
      %p438 = pneg %p172
      %p439 = pneg %p169
      %p440 = pneg %p193
      %p441 = pneg %p190
      %p442 = pneg %p214
      %p443 = pneg %p211
      %p444 = pneg %p235
      %p445 = pneg %p232
      %p446 = pneg %p256
      %p447 = pneg %p253
      %p448 = pneg %p277
      %p449 = pneg %p274
      %p450 = pneg %p298
      %p451 = pneg %p295
      %p452 = pneg %p319
      %p453 = pneg %p316
      %p454 = pneg %p345
      %p455 = pneg %p342
      %s456 = smul.u32 2, %s25
      %p457 = scmp.lt.s32.totalorder %s456, 3
      %s458 = scalar_select %p457, %s456, 3
      %s459 = smul.addr %s458, 32
      %s460 = smul.addr %s459, 8
      %s461 = scalar_lea.vmem %s14, %s460
      %s462 = smul.u32 2, %s25
      %p463 = scmp.lt.s32.totalorder %s462, 3
      %s464 = scalar_select %p463, %s462, 3
      %s465 = smul.addr %s464, 32
      %s466 = smul.addr %s465, 8
      %s467 = scalar_lea.vmem %s0, %s466
      %s468 = smul.u32 2, %s25
      %s469 = smul.u32 2, %s25
      %p470 = scmp.lt.s32.totalorder %s469, 3
      %s471 = scalar_select %p470, %s469, 3
      %s472 = smul.addr %s471, 32
      %s473 = smul.addr %s472, 8
      %s474 = scalar_lea.vmem %s14, %s473
      %s475 = smul.u32 2, %s25
      %v477 = vld [vmem:[%s467] sm:$0xff]
      %v478 = vld [vmem:[%s467 + $0x8] sm:$0xff]
      %v479 = vld [vmem:[%s467 + $0x10] sm:$0xff]
      %v480 = vld [vmem:[%s467 + $0x18] sm:$0xff]
      %v481 = vld [vmem:[%s467 + $0x20] sm:$0xff]
      %v482 = vld [vmem:[%s467 + $0x28] sm:$0xff]
      %v483 = vld [vmem:[%s467 + $0x30] sm:$0xff]
      %v484 = vld [vmem:[%s467 + $0x38] sm:$0xff]
      %v485 = vld [vmem:[%s467 + $0x40] sm:$0xff]
      %v486 = vld [vmem:[%s467 + $0x48] sm:$0xff]
      %v487 = vld [vmem:[%s467 + $0x50] sm:$0xff]
      %v488 = vld [vmem:[%s467 + $0x58] sm:$0xff]
      %v489 = vld [vmem:[%s467 + $0x60] sm:$0xff]
      %v490 = vld [vmem:[%s467 + $0x68] sm:$0xff]
      %v491 = vld [vmem:[%s467 + $0x70] sm:$0xff]
      %v492 = vld [vmem:[%s467 + $0x78] sm:$0xff]
      %v493 = vld [vmem:[%s467 + $0x80] sm:$0xff]
      %v494 = vld [vmem:[%s467 + $0x88] sm:$0xff]
      %v495 = vld [vmem:[%s467 + $0x90] sm:$0xff]
      %v496 = vld [vmem:[%s467 + $0x98] sm:$0xff]
      %v497 = vld [vmem:[%s467 + $0xa0] sm:$0xff]
      %v498 = vld [vmem:[%s467 + $0xa8] sm:$0xff]
      %v499 = vld [vmem:[%s467 + $0xb0] sm:$0xff]
      %v500 = vld [vmem:[%s467 + $0xb8] sm:$0xff]
      %v501 = vld [vmem:[%s467 + $0xc0] sm:$0xff]
      %v502 = vld [vmem:[%s467 + $0xc8] sm:$0xff]
      %v503 = vld [vmem:[%s467 + $0xd0] sm:$0xff]
      %v504 = vld [vmem:[%s467 + $0xd8] sm:$0xff]
      %v505 = vld [vmem:[%s467 + $0xe0] sm:$0xff]
      %v506 = vld [vmem:[%s467 + $0xe8] sm:$0xff]
      %v507 = vld [vmem:[%s467 + $0xf0] sm:$0xff]
      %v508 = vld [vmem:[%s467 + $0xf8] sm:$0xff]
      %v509 = vld [vmem:[%s467 + $0x100] sm:$0xff]
      %v510 = vld [vmem:[%s467 + $0x108] sm:$0xff]
      %v511 = vld [vmem:[%s467 + $0x110] sm:$0xff]
      %v512 = vld [vmem:[%s467 + $0x118] sm:$0xff]
      %v513 = vld [vmem:[%s467 + $0x120] sm:$0xff]
      %v514 = vld [vmem:[%s467 + $0x128] sm:$0xff]
      %v515 = vld [vmem:[%s467 + $0x130] sm:$0xff]
      %v516 = vld [vmem:[%s467 + $0x138] sm:$0xff]
      %v517 = vld [vmem:[%s467 + $0x140] sm:$0xff]
      %v518 = vld [vmem:[%s467 + $0x148] sm:$0xff]
      %v519 = vld [vmem:[%s467 + $0x150] sm:$0xff]
      %v520 = vld [vmem:[%s467 + $0x158] sm:$0xff]
      %v521 = vld [vmem:[%s467 + $0x160] sm:$0xff]
      %v522 = vld [vmem:[%s467 + $0x168] sm:$0xff]
      %v523 = vld [vmem:[%s467 + $0x170] sm:$0xff]
      %v524 = vld [vmem:[%s467 + $0x178] sm:$0xff]
      %v525 = vld [vmem:[%s467 + $0x180] sm:$0xff]
      %v526 = vld [vmem:[%s467 + $0x188] sm:$0xff]
      %v527 = vld [vmem:[%s467 + $0x190] sm:$0xff]
      %v528 = vld [vmem:[%s467 + $0x198] sm:$0xff]
      %v529 = vld [vmem:[%s467 + $0x1a0] sm:$0xff]
      %v530 = vld [vmem:[%s467 + $0x1a8] sm:$0xff]
      %v531 = vld [vmem:[%s467 + $0x1b0] sm:$0xff]
      %v532 = vld [vmem:[%s467 + $0x1b8] sm:$0xff]
      %v533 = vld [vmem:[%s467 + $0x1c0] sm:$0xff]
      %v534 = vld [vmem:[%s467 + $0x1c8] sm:$0xff]
      %v535 = vld [vmem:[%s467 + $0x1d0] sm:$0xff]
      %v536 = vld [vmem:[%s467 + $0x1d8] sm:$0xff]
      %v537 = vld [vmem:[%s467 + $0x1e0] sm:$0xff]
      %v538 = vld [vmem:[%s467 + $0x1e8] sm:$0xff]
      %v539 = vld [vmem:[%s467 + $0x1f0] sm:$0xff]
      %v540 = vld [vmem:[%s467 + $0x1f8] sm:$0xff]
      %v541 = vpack.c.bf16 %v478, %v477
      %v542 = vpack.c.bf16 %v480, %v479
      %v543 = vpack.c.bf16 %v482, %v481
      %v544 = vpack.c.bf16 %v484, %v483
      %v545 = vpack.c.bf16 %v486, %v485
      %v546 = vpack.c.bf16 %v488, %v487
      %v547 = vpack.c.bf16 %v490, %v489
      %v548 = vpack.c.bf16 %v492, %v491
      %v549 = vpack.c.bf16 %v494, %v493
      %v550 = vpack.c.bf16 %v496, %v495
      %v551 = vpack.c.bf16 %v498, %v497
      %v552 = vpack.c.bf16 %v500, %v499
      %v553 = vpack.c.bf16 %v502, %v501
      %v554 = vpack.c.bf16 %v504, %v503
      %v555 = vpack.c.bf16 %v506, %v505
      %v556 = vpack.c.bf16 %v508, %v507
      %v557 = vpack.c.bf16 %v510, %v509
      %v558 = vpack.c.bf16 %v512, %v511
      %v559 = vpack.c.bf16 %v514, %v513
      %v560 = vpack.c.bf16 %v516, %v515
      %v561 = vpack.c.bf16 %v518, %v517
      %v562 = vpack.c.bf16 %v520, %v519
      %v563 = vpack.c.bf16 %v522, %v521
      %v564 = vpack.c.bf16 %v524, %v523
      %v565 = vpack.c.bf16 %v526, %v525
      %v566 = vpack.c.bf16 %v528, %v527
      %v567 = vpack.c.bf16 %v530, %v529
      %v568 = vpack.c.bf16 %v532, %v531
      %v569 = vpack.c.bf16 %v534, %v533
      %v570 = vpack.c.bf16 %v536, %v535
      %v571 = vpack.c.bf16 %v538, %v537
      %v572 = vpack.c.bf16 %v540, %v539
      %v573 = vld [vmem:[%s1] sm:$0xf]
      %v574 = vld [vmem:[%s1 + $0x4] sm:$0xf]
      %v575 = vld [vmem:[%s1 + $0x8] sm:$0xf]
      %v576 = vld [vmem:[%s1 + $0xc] sm:$0xf]
      %v577 = vld [vmem:[%s1 + $0x10] sm:$0xf]
      %v578 = vld [vmem:[%s1 + $0x14] sm:$0xf]
      %v579 = vld [vmem:[%s1 + $0x18] sm:$0xf]
      %v580 = vld [vmem:[%s1 + $0x1c] sm:$0xf]
      %v581 = vld [vmem:[%s1 + $0x20] sm:$0xf]
      %v582 = vld [vmem:[%s1 + $0x24] sm:$0xf]
      %v583 = vld [vmem:[%s1 + $0x28] sm:$0xf]
      %v584 = vld [vmem:[%s1 + $0x2c] sm:$0xf]
      %v585 = vld [vmem:[%s1 + $0x30] sm:$0xf]
      %v586 = vld [vmem:[%s1 + $0x34] sm:$0xf]
      %v587 = vld [vmem:[%s1 + $0x38] sm:$0xf]
      %v588 = vld [vmem:[%s1 + $0x3c] sm:$0xf]
      %v605 = vunpack.c.l.b16 %v573
      %v606 = vunpack.c.l.b16 %v574
      %v607 = vunpack.c.l.b16 %v575
      %v608 = vunpack.c.l.b16 %v576
      %v609 = vunpack.c.l.b16 %v577
      %v610 = vunpack.c.l.b16 %v578
      %v611 = vunpack.c.l.b16 %v579
      %v612 = vunpack.c.l.b16 %v580
      %v613 = vunpack.c.l.b16 %v581
      %v614 = vunpack.c.l.b16 %v582
      %v615 = vunpack.c.l.b16 %v583
      %v616 = vunpack.c.l.b16 %v584
      %v617 = vunpack.c.l.b16 %v585
      %v618 = vunpack.c.l.b16 %v586
      %v619 = vunpack.c.l.b16 %v587
      %v620 = vunpack.c.l.b16 %v588
      %v621 = vpack.c.b16 %v606, %v605
      %v622 = vpack.c.b16 %v608, %v607
      %v623 = vpack.c.b16 %v610, %v609
      %v624 = vpack.c.b16 %v612, %v611
      %v625 = vpack.c.b16 %v614, %v613
      %v626 = vpack.c.b16 %v616, %v615
      %v627 = vpack.c.b16 %v618, %v617
      %v628 = vpack.c.b16 %v620, %v619
      %637 = vmatprep.subr.bf16.mxu0 0
      %638 = vmatpush1.bf16.msra.mxu0 %v621
      %639 = vmatprep.subr.bf16.mxu0 0
      %640 = vmatpush1.bf16.msra.mxu0 %v622
      %641 = vmatprep.subr.bf16.mxu0 0
      %642 = vmatpush1.bf16.msra.mxu0 %v623
      %643 = vmatprep.subr.bf16.mxu0 0
      %644 = vmatpush1.bf16.msra.mxu0 %v624
      %645 = vmatprep.subr.bf16.mxu0 0
      %646 = vmatpush1.bf16.msra.mxu0 %v625
      %647 = vmatprep.subr.bf16.mxu0 0
      %648 = vmatpush1.bf16.msra.mxu0 %v626
      %649 = vmatprep.subr.bf16.mxu0 0
      %650 = vmatpush1.bf16.msra.mxu0 %v627
      %651 = vmatprep.subr.bf16.mxu0 0
      %652 = vmatpush1.bf16.msra.mxu0 %v628
      %653 = vmatprep.subr.bf16.mxu0 0
      %654 = vmatpush1.bf16.msra.mxu0 0
      %655 = vmatprep.subr.bf16.mxu0 0
      %656 = vmatpush1.bf16.msra.mxu0 0
      %657 = vmatprep.subr.bf16.mxu0 0
      %658 = vmatpush1.bf16.msra.mxu0 0
      %659 = vmatprep.subr.bf16.mxu0 0
      %660 = vmatpush1.bf16.msra.mxu0 0
      %661 = vmatprep.subr.bf16.mxu0 0
      %662 = vmatpush1.bf16.msra.mxu0 0
      %663 = vmatprep.subr.bf16.mxu0 0
      %664 = vmatpush1.bf16.msra.mxu0 0
      %665 = vmatprep.subr.bf16.mxu0 0
      %666 = vmatpush1.bf16.msra.mxu0 0
      %667 = vmatprep.subr.bf16.mxu0 0
      %668 = vmatpush1.bf16.msra.mxu0 0
      %669 = vmatprep.mubr.bf16.mxu0 0
      %670 = vmatmul.mubr.bf16.gmra.mrb[0].mxu0 %v541
      %v671 = vpop.f32.mrb[0].mxu0
      %v672 = vadd.f32 0.0, %v671
      %v673 = vpop.f32.mrb[0].mxu0
      %v674 = vpop.f32.mrb[0].mxu0
      %v675 = vadd.f32 0.0, %v674
      %v676 = vpop.f32.mrb[0].mxu0
      %677 = vmatprep.mubr.bf16.mxu0 0
      %678 = vmatmul.mubr.bf16.gmra.mrb[0].mxu0 %v542
      %v679 = vpop.f32.mrb[0].mxu0
      %v680 = vadd.f32 0.0, %v679
      %v681 = vpop.f32.mrb[0].mxu0
      %v682 = vpop.f32.mrb[0].mxu0
      %v683 = vadd.f32 0.0, %v682
      %v684 = vpop.f32.mrb[0].mxu0
      %685 = vmatprep.mubr.bf16.mxu0 0
      %686 = vmatmul.mubr.bf16.gmra.mrb[0].mxu0 %v543
      %v687 = vpop.f32.mrb[0].mxu0
      %v688 = vadd.f32 0.0, %v687
      %v689 = vpop.f32.mrb[0].mxu0
      %v690 = vpop.f32.mrb[0].mxu0
      %v691 = vadd.f32 0.0, %v690
      %v692 = vpop.f32.mrb[0].mxu0
      %693 = vmatprep.mubr.bf16.mxu0 0
      %694 = vmatmul.mubr.bf16.gmra.mrb[0].mxu0 %v544
      %v695 = vpop.f32.mrb[0].mxu0
      %v696 = vadd.f32 0.0, %v695
      %v697 = vpop.f32.mrb[0].mxu0
      %v698 = vpop.f32.mrb[0].mxu0
      %v699 = vadd.f32 0.0, %v698
      %v700 = vpop.f32.mrb[0].mxu0
      %701 = vmatprep.mubr.bf16.mxu0 0
      %702 = vmatmul.mubr.bf16.gmra.mrb[0].mxu0 %v545
      %v703 = vpop.f32.mrb[0].mxu0
      %v704 = vadd.f32 0.0, %v703
      %v705 = vpop.f32.mrb[0].mxu0
      %v706 = vpop.f32.mrb[0].mxu0
      %v707 = vadd.f32 0.0, %v706
      %v708 = vpop.f32.mrb[0].mxu0
      %709 = vmatprep.mubr.bf16.mxu0 0
      %710 = vmatmul.mubr.bf16.gmra.mrb[0].mxu0 %v546
      %v711 = vpop.f32.mrb[0].mxu0
      %v712 = vadd.f32 0.0, %v711
      %v713 = vpop.f32.mrb[0].mxu0
      %v714 = vpop.f32.mrb[0].mxu0
      %v715 = vadd.f32 0.0, %v714
      %v716 = vpop.f32.mrb[0].mxu0
      %717 = vmatprep.mubr.bf16.mxu0 0
      %718 = vmatmul.mubr.bf16.gmra.mrb[0].mxu0 %v547
      %v719 = vpop.f32.mrb[0].mxu0
      %v720 = vadd.f32 0.0, %v719
      %v721 = vpop.f32.mrb[0].mxu0
      %v722 = vpop.f32.mrb[0].mxu0
      %v723 = vadd.f32 0.0, %v722
      %v724 = vpop.f32.mrb[0].mxu0
      %725 = vmatprep.mubr.bf16.mxu0 0
      %726 = vmatmul.mubr.bf16.gmra.mrb[0].mxu0 %v548
      %v727 = vpop.f32.mrb[0].mxu0
      %v728 = vadd.f32 0.0, %v727
      %v729 = vpop.f32.mrb[0].mxu0
      %v730 = vpop.f32.mrb[0].mxu0
      %v731 = vadd.f32 0.0, %v730
      %v732 = vpop.f32.mrb[0].mxu0
      %733 = vmatprep.mubr.bf16.mxu0 0
      %734 = vmatmul.mubr.bf16.gmra.mrb[0].mxu0 %v549
      %v735 = vpop.f32.mrb[0].mxu0
      %v736 = vadd.f32 0.0, %v735
      %v737 = vpop.f32.mrb[0].mxu0
      %v738 = vpop.f32.mrb[0].mxu0
      %v739 = vadd.f32 0.0, %v738
      %v740 = vpop.f32.mrb[0].mxu0
      %741 = vmatprep.mubr.bf16.mxu0 0
      %742 = vmatmul.mubr.bf16.gmra.mrb[0].mxu0 %v550
      %v743 = vpop.f32.mrb[0].mxu0
      %v744 = vadd.f32 0.0, %v743
      %v745 = vpop.f32.mrb[0].mxu0
      %v746 = vpop.f32.mrb[0].mxu0
      %v747 = vadd.f32 0.0, %v746
      %v748 = vpop.f32.mrb[0].mxu0
      %749 = vmatprep.mubr.bf16.mxu0 0
      %750 = vmatmul.mubr.bf16.gmra.mrb[0].mxu0 %v551
      %v751 = vpop.f32.mrb[0].mxu0
      %v752 = vadd.f32 0.0, %v751
      %v753 = vpop.f32.mrb[0].mxu0
      %v754 = vpop.f32.mrb[0].mxu0
      %v755 = vadd.f32 0.0, %v754
      %v756 = vpop.f32.mrb[0].mxu0
      %757 = vmatprep.mubr.bf16.mxu0 0
      %758 = vmatmul.mubr.bf16.gmra.mrb[0].mxu0 %v552
      %v759 = vpop.f32.mrb[0].mxu0
      %v760 = vadd.f32 0.0, %v759
      %v761 = vpop.f32.mrb[0].mxu0
      %v762 = vpop.f32.mrb[0].mxu0
      %v763 = vadd.f32 0.0, %v762
      %v764 = vpop.f32.mrb[0].mxu0
      %765 = vmatprep.mubr.bf16.mxu0 0
      %766 = vmatmul.mubr.bf16.gmra.mrb[0].mxu0 %v553
      %v767 = vpop.f32.mrb[0].mxu0
      %v768 = vadd.f32 0.0, %v767
      %v769 = vpop.f32.mrb[0].mxu0
      %v770 = vpop.f32.mrb[0].mxu0
      %v771 = vadd.f32 0.0, %v770
      %v772 = vpop.f32.mrb[0].mxu0
      %773 = vmatprep.mubr.bf16.mxu0 0
      %774 = vmatmul.mubr.bf16.gmra.mrb[0].mxu0 %v554
      %v775 = vpop.f32.mrb[0].mxu0
      %v776 = vadd.f32 0.0, %v775
      %v777 = vpop.f32.mrb[0].mxu0
      %v778 = vpop.f32.mrb[0].mxu0
      %v779 = vadd.f32 0.0, %v778
      %v780 = vpop.f32.mrb[0].mxu0
      %781 = vmatprep.mubr.bf16.mxu0 0
      %782 = vmatmul.mubr.bf16.gmra.mrb[0].mxu0 %v555
      %v783 = vpop.f32.mrb[0].mxu0
      %v784 = vadd.f32 0.0, %v783
      %v785 = vpop.f32.mrb[0].mxu0
      %v786 = vpop.f32.mrb[0].mxu0
      %v787 = vadd.f32 0.0, %v786
      %v788 = vpop.f32.mrb[0].mxu0
      %789 = vmatprep.mubr.bf16.mxu0 0
      %790 = vmatmul.mubr.bf16.gmra.mrb[0].mxu0 %v556
      %v791 = vpop.f32.mrb[0].mxu0
      %v792 = vadd.f32 0.0, %v791
      %v793 = vpop.f32.mrb[0].mxu0
      %v794 = vpop.f32.mrb[0].mxu0
      %v795 = vadd.f32 0.0, %v794
      %v796 = vpop.f32.mrb[0].mxu0
      %797 = vmatprep.mubr.bf16.mxu0 0
      %798 = vmatmul.mubr.bf16.gmra.mrb[0].mxu0 %v557
      %v799 = vpop.f32.mrb[0].mxu0
      %v800 = vadd.f32 0.0, %v799
      %v801 = vpop.f32.mrb[0].mxu0
      %v802 = vpop.f32.mrb[0].mxu0
      %v803 = vadd.f32 0.0, %v802
      %v804 = vpop.f32.mrb[0].mxu0
      %805 = vmatprep.mubr.bf16.mxu0 0
      %806 = vmatmul.mubr.bf16.gmra.mrb[0].mxu0 %v558
      %v807 = vpop.f32.mrb[0].mxu0
      %v808 = vadd.f32 0.0, %v807
      %v809 = vpop.f32.mrb[0].mxu0
      %v810 = vpop.f32.mrb[0].mxu0
      %v811 = vadd.f32 0.0, %v810
      %v812 = vpop.f32.mrb[0].mxu0
      %813 = vmatprep.mubr.bf16.mxu0 0
      %814 = vmatmul.mubr.bf16.gmra.mrb[0].mxu0 %v559
      %v815 = vpop.f32.mrb[0].mxu0
      %v816 = vadd.f32 0.0, %v815
      %v817 = vpop.f32.mrb[0].mxu0
      %v818 = vpop.f32.mrb[0].mxu0
      %v819 = vadd.f32 0.0, %v818
      %v820 = vpop.f32.mrb[0].mxu0
      %821 = vmatprep.mubr.bf16.mxu0 0
      %822 = vmatmul.mubr.bf16.gmra.mrb[0].mxu0 %v560
      %v823 = vpop.f32.mrb[0].mxu0
      %v824 = vadd.f32 0.0, %v823
      %v825 = vpop.f32.mrb[0].mxu0
      %v826 = vpop.f32.mrb[0].mxu0
      %v827 = vadd.f32 0.0, %v826
      %v828 = vpop.f32.mrb[0].mxu0
      %829 = vmatprep.mubr.bf16.mxu0 0
      %830 = vmatmul.mubr.bf16.gmra.mrb[0].mxu0 %v561
      %v831 = vpop.f32.mrb[0].mxu0
      %v832 = vadd.f32 0.0, %v831
      %v833 = vpop.f32.mrb[0].mxu0
      %v834 = vpop.f32.mrb[0].mxu0
      %v835 = vadd.f32 0.0, %v834
      %v836 = vpop.f32.mrb[0].mxu0
      %837 = vmatprep.mubr.bf16.mxu0 0
      %838 = vmatmul.mubr.bf16.gmra.mrb[0].mxu0 %v562
      %v839 = vpop.f32.mrb[0].mxu0
      %v840 = vadd.f32 0.0, %v839
      %v841 = vpop.f32.mrb[0].mxu0
      %v842 = vpop.f32.mrb[0].mxu0
      %v843 = vadd.f32 0.0, %v842
      %v844 = vpop.f32.mrb[0].mxu0
      %845 = vmatprep.mubr.bf16.mxu0 0
      %846 = vmatmul.mubr.bf16.gmra.mrb[0].mxu0 %v563
      %v847 = vpop.f32.mrb[0].mxu0
      %v848 = vadd.f32 0.0, %v847
      %v849 = vpop.f32.mrb[0].mxu0
      %v850 = vpop.f32.mrb[0].mxu0
      %v851 = vadd.f32 0.0, %v850
      %v852 = vpop.f32.mrb[0].mxu0
      %853 = vmatprep.mubr.bf16.mxu0 0
      %854 = vmatmul.mubr.bf16.gmra.mrb[0].mxu0 %v564
      %v855 = vpop.f32.mrb[0].mxu0
      %v856 = vadd.f32 0.0, %v855
      %v857 = vpop.f32.mrb[0].mxu0
      %v858 = vpop.f32.mrb[0].mxu0
      %v859 = vadd.f32 0.0, %v858
      %v860 = vpop.f32.mrb[0].mxu0
      %861 = vmatprep.mubr.bf16.mxu0 0
      %862 = vmatmul.mubr.bf16.gmra.mrb[0].mxu0 %v565
      %v863 = vpop.f32.mrb[0].mxu0
      %v864 = vadd.f32 0.0, %v863
      %v865 = vpop.f32.mrb[0].mxu0
      %v866 = vpop.f32.mrb[0].mxu0
      %v867 = vadd.f32 0.0, %v866
      %v868 = vpop.f32.mrb[0].mxu0
      %869 = vmatprep.mubr.bf16.mxu0 0
      %870 = vmatmul.mubr.bf16.gmra.mrb[0].mxu0 %v566
      %v871 = vpop.f32.mrb[0].mxu0
      %v872 = vadd.f32 0.0, %v871
      %v873 = vpop.f32.mrb[0].mxu0
      %v874 = vpop.f32.mrb[0].mxu0
      %v875 = vadd.f32 0.0, %v874
      %v876 = vpop.f32.mrb[0].mxu0
      %877 = vmatprep.mubr.bf16.mxu0 0
      %878 = vmatmul.mubr.bf16.gmra.mrb[0].mxu0 %v567
      %v879 = vpop.f32.mrb[0].mxu0
      %v880 = vadd.f32 0.0, %v879
      %v881 = vpop.f32.mrb[0].mxu0
      %v882 = vpop.f32.mrb[0].mxu0
      %v883 = vadd.f32 0.0, %v882
      %v884 = vpop.f32.mrb[0].mxu0
      %885 = vmatprep.mubr.bf16.mxu0 0
      %886 = vmatmul.mubr.bf16.gmra.mrb[0].mxu0 %v568
      %v887 = vpop.f32.mrb[0].mxu0
      %v888 = vadd.f32 0.0, %v887
      %v889 = vpop.f32.mrb[0].mxu0
      %v890 = vpop.f32.mrb[0].mxu0
      %v891 = vadd.f32 0.0, %v890
      %v892 = vpop.f32.mrb[0].mxu0
      %893 = vmatprep.mubr.bf16.mxu0 0
      %894 = vmatmul.mubr.bf16.gmra.mrb[0].mxu0 %v569
      %v895 = vpop.f32.mrb[0].mxu0
      %v896 = vadd.f32 0.0, %v895
      %v897 = vpop.f32.mrb[0].mxu0
      %v898 = vpop.f32.mrb[0].mxu0
      %v899 = vadd.f32 0.0, %v898
      %v900 = vpop.f32.mrb[0].mxu0
      %901 = vmatprep.mubr.bf16.mxu0 0
      %902 = vmatmul.mubr.bf16.gmra.mrb[0].mxu0 %v570
      %v903 = vpop.f32.mrb[0].mxu0
      %v904 = vadd.f32 0.0, %v903
      %v905 = vpop.f32.mrb[0].mxu0
      %v906 = vpop.f32.mrb[0].mxu0
      %v907 = vadd.f32 0.0, %v906
      %v908 = vpop.f32.mrb[0].mxu0
      %909 = vmatprep.mubr.bf16.mxu0 0
      %910 = vmatmul.mubr.bf16.gmra.mrb[0].mxu0 %v571
      %v911 = vpop.f32.mrb[0].mxu0
      %v912 = vadd.f32 0.0, %v911
      %v913 = vpop.f32.mrb[0].mxu0
      %v914 = vpop.f32.mrb[0].mxu0
      %v915 = vadd.f32 0.0, %v914
      %v916 = vpop.f32.mrb[0].mxu0
      %917 = vmatprep.mubr.bf16.mxu0 0
      %918 = vmatmul.mubr.bf16.gmra.mrb[0].mxu0 %v572
      %v919 = vpop.f32.mrb[0].mxu0
      %v920 = vadd.f32 0.0, %v919
      %v921 = vpop.f32.mrb[0].mxu0
      %v922 = vpop.f32.mrb[0].mxu0
      %v923 = vadd.f32 0.0, %v922
      %v924 = vpop.f32.mrb[0].mxu0
      %925 = vdwg.mxu0
      %v926 = vld [vmem:[%s2] sm:$0x1]
      %v928 = vlaneseq
      %v929 = vshrl.u32 %v928, 7
      %v930 = vsub.s32 0, %v929
      %v931 = vrot.slane %v926, %v930
      %v933 = vmul.f32 %v672, %v931
      %v934 = vmul.f32 %v675, %v931
      %v935 = vmul.f32 %v680, %v931
      %v936 = vmul.f32 %v683, %v931
      %v937 = vmul.f32 %v688, %v931
      %v938 = vmul.f32 %v691, %v931
      %v939 = vmul.f32 %v696, %v931
      %v940 = vmul.f32 %v699, %v931
      %v941 = vmul.f32 %v704, %v931
      %v942 = vmul.f32 %v707, %v931
      %v943 = vmul.f32 %v712, %v931
      %v944 = vmul.f32 %v715, %v931
      %v945 = vmul.f32 %v720, %v931
      %v946 = vmul.f32 %v723, %v931
      %v947 = vmul.f32 %v728, %v931
      %v948 = vmul.f32 %v731, %v931
      %v949 = vmul.f32 %v736, %v931
      %v950 = vmul.f32 %v739, %v931
      %v951 = vmul.f32 %v744, %v931
      %v952 = vmul.f32 %v747, %v931
      %v953 = vmul.f32 %v752, %v931
      %v954 = vmul.f32 %v755, %v931
      %v955 = vmul.f32 %v760, %v931
      %v956 = vmul.f32 %v763, %v931
      %v957 = vmul.f32 %v768, %v931
      %v958 = vmul.f32 %v771, %v931
      %v959 = vmul.f32 %v776, %v931
      %v960 = vmul.f32 %v779, %v931
      %v961 = vmul.f32 %v784, %v931
      %v962 = vmul.f32 %v787, %v931
      %v963 = vmul.f32 %v792, %v931
      %v964 = vmul.f32 %v795, %v931
      %v965 = vmul.f32 %v800, %v931
      %v966 = vmul.f32 %v803, %v931
      %v967 = vmul.f32 %v808, %v931
      %v968 = vmul.f32 %v811, %v931
      %v969 = vmul.f32 %v816, %v931
      %v970 = vmul.f32 %v819, %v931
      %v971 = vmul.f32 %v824, %v931
      %v972 = vmul.f32 %v827, %v931
      %v973 = vmul.f32 %v832, %v931
      %v974 = vmul.f32 %v835, %v931
      %v975 = vmul.f32 %v840, %v931
      %v976 = vmul.f32 %v843, %v931
      %v977 = vmul.f32 %v848, %v931
      %v978 = vmul.f32 %v851, %v931
      %v979 = vmul.f32 %v856, %v931
      %v980 = vmul.f32 %v859, %v931
      %v981 = vmul.f32 %v864, %v931
      %v982 = vmul.f32 %v867, %v931
      %v983 = vmul.f32 %v872, %v931
      %v984 = vmul.f32 %v875, %v931
      %v985 = vmul.f32 %v880, %v931
      %v986 = vmul.f32 %v883, %v931
      %v987 = vmul.f32 %v888, %v931
      %v988 = vmul.f32 %v891, %v931
      %v989 = vmul.f32 %v896, %v931
      %v990 = vmul.f32 %v899, %v931
      %v991 = vmul.f32 %v904, %v931
      %v992 = vmul.f32 %v907, %v931
      %v993 = vmul.f32 %v912, %v931
      %v994 = vmul.f32 %v915, %v931
      %v995 = vmul.f32 %v920, %v931
      %v996 = vmul.f32 %v923, %v931
      %v997 = vld [vmem:[%s3] sm:$0x1]
      %v999 = vlaneseq
      %v1000 = vshrl.u32 %v999, 7
      %v1001 = vsub.s32 0, %v1000
      %v1002 = vrot.slane %v997, %v1001
      %v1004 = vadd.f32 %v933, %v1002
      %v1005 = vadd.f32 %v934, %v1002
      %v1006 = vadd.f32 %v935, %v1002
      %v1007 = vadd.f32 %v936, %v1002
      %v1008 = vadd.f32 %v937, %v1002
      %v1009 = vadd.f32 %v938, %v1002
      %v1010 = vadd.f32 %v939, %v1002
      %v1011 = vadd.f32 %v940, %v1002
      %v1012 = vadd.f32 %v941, %v1002
      %v1013 = vadd.f32 %v942, %v1002
      %v1014 = vadd.f32 %v943, %v1002
      %v1015 = vadd.f32 %v944, %v1002
      %v1016 = vadd.f32 %v945, %v1002
      %v1017 = vadd.f32 %v946, %v1002
      %v1018 = vadd.f32 %v947, %v1002
      %v1019 = vadd.f32 %v948, %v1002
      %v1020 = vadd.f32 %v949, %v1002
      %v1021 = vadd.f32 %v950, %v1002
      %v1022 = vadd.f32 %v951, %v1002
      %v1023 = vadd.f32 %v952, %v1002
      %v1024 = vadd.f32 %v953, %v1002
      %v1025 = vadd.f32 %v954, %v1002
      %v1026 = vadd.f32 %v955, %v1002
      %v1027 = vadd.f32 %v956, %v1002
      %v1028 = vadd.f32 %v957, %v1002
      %v1029 = vadd.f32 %v958, %v1002
      %v1030 = vadd.f32 %v959, %v1002
      %v1031 = vadd.f32 %v960, %v1002
      %v1032 = vadd.f32 %v961, %v1002
      %v1033 = vadd.f32 %v962, %v1002
      %v1034 = vadd.f32 %v963, %v1002
      %v1035 = vadd.f32 %v964, %v1002
      %v1036 = vadd.f32 %v965, %v1002
      %v1037 = vadd.f32 %v966, %v1002
      %v1038 = vadd.f32 %v967, %v1002
      %v1039 = vadd.f32 %v968, %v1002
      %v1040 = vadd.f32 %v969, %v1002
      %v1041 = vadd.f32 %v970, %v1002
      %v1042 = vadd.f32 %v971, %v1002
      %v1043 = vadd.f32 %v972, %v1002
      %v1044 = vadd.f32 %v973, %v1002
      %v1045 = vadd.f32 %v974, %v1002
      %v1046 = vadd.f32 %v975, %v1002
      %v1047 = vadd.f32 %v976, %v1002
      %v1048 = vadd.f32 %v977, %v1002
      %v1049 = vadd.f32 %v978, %v1002
      %v1050 = vadd.f32 %v979, %v1002
      %v1051 = vadd.f32 %v980, %v1002
      %v1052 = vadd.f32 %v981, %v1002
      %v1053 = vadd.f32 %v982, %v1002
      %v1054 = vadd.f32 %v983, %v1002
      %v1055 = vadd.f32 %v984, %v1002
      %v1056 = vadd.f32 %v985, %v1002
      %v1057 = vadd.f32 %v986, %v1002
      %v1058 = vadd.f32 %v987, %v1002
      %v1059 = vadd.f32 %v988, %v1002
      %v1060 = vadd.f32 %v989, %v1002
      %v1061 = vadd.f32 %v990, %v1002
      %v1062 = vadd.f32 %v991, %v1002
      %v1063 = vadd.f32 %v992, %v1002
      %v1064 = vadd.f32 %v993, %v1002
      %v1065 = vadd.f32 %v994, %v1002
      %v1066 = vadd.f32 %v995, %v1002
      %v1067 = vadd.f32 %v996, %v1002
      %v1068 = vadd.f32 %v1004, 3.0
      %v1069 = vadd.f32 %v1005, 3.0
      %v1070 = vadd.f32 %v1006, 3.0
      %v1071 = vadd.f32 %v1007, 3.0
      %v1072 = vadd.f32 %v1008, 3.0
      %v1073 = vadd.f32 %v1009, 3.0
      %v1074 = vadd.f32 %v1010, 3.0
      %v1075 = vadd.f32 %v1011, 3.0
      %v1076 = vadd.f32 %v1012, 3.0
      %v1077 = vadd.f32 %v1013, 3.0
      %v1078 = vadd.f32 %v1014, 3.0
      %v1079 = vadd.f32 %v1015, 3.0
      %v1080 = vadd.f32 %v1016, 3.0
      %v1081 = vadd.f32 %v1017, 3.0
      %v1082 = vadd.f32 %v1018, 3.0
      %v1083 = vadd.f32 %v1019, 3.0
      %v1084 = vadd.f32 %v1020, 3.0
      %v1085 = vadd.f32 %v1021, 3.0
      %v1086 = vadd.f32 %v1022, 3.0
      %v1087 = vadd.f32 %v1023, 3.0
      %v1088 = vadd.f32 %v1024, 3.0
      %v1089 = vadd.f32 %v1025, 3.0
      %v1090 = vadd.f32 %v1026, 3.0
      %v1091 = vadd.f32 %v1027, 3.0
      %v1092 = vadd.f32 %v1028, 3.0
      %v1093 = vadd.f32 %v1029, 3.0
      %v1094 = vadd.f32 %v1030, 3.0
      %v1095 = vadd.f32 %v1031, 3.0
      %v1096 = vadd.f32 %v1032, 3.0
      %v1097 = vadd.f32 %v1033, 3.0
      %v1098 = vadd.f32 %v1034, 3.0
      %v1099 = vadd.f32 %v1035, 3.0
      %v1100 = vadd.f32 %v1036, 3.0
      %v1101 = vadd.f32 %v1037, 3.0
      %v1102 = vadd.f32 %v1038, 3.0
      %v1103 = vadd.f32 %v1039, 3.0
      %v1104 = vadd.f32 %v1040, 3.0
      %v1105 = vadd.f32 %v1041, 3.0
      %v1106 = vadd.f32 %v1042, 3.0
      %v1107 = vadd.f32 %v1043, 3.0
      %v1108 = vadd.f32 %v1044, 3.0
      %v1109 = vadd.f32 %v1045, 3.0
      %v1110 = vadd.f32 %v1046, 3.0
      %v1111 = vadd.f32 %v1047, 3.0
      %v1112 = vadd.f32 %v1048, 3.0
      %v1113 = vadd.f32 %v1049, 3.0
      %v1114 = vadd.f32 %v1050, 3.0
      %v1115 = vadd.f32 %v1051, 3.0
      %v1116 = vadd.f32 %v1052, 3.0
      %v1117 = vadd.f32 %v1053, 3.0
      %v1118 = vadd.f32 %v1054, 3.0
      %v1119 = vadd.f32 %v1055, 3.0
      %v1120 = vadd.f32 %v1056, 3.0
      %v1121 = vadd.f32 %v1057, 3.0
      %v1122 = vadd.f32 %v1058, 3.0
      %v1123 = vadd.f32 %v1059, 3.0
      %v1124 = vadd.f32 %v1060, 3.0
      %v1125 = vadd.f32 %v1061, 3.0
      %v1126 = vadd.f32 %v1062, 3.0
      %v1127 = vadd.f32 %v1063, 3.0
      %v1128 = vadd.f32 %v1064, 3.0
      %v1129 = vadd.f32 %v1065, 3.0
      %v1130 = vadd.f32 %v1066, 3.0
      %v1131 = vadd.f32 %v1067, 3.0
      %v1132 = vmax.f32 %v1068, 0.0
      %v1133 = vmax.f32 %v1069, 0.0
      %v1134 = vmax.f32 %v1070, 0.0
      %v1135 = vmax.f32 %v1071, 0.0
      %v1136 = vmax.f32 %v1072, 0.0
      %v1137 = vmax.f32 %v1073, 0.0
      %v1138 = vmax.f32 %v1074, 0.0
      %v1139 = vmax.f32 %v1075, 0.0
      %v1140 = vmax.f32 %v1076, 0.0
      %v1141 = vmax.f32 %v1077, 0.0
      %v1142 = vmax.f32 %v1078, 0.0
      %v1143 = vmax.f32 %v1079, 0.0
      %v1144 = vmax.f32 %v1080, 0.0
      %v1145 = vmax.f32 %v1081, 0.0
      %v1146 = vmax.f32 %v1082, 0.0
      %v1147 = vmax.f32 %v1083, 0.0
      %v1148 = vmax.f32 %v1084, 0.0
      %v1149 = vmax.f32 %v1085, 0.0
      %v1150 = vmax.f32 %v1086, 0.0
      %v1151 = vmax.f32 %v1087, 0.0
      %v1152 = vmax.f32 %v1088, 0.0
      %v1153 = vmax.f32 %v1089, 0.0
      %v1154 = vmax.f32 %v1090, 0.0
      %v1155 = vmax.f32 %v1091, 0.0
      %v1156 = vmax.f32 %v1092, 0.0
      %v1157 = vmax.f32 %v1093, 0.0
      %v1158 = vmax.f32 %v1094, 0.0
      %v1159 = vmax.f32 %v1095, 0.0
      %v1160 = vmax.f32 %v1096, 0.0
      %v1161 = vmax.f32 %v1097, 0.0
      %v1162 = vmax.f32 %v1098, 0.0
      %v1163 = vmax.f32 %v1099, 0.0
      %v1164 = vmax.f32 %v1100, 0.0
      %v1165 = vmax.f32 %v1101, 0.0
      %v1166 = vmax.f32 %v1102, 0.0
      %v1167 = vmax.f32 %v1103, 0.0
      %v1168 = vmax.f32 %v1104, 0.0
      %v1169 = vmax.f32 %v1105, 0.0
      %v1170 = vmax.f32 %v1106, 0.0
      %v1171 = vmax.f32 %v1107, 0.0
      %v1172 = vmax.f32 %v1108, 0.0
      %v1173 = vmax.f32 %v1109, 0.0
      %v1174 = vmax.f32 %v1110, 0.0
      %v1175 = vmax.f32 %v1111, 0.0
      %v1176 = vmax.f32 %v1112, 0.0
      %v1177 = vmax.f32 %v1113, 0.0
      %v1178 = vmax.f32 %v1114, 0.0
      %v1179 = vmax.f32 %v1115, 0.0
      %v1180 = vmax.f32 %v1116, 0.0
      %v1181 = vmax.f32 %v1117, 0.0
      %v1182 = vmax.f32 %v1118, 0.0
      %v1183 = vmax.f32 %v1119, 0.0
      %v1184 = vmax.f32 %v1120, 0.0
      %v1185 = vmax.f32 %v1121, 0.0
      %v1186 = vmax.f32 %v1122, 0.0
      %v1187 = vmax.f32 %v1123, 0.0
      %v1188 = vmax.f32 %v1124, 0.0
      %v1189 = vmax.f32 %v1125, 0.0
      %v1190 = vmax.f32 %v1126, 0.0
      %v1191 = vmax.f32 %v1127, 0.0
      %v1192 = vmax.f32 %v1128, 0.0
      %v1193 = vmax.f32 %v1129, 0.0
      %v1194 = vmax.f32 %v1130, 0.0
      %v1195 = vmax.f32 %v1131, 0.0
      %v1196 = vmin.f32 %v1132, 6.0
      %v1197 = vmin.f32 %v1133, 6.0
      %v1198 = vmin.f32 %v1134, 6.0
      %v1199 = vmin.f32 %v1135, 6.0
      %v1200 = vmin.f32 %v1136, 6.0
      %v1201 = vmin.f32 %v1137, 6.0
      %v1202 = vmin.f32 %v1138, 6.0
      %v1203 = vmin.f32 %v1139, 6.0
      %v1204 = vmin.f32 %v1140, 6.0
      %v1205 = vmin.f32 %v1141, 6.0
      %v1206 = vmin.f32 %v1142, 6.0
      %v1207 = vmin.f32 %v1143, 6.0
      %v1208 = vmin.f32 %v1144, 6.0
      %v1209 = vmin.f32 %v1145, 6.0
      %v1210 = vmin.f32 %v1146, 6.0
      %v1211 = vmin.f32 %v1147, 6.0
      %v1212 = vmin.f32 %v1148, 6.0
      %v1213 = vmin.f32 %v1149, 6.0
      %v1214 = vmin.f32 %v1150, 6.0
      %v1215 = vmin.f32 %v1151, 6.0
      %v1216 = vmin.f32 %v1152, 6.0
      %v1217 = vmin.f32 %v1153, 6.0
      %v1218 = vmin.f32 %v1154, 6.0
      %v1219 = vmin.f32 %v1155, 6.0
      %v1220 = vmin.f32 %v1156, 6.0
      %v1221 = vmin.f32 %v1157, 6.0
      %v1222 = vmin.f32 %v1158, 6.0
      %v1223 = vmin.f32 %v1159, 6.0
      %v1224 = vmin.f32 %v1160, 6.0
      %v1225 = vmin.f32 %v1161, 6.0
      %v1226 = vmin.f32 %v1162, 6.0
      %v1227 = vmin.f32 %v1163, 6.0
      %v1228 = vmin.f32 %v1164, 6.0
      %v1229 = vmin.f32 %v1165, 6.0
      %v1230 = vmin.f32 %v1166, 6.0
      %v1231 = vmin.f32 %v1167, 6.0
      %v1232 = vmin.f32 %v1168, 6.0
      %v1233 = vmin.f32 %v1169, 6.0
      %v1234 = vmin.f32 %v1170, 6.0
      %v1235 = vmin.f32 %v1171, 6.0
      %v1236 = vmin.f32 %v1172, 6.0
      %v1237 = vmin.f32 %v1173, 6.0
      %v1238 = vmin.f32 %v1174, 6.0
      %v1239 = vmin.f32 %v1175, 6.0
      %v1240 = vmin.f32 %v1176, 6.0
      %v1241 = vmin.f32 %v1177, 6.0
      %v1242 = vmin.f32 %v1178, 6.0
      %v1243 = vmin.f32 %v1179, 6.0
      %v1244 = vmin.f32 %v1180, 6.0
      %v1245 = vmin.f32 %v1181, 6.0
      %v1246 = vmin.f32 %v1182, 6.0
      %v1247 = vmin.f32 %v1183, 6.0
      %v1248 = vmin.f32 %v1184, 6.0
      %v1249 = vmin.f32 %v1185, 6.0
      %v1250 = vmin.f32 %v1186, 6.0
      %v1251 = vmin.f32 %v1187, 6.0
      %v1252 = vmin.f32 %v1188, 6.0
      %v1253 = vmin.f32 %v1189, 6.0
      %v1254 = vmin.f32 %v1190, 6.0
      %v1255 = vmin.f32 %v1191, 6.0
      %v1256 = vmin.f32 %v1192, 6.0
      %v1257 = vmin.f32 %v1193, 6.0
      %v1258 = vmin.f32 %v1194, 6.0
      %v1259 = vmin.f32 %v1195, 6.0
      %v1260 = vmul.f32 %v1196, 0.16666667
      %v1261 = vmul.f32 %v1197, 0.16666667
      %v1262 = vmul.f32 %v1198, 0.16666667
      %v1263 = vmul.f32 %v1199, 0.16666667
      %v1264 = vmul.f32 %v1200, 0.16666667
      %v1265 = vmul.f32 %v1201, 0.16666667
      %v1266 = vmul.f32 %v1202, 0.16666667
      %v1267 = vmul.f32 %v1203, 0.16666667
      %v1268 = vmul.f32 %v1204, 0.16666667
      %v1269 = vmul.f32 %v1205, 0.16666667
      %v1270 = vmul.f32 %v1206, 0.16666667
      %v1271 = vmul.f32 %v1207, 0.16666667
      %v1272 = vmul.f32 %v1208, 0.16666667
      %v1273 = vmul.f32 %v1209, 0.16666667
      %v1274 = vmul.f32 %v1210, 0.16666667
      %v1275 = vmul.f32 %v1211, 0.16666667
      %v1276 = vmul.f32 %v1212, 0.16666667
      %v1277 = vmul.f32 %v1213, 0.16666667
      %v1278 = vmul.f32 %v1214, 0.16666667
      %v1279 = vmul.f32 %v1215, 0.16666667
      %v1280 = vmul.f32 %v1216, 0.16666667
      %v1281 = vmul.f32 %v1217, 0.16666667
      %v1282 = vmul.f32 %v1218, 0.16666667
      %v1283 = vmul.f32 %v1219, 0.16666667
      %v1284 = vmul.f32 %v1220, 0.16666667
      %v1285 = vmul.f32 %v1221, 0.16666667
      %v1286 = vmul.f32 %v1222, 0.16666667
      %v1287 = vmul.f32 %v1223, 0.16666667
      %v1288 = vmul.f32 %v1224, 0.16666667
      %v1289 = vmul.f32 %v1225, 0.16666667
      %v1290 = vmul.f32 %v1226, 0.16666667
      %v1291 = vmul.f32 %v1227, 0.16666667
      %v1292 = vmul.f32 %v1228, 0.16666667
      %v1293 = vmul.f32 %v1229, 0.16666667
      %v1294 = vmul.f32 %v1230, 0.16666667
      %v1295 = vmul.f32 %v1231, 0.16666667
      %v1296 = vmul.f32 %v1232, 0.16666667
      %v1297 = vmul.f32 %v1233, 0.16666667
      %v1298 = vmul.f32 %v1234, 0.16666667
      %v1299 = vmul.f32 %v1235, 0.16666667
      %v1300 = vmul.f32 %v1236, 0.16666667
      %v1301 = vmul.f32 %v1237, 0.16666667
      %v1302 = vmul.f32 %v1238, 0.16666667
      %v1303 = vmul.f32 %v1239, 0.16666667
      %v1304 = vmul.f32 %v1240, 0.16666667
      %v1305 = vmul.f32 %v1241, 0.16666667
      %v1306 = vmul.f32 %v1242, 0.16666667
      %v1307 = vmul.f32 %v1243, 0.16666667
      %v1308 = vmul.f32 %v1244, 0.16666667
      %v1309 = vmul.f32 %v1245, 0.16666667
      %v1310 = vmul.f32 %v1246, 0.16666667
      %v1311 = vmul.f32 %v1247, 0.16666667
      %v1312 = vmul.f32 %v1248, 0.16666667
      %v1313 = vmul.f32 %v1249, 0.16666667
      %v1314 = vmul.f32 %v1250, 0.16666667
      %v1315 = vmul.f32 %v1251, 0.16666667
      %v1316 = vmul.f32 %v1252, 0.16666667
      %v1317 = vmul.f32 %v1253, 0.16666667
      %v1318 = vmul.f32 %v1254, 0.16666667
      %v1319 = vmul.f32 %v1255, 0.16666667
      %v1320 = vmul.f32 %v1256, 0.16666667
      %v1321 = vmul.f32 %v1257, 0.16666667
      %v1322 = vmul.f32 %v1258, 0.16666667
      %v1323 = vmul.f32 %v1259, 0.16666667
      %v1324 = vmul.f32 %v1260, %v1004
      %v1325 = vmul.f32 %v1261, %v1005
      %v1326 = vmul.f32 %v1262, %v1006
      %v1327 = vmul.f32 %v1263, %v1007
      %v1328 = vmul.f32 %v1264, %v1008
      %v1329 = vmul.f32 %v1265, %v1009
      %v1330 = vmul.f32 %v1266, %v1010
      %v1331 = vmul.f32 %v1267, %v1011
      %v1332 = vmul.f32 %v1268, %v1012
      %v1333 = vmul.f32 %v1269, %v1013
      %v1334 = vmul.f32 %v1270, %v1014
      %v1335 = vmul.f32 %v1271, %v1015
      %v1336 = vmul.f32 %v1272, %v1016
      %v1337 = vmul.f32 %v1273, %v1017
      %v1338 = vmul.f32 %v1274, %v1018
      %v1339 = vmul.f32 %v1275, %v1019
      %v1340 = vmul.f32 %v1276, %v1020
      %v1341 = vmul.f32 %v1277, %v1021
      %v1342 = vmul.f32 %v1278, %v1022
      %v1343 = vmul.f32 %v1279, %v1023
      %v1344 = vmul.f32 %v1280, %v1024
      %v1345 = vmul.f32 %v1281, %v1025
      %v1346 = vmul.f32 %v1282, %v1026
      %v1347 = vmul.f32 %v1283, %v1027
      %v1348 = vmul.f32 %v1284, %v1028
      %v1349 = vmul.f32 %v1285, %v1029
      %v1350 = vmul.f32 %v1286, %v1030
      %v1351 = vmul.f32 %v1287, %v1031
      %v1352 = vmul.f32 %v1288, %v1032
      %v1353 = vmul.f32 %v1289, %v1033
      %v1354 = vmul.f32 %v1290, %v1034
      %v1355 = vmul.f32 %v1291, %v1035
      %v1356 = vmul.f32 %v1292, %v1036
      %v1357 = vmul.f32 %v1293, %v1037
      %v1358 = vmul.f32 %v1294, %v1038
      %v1359 = vmul.f32 %v1295, %v1039
      %v1360 = vmul.f32 %v1296, %v1040
      %v1361 = vmul.f32 %v1297, %v1041
      %v1362 = vmul.f32 %v1298, %v1042
      %v1363 = vmul.f32 %v1299, %v1043
      %v1364 = vmul.f32 %v1300, %v1044
      %v1365 = vmul.f32 %v1301, %v1045
      %v1366 = vmul.f32 %v1302, %v1046
      %v1367 = vmul.f32 %v1303, %v1047
      %v1368 = vmul.f32 %v1304, %v1048
      %v1369 = vmul.f32 %v1305, %v1049
      %v1370 = vmul.f32 %v1306, %v1050
      %v1371 = vmul.f32 %v1307, %v1051
      %v1372 = vmul.f32 %v1308, %v1052
      %v1373 = vmul.f32 %v1309, %v1053
      %v1374 = vmul.f32 %v1310, %v1054
      %v1375 = vmul.f32 %v1311, %v1055
      %v1376 = vmul.f32 %v1312, %v1056
      %v1377 = vmul.f32 %v1313, %v1057
      %v1378 = vmul.f32 %v1314, %v1058
      %v1379 = vmul.f32 %v1315, %v1059
      %v1380 = vmul.f32 %v1316, %v1060
      %v1381 = vmul.f32 %v1317, %v1061
      %v1382 = vmul.f32 %v1318, %v1062
      %v1383 = vmul.f32 %v1319, %v1063
      %v1384 = vmul.f32 %v1320, %v1064
      %v1385 = vmul.f32 %v1321, %v1065
      %v1386 = vmul.f32 %v1322, %v1066
      %v1387 = vmul.f32 %v1323, %v1067
      %vm1388 = vcmask 523264
      %1389 = vst.msk [vmem:[#allocation2] sm:$0xff] %vm1388, 0.0
      %1390 = vst.msk [vmem:[#allocation2 + $0x8] sm:$0xff] %vm1388, 0.0
      %vm1391 = vcmask 517120
      %1392 = vst.msk [vmem:[#allocation2 + $0x10] sm:$0x3] %vm1391, 0.0
      %1393 = vst.msk [vmem:[#allocation2 + $0x1b0] sm:$0xff] %vm1388, 0.0
      %1394 = vst.msk [vmem:[#allocation2 + $0x1b8] sm:$0xff] %vm1388, 0.0
      %1395 = vst.msk [vmem:[#allocation2 + $0x1c0] sm:$0x3] %vm1391, 0.0
      %s1396 = scalar_lea.vmem [#allocation2], 408
      %1397 = vst.msk [vmem:[%s1396] sm:$0xff] %vm1388, 0.0
      %1398 = vst.msk [vmem:[%s1396 + $0x8] sm:$0xff] %vm1388, 0.0
      %1399 = vst.msk [vmem:[%s1396 + $0x10] sm:$0x3] %vm1391, 0.0
      %1400 = vst.msk [vmem:[%s1396 + $0x1b0] sm:$0xff] %vm1388, 0.0
      %1401 = vst.msk [vmem:[%s1396 + $0x1b8] sm:$0xff] %vm1388, 0.0
      %1402 = vst.msk [vmem:[%s1396 + $0x1c0] sm:$0x3] %vm1391, 0.0
      %s1403 = scalar_lea.vmem [#allocation2], 24
      %vm1404 = vcmask 516096
      %1405 = vst.msk [vmem:[%s1403] sm:$0x1] %vm1404, 0.0
      %1406 = vst.msk [vmem:[%s1403 + $0x18] sm:$0x1] %vm1404, 0.0
      %1407 = vst.msk [vmem:[%s1403 + $0x30] sm:$0x1] %vm1404, 0.0
      %1408 = vst.msk [vmem:[%s1403 + $0x48] sm:$0x1] %vm1404, 0.0
      %1409 = vst.msk [vmem:[%s1403 + $0x60] sm:$0x1] %vm1404, 0.0
      %1410 = vst.msk [vmem:[%s1403 + $0x78] sm:$0x1] %vm1404, 0.0
      %1411 = vst.msk [vmem:[%s1403 + $0x90] sm:$0x1] %vm1404, 0.0
      %1412 = vst.msk [vmem:[%s1403 + $0xa8] sm:$0x1] %vm1404, 0.0
      %1413 = vst.msk [vmem:[%s1403 + $0xc0] sm:$0x1] %vm1404, 0.0
      %1414 = vst.msk [vmem:[%s1403 + $0xd8] sm:$0x1] %vm1404, 0.0
      %1415 = vst.msk [vmem:[%s1403 + $0xf0] sm:$0x1] %vm1404, 0.0
      %1416 = vst.msk [vmem:[%s1403 + $0x108] sm:$0x1] %vm1404, 0.0
      %1417 = vst.msk [vmem:[%s1403 + $0x120] sm:$0x1] %vm1404, 0.0
      %1418 = vst.msk [vmem:[%s1403 + $0x138] sm:$0x1] %vm1404, 0.0
      %1419 = vst.msk [vmem:[%s1403 + $0x150] sm:$0x1] %vm1404, 0.0
      %1420 = vst.msk [vmem:[%s1403 + $0x168] sm:$0x1] %vm1404, 0.0
      %1421 = vst.msk [vmem:[%s1403 + $0x1b0] sm:$0x1] %vm1404, 0.0
      %1422 = vst.msk [vmem:[%s1403 + $0x1c8] sm:$0x1] %vm1404, 0.0
      %1423 = vst.msk [vmem:[%s1403 + $0x1e0] sm:$0x1] %vm1404, 0.0
      %1424 = vst.msk [vmem:[%s1403 + $0x1f8] sm:$0x1] %vm1404, 0.0
      %1425 = vst.msk [vmem:[%s1403 + $0x210] sm:$0x1] %vm1404, 0.0
      %1426 = vst.msk [vmem:[%s1403 + $0x228] sm:$0x1] %vm1404, 0.0
      %1427 = vst.msk [vmem:[%s1403 + $0x240] sm:$0x1] %vm1404, 0.0
      %1428 = vst.msk [vmem:[%s1403 + $0x258] sm:$0x1] %vm1404, 0.0
      %1429 = vst.msk [vmem:[%s1403 + $0x270] sm:$0x1] %vm1404, 0.0
      %1430 = vst.msk [vmem:[%s1403 + $0x288] sm:$0x1] %vm1404, 0.0
      %1431 = vst.msk [vmem:[%s1403 + $0x2a0] sm:$0x1] %vm1404, 0.0
      %1432 = vst.msk [vmem:[%s1403 + $0x2b8] sm:$0x1] %vm1404, 0.0
      %1433 = vst.msk [vmem:[%s1403 + $0x2d0] sm:$0x1] %vm1404, 0.0
      %1434 = vst.msk [vmem:[%s1403 + $0x2e8] sm:$0x1] %vm1404, 0.0
      %1435 = vst.msk [vmem:[%s1403 + $0x300] sm:$0x1] %vm1404, 0.0
      %1436 = vst.msk [vmem:[%s1403 + $0x318] sm:$0x1] %vm1404, 0.0
      %1437 = vst.msk [vmem:[%s1403 + $0x11] sm:$0x1] %vm1404, 0.0
      %1438 = vst.msk [vmem:[%s1403 + $0x29] sm:$0x1] %vm1404, 0.0
      %1439 = vst.msk [vmem:[%s1403 + $0x41] sm:$0x1] %vm1404, 0.0
      %1440 = vst.msk [vmem:[%s1403 + $0x59] sm:$0x1] %vm1404, 0.0
      %1441 = vst.msk [vmem:[%s1403 + $0x71] sm:$0x1] %vm1404, 0.0
      %1442 = vst.msk [vmem:[%s1403 + $0x89] sm:$0x1] %vm1404, 0.0
      %1443 = vst.msk [vmem:[%s1403 + $0xa1] sm:$0x1] %vm1404, 0.0
      %1444 = vst.msk [vmem:[%s1403 + $0xb9] sm:$0x1] %vm1404, 0.0
      %1445 = vst.msk [vmem:[%s1403 + $0xd1] sm:$0x1] %vm1404, 0.0
      %1446 = vst.msk [vmem:[%s1403 + $0xe9] sm:$0x1] %vm1404, 0.0
      %1447 = vst.msk [vmem:[%s1403 + $0x101] sm:$0x1] %vm1404, 0.0
      %1448 = vst.msk [vmem:[%s1403 + $0x119] sm:$0x1] %vm1404, 0.0
      %1449 = vst.msk [vmem:[%s1403 + $0x131] sm:$0x1] %vm1404, 0.0
      %1450 = vst.msk [vmem:[%s1403 + $0x149] sm:$0x1] %vm1404, 0.0
      %1451 = vst.msk [vmem:[%s1403 + $0x161] sm:$0x1] %vm1404, 0.0
      %1452 = vst.msk [vmem:[%s1403 + $0x179] sm:$0x1] %vm1404, 0.0
      %1453 = vst.msk [vmem:[%s1403 + $0x1c1] sm:$0x1] %vm1404, 0.0
      %1454 = vst.msk [vmem:[%s1403 + $0x1d9] sm:$0x1] %vm1404, 0.0
      %1455 = vst.msk [vmem:[%s1403 + $0x1f1] sm:$0x1] %vm1404, 0.0
      %1456 = vst.msk [vmem:[%s1403 + $0x209] sm:$0x1] %vm1404, 0.0
      %1457 = vst.msk [vmem:[%s1403 + $0x221] sm:$0x1] %vm1404, 0.0
      %1458 = vst.msk [vmem:[%s1403 + $0x239] sm:$0x1] %vm1404, 0.0
      %1459 = vst.msk [vmem:[%s1403 + $0x251] sm:$0x1] %vm1404, 0.0
      %1460 = vst.msk [vmem:[%s1403 + $0x269] sm:$0x1] %vm1404, 0.0
      %1461 = vst.msk [vmem:[%s1403 + $0x281] sm:$0x1] %vm1404, 0.0
      %1462 = vst.msk [vmem:[%s1403 + $0x299] sm:$0x1] %vm1404, 0.0
      %1463 = vst.msk [vmem:[%s1403 + $0x2b1] sm:$0x1] %vm1404, 0.0
      %1464 = vst.msk [vmem:[%s1403 + $0x2c9] sm:$0x1] %vm1404, 0.0
      %1465 = vst.msk [vmem:[%s1403 + $0x2e1] sm:$0x1] %vm1404, 0.0
      %1466 = vst.msk [vmem:[%s1403 + $0x2f9] sm:$0x1] %vm1404, 0.0
      %1467 = vst.msk [vmem:[%s1403 + $0x311] sm:$0x1] %vm1404, 0.0
      %1468 = vst.msk [vmem:[%s1403 + $0x329] sm:$0x1] %vm1404, 0.0
      %1469 = vst.msk [vmem:[%s1403 + $0x1] sm:$0xff] %vm1388, %v1324
      %1470 = vst.msk [vmem:[%s1403 + $0x9] sm:$0xff] %vm1388, %v1325
      %1471 = vst.msk [vmem:[%s1403 + $0x19] sm:$0xff] %vm1388, %v1326
      %1472 = vst.msk [vmem:[%s1403 + $0x21] sm:$0xff] %vm1388, %v1327
      %1473 = vst.msk [vmem:[%s1403 + $0x31] sm:$0xff] %vm1388, %v1328
      %1474 = vst.msk [vmem:[%s1403 + $0x39] sm:$0xff] %vm1388, %v1329
      %1475 = vst.msk [vmem:[%s1403 + $0x49] sm:$0xff] %vm1388, %v1330
      %1476 = vst.msk [vmem:[%s1403 + $0x51] sm:$0xff] %vm1388, %v1331
      %1477 = vst.msk [vmem:[%s1403 + $0x61] sm:$0xff] %vm1388, %v1332
      %1478 = vst.msk [vmem:[%s1403 + $0x69] sm:$0xff] %vm1388, %v1333
      %1479 = vst.msk [vmem:[%s1403 + $0x79] sm:$0xff] %vm1388, %v1334
      %1480 = vst.msk [vmem:[%s1403 + $0x81] sm:$0xff] %vm1388, %v1335
      %1481 = vst.msk [vmem:[%s1403 + $0x91] sm:$0xff] %vm1388, %v1336
      %1482 = vst.msk [vmem:[%s1403 + $0x99] sm:$0xff] %vm1388, %v1337
      %1483 = vst.msk [vmem:[%s1403 + $0xa9] sm:$0xff] %vm1388, %v1338
      %1484 = vst.msk [vmem:[%s1403 + $0xb1] sm:$0xff] %vm1388, %v1339
      %1485 = vst.msk [vmem:[%s1403 + $0xc1] sm:$0xff] %vm1388, %v1340
      %1486 = vst.msk [vmem:[%s1403 + $0xc9] sm:$0xff] %vm1388, %v1341
      %1487 = vst.msk [vmem:[%s1403 + $0xd9] sm:$0xff] %vm1388, %v1342
      %1488 = vst.msk [vmem:[%s1403 + $0xe1] sm:$0xff] %vm1388, %v1343
      %1489 = vst.msk [vmem:[%s1403 + $0xf1] sm:$0xff] %vm1388, %v1344
      %1490 = vst.msk [vmem:[%s1403 + $0xf9] sm:$0xff] %vm1388, %v1345
      %1491 = vst.msk [vmem:[%s1403 + $0x109] sm:$0xff] %vm1388, %v1346
      %1492 = vst.msk [vmem:[%s1403 + $0x111] sm:$0xff] %vm1388, %v1347
      %1493 = vst.msk [vmem:[%s1403 + $0x121] sm:$0xff] %vm1388, %v1348
      %1494 = vst.msk [vmem:[%s1403 + $0x129] sm:$0xff] %vm1388, %v1349
      %1495 = vst.msk [vmem:[%s1403 + $0x139] sm:$0xff] %vm1388, %v1350
      %1496 = vst.msk [vmem:[%s1403 + $0x141] sm:$0xff] %vm1388, %v1351
      %1497 = vst.msk [vmem:[%s1403 + $0x151] sm:$0xff] %vm1388, %v1352
      %1498 = vst.msk [vmem:[%s1403 + $0x159] sm:$0xff] %vm1388, %v1353
      %1499 = vst.msk [vmem:[%s1403 + $0x169] sm:$0xff] %vm1388, %v1354
      %1500 = vst.msk [vmem:[%s1403 + $0x171] sm:$0xff] %vm1388, %v1355
      %1501 = vst.msk [vmem:[%s1403 + $0x1b1] sm:$0xff] %vm1388, %v1356
      %1502 = vst.msk [vmem:[%s1403 + $0x1b9] sm:$0xff] %vm1388, %v1357
      %1503 = vst.msk [vmem:[%s1403 + $0x1c9] sm:$0xff] %vm1388, %v1358
      %1504 = vst.msk [vmem:[%s1403 + $0x1d1] sm:$0xff] %vm1388, %v1359
      %1505 = vst.msk [vmem:[%s1403 + $0x1e1] sm:$0xff] %vm1388, %v1360
      %1506 = vst.msk [vmem:[%s1403 + $0x1e9] sm:$0xff] %vm1388, %v1361
      %1507 = vst.msk [vmem:[%s1403 + $0x1f9] sm:$0xff] %vm1388, %v1362
      %1508 = vst.msk [vmem:[%s1403 + $0x201] sm:$0xff] %vm1388, %v1363
      %1509 = vst.msk [vmem:[%s1403 + $0x211] sm:$0xff] %vm1388, %v1364
      %1510 = vst.msk [vmem:[%s1403 + $0x219] sm:$0xff] %vm1388, %v1365
      %1511 = vst.msk [vmem:[%s1403 + $0x229] sm:$0xff] %vm1388, %v1366
      %1512 = vst.msk [vmem:[%s1403 + $0x231] sm:$0xff] %vm1388, %v1367
      %1513 = vst.msk [vmem:[%s1403 + $0x241] sm:$0xff] %vm1388, %v1368
      %1514 = vst.msk [vmem:[%s1403 + $0x249] sm:$0xff] %vm1388, %v1369
      %1515 = vst.msk [vmem:[%s1403 + $0x259] sm:$0xff] %vm1388, %v1370
      %1516 = vst.msk [vmem:[%s1403 + $0x261] sm:$0xff] %vm1388, %v1371
      %1517 = vst.msk [vmem:[%s1403 + $0x271] sm:$0xff] %vm1388, %v1372
      %1518 = vst.msk [vmem:[%s1403 + $0x279] sm:$0xff] %vm1388, %v1373
      %1519 = vst.msk [vmem:[%s1403 + $0x289] sm:$0xff] %vm1388, %v1374
      %1520 = vst.msk [vmem:[%s1403 + $0x291] sm:$0xff] %vm1388, %v1375
      %1521 = vst.msk [vmem:[%s1403 + $0x2a1] sm:$0xff] %vm1388, %v1376
      %1522 = vst.msk [vmem:[%s1403 + $0x2a9] sm:$0xff] %vm1388, %v1377
      %1523 = vst.msk [vmem:[%s1403 + $0x2b9] sm:$0xff] %vm1388, %v1378
      %1524 = vst.msk [vmem:[%s1403 + $0x2c1] sm:$0xff] %vm1388, %v1379
      %1525 = vst.msk [vmem:[%s1403 + $0x2d1] sm:$0xff] %vm1388, %v1380
      %1526 = vst.msk [vmem:[%s1403 + $0x2d9] sm:$0xff] %vm1388, %v1381
      %1527 = vst.msk [vmem:[%s1403 + $0x2e9] sm:$0xff] %vm1388, %v1382
      %1528 = vst.msk [vmem:[%s1403 + $0x2f1] sm:$0xff] %vm1388, %v1383
      %1529 = vst.msk [vmem:[%s1403 + $0x301] sm:$0xff] %vm1388, %v1384
      %1530 = vst.msk [vmem:[%s1403 + $0x309] sm:$0xff] %vm1388, %v1385
      %1531 = vst.msk [vmem:[%s1403 + $0x319] sm:$0xff] %vm1388, %v1386
      %1532 = vst.msk [vmem:[%s1403 + $0x321] sm:$0xff] %vm1388, %v1387
      %v1533 = vld [vmem:[%s4] sm:$0xff]
      %v1534 = vld [vmem:[%s4 + $0x8] sm:$0x1]
      %v1535 = vld [vmem:[#allocation2] sm:$0xff]
      %v1536 = vld [vmem:[#allocation2 + $0x8] sm:$0xff]
      %v1537 = vld [vmem:[#allocation2 + $0x18] sm:$0xff]
      %v1538 = vld [vmem:[#allocation2 + $0x20] sm:$0xff]
      %v1539 = vld [vmem:[#allocation2 + $0x30] sm:$0xff]
      %v1540 = vld [vmem:[#allocation2 + $0x38] sm:$0xff]
      %v1541 = vld [vmem:[#allocation2 + $0x48] sm:$0xff]
      %v1542 = vld [vmem:[#allocation2 + $0x50] sm:$0xff]
      %v1543 = vld [vmem:[#allocation2 + $0x60] sm:$0xff]
      %v1544 = vld [vmem:[#allocation2 + $0x68] sm:$0xff]
      %v1545 = vld [vmem:[#allocation2 + $0x78] sm:$0xff]
      %v1546 = vld [vmem:[#allocation2 + $0x80] sm:$0xff]
      %v1547 = vld [vmem:[#allocation2 + $0x90] sm:$0xff]
      %v1548 = vld [vmem:[#allocation2 + $0x98] sm:$0xff]
      %v1549 = vld [vmem:[#allocation2 + $0xa8] sm:$0xff]
      %v1550 = vld [vmem:[#allocation2 + $0xb0] sm:$0xff]
      %v1551 = vld [vmem:[#allocation2 + $0xc0] sm:$0xff]
      %v1552 = vld [vmem:[#allocation2 + $0xc8] sm:$0xff]
      %v1553 = vld [vmem:[#allocation2 + $0xd8] sm:$0xff]
      %v1554 = vld [vmem:[#allocation2 + $0xe0] sm:$0xff]
      %v1555 = vld [vmem:[#allocation2 + $0xf0] sm:$0xff]
      %v1556 = vld [vmem:[#allocation2 + $0xf8] sm:$0xff]
      %v1557 = vld [vmem:[#allocation2 + $0x108] sm:$0xff]
      %v1558 = vld [vmem:[#allocation2 + $0x110] sm:$0xff]
      %v1559 = vld [vmem:[#allocation2 + $0x120] sm:$0xff]
      %v1560 = vld [vmem:[#allocation2 + $0x128] sm:$0xff]
      %v1561 = vld [vmem:[#allocation2 + $0x138] sm:$0xff]
      %v1562 = vld [vmem:[#allocation2 + $0x140] sm:$0xff]
      %v1563 = vld [vmem:[#allocation2 + $0x150] sm:$0xff]
      %v1564 = vld [vmem:[#allocation2 + $0x158] sm:$0xff]
      %v1565 = vld [vmem:[#allocation2 + $0x168] sm:$0xff]
      %v1566 = vld [vmem:[#allocation2 + $0x170] sm:$0xff]
      %v1567 = vld [vmem:[#allocation2 + $0x1b0] sm:$0xff]
      %v1568 = vld [vmem:[#allocation2 + $0x1b8] sm:$0xff]
      %v1569 = vld [vmem:[#allocation2 + $0x1c8] sm:$0xff]
      %v1570 = vld [vmem:[#allocation2 + $0x1d0] sm:$0xff]
      %v1571 = vld [vmem:[#allocation2 + $0x1e0] sm:$0xff]
      %v1572 = vld [vmem:[#allocation2 + $0x1e8] sm:$0xff]
      %v1573 = vld [vmem:[#allocation2 + $0x1f8] sm:$0xff]
      %v1574 = vld [vmem:[#allocation2 + $0x200] sm:$0xff]
      %v1575 = vld [vmem:[#allocation2 + $0x210] sm:$0xff]
      %v1576 = vld [vmem:[#allocation2 + $0x218] sm:$0xff]
      %v1577 = vld [vmem:[#allocation2 + $0x228] sm:$0xff]
      %v1578 = vld [vmem:[#allocation2 + $0x230] sm:$0xff]
      %v1579 = vld [vmem:[#allocation2 + $0x240] sm:$0xff]
      %v1580 = vld [vmem:[#allocation2 + $0x248] sm:$0xff]
      %v1581 = vld [vmem:[#allocation2 + $0x258] sm:$0xff]
      %v1582 = vld [vmem:[#allocation2 + $0x260] sm:$0xff]
      %v1583 = vld [vmem:[#allocation2 + $0x270] sm:$0xff]
      %v1584 = vld [vmem:[#allocation2 + $0x278] sm:$0xff]
      %v1585 = vld [vmem:[#allocation2 + $0x288] sm:$0xff]
      %v1586 = vld [vmem:[#allocation2 + $0x290] sm:$0xff]
      %v1587 = vld [vmem:[#allocation2 + $0x2a0] sm:$0xff]
      %v1588 = vld [vmem:[#allocation2 + $0x2a8] sm:$0xff]
      %v1589 = vld [vmem:[#allocation2 + $0x2b8] sm:$0xff]
      %v1590 = vld [vmem:[#allocation2 + $0x2c0] sm:$0xff]
      %v1591 = vld [vmem:[#allocation2 + $0x2d0] sm:$0xff]
      %v1592 = vld [vmem:[#allocation2 + $0x2d8] sm:$0xff]
      %v1593 = vld [vmem:[#allocation2 + $0x2e8] sm:$0xff]
      %v1594 = vld [vmem:[#allocation2 + $0x2f0] sm:$0xff]
      %v1595 = vld [vmem:[#allocation2 + $0x300] sm:$0xff]
      %v1596 = vld [vmem:[#allocation2 + $0x308] sm:$0xff]
      %v1597 = vld [vmem:[#allocation2 + $0x318] sm:$0xff]
      %v1598 = vld [vmem:[#allocation2 + $0x320] sm:$0xff]
      %v1599 = vlaneseq
      %v1600 = vshrl.u32 %v1599, 7
      %v1601 = vsub.s32 0, %v1600
      %v1602 = vrot.slane %v1533, %v1601
      %v1603 = vmul.f32 %v1535, %v1602
      %v1604 = vmul.f32 %v1536, %v1602
      %v1605 = vmul.f32 %v1537, %v1602
      %v1606 = vmul.f32 %v1538, %v1602
      %v1607 = vmul.f32 %v1539, %v1602
      %v1608 = vmul.f32 %v1540, %v1602
      %v1609 = vmul.f32 %v1541, %v1602
      %v1610 = vmul.f32 %v1542, %v1602
      %v1611 = vmul.f32 %v1543, %v1602
      %v1612 = vmul.f32 %v1544, %v1602
      %v1613 = vmul.f32 %v1545, %v1602
      %v1614 = vmul.f32 %v1546, %v1602
      %v1615 = vmul.f32 %v1547, %v1602
      %v1616 = vmul.f32 %v1548, %v1602
      %v1617 = vmul.f32 %v1549, %v1602
      %v1618 = vmul.f32 %v1550, %v1602
      %v1619 = vmul.f32 %v1551, %v1602
      %v1620 = vmul.f32 %v1552, %v1602
      %v1621 = vmul.f32 %v1553, %v1602
      %v1622 = vmul.f32 %v1554, %v1602
      %v1623 = vmul.f32 %v1555, %v1602
      %v1624 = vmul.f32 %v1556, %v1602
      %v1625 = vmul.f32 %v1557, %v1602
      %v1626 = vmul.f32 %v1558, %v1602
      %v1627 = vmul.f32 %v1559, %v1602
      %v1628 = vmul.f32 %v1560, %v1602
      %v1629 = vmul.f32 %v1561, %v1602
      %v1630 = vmul.f32 %v1562, %v1602
      %v1631 = vmul.f32 %v1563, %v1602
      %v1632 = vmul.f32 %v1564, %v1602
      %v1633 = vmul.f32 %v1565, %v1602
      %v1634 = vmul.f32 %v1566, %v1602
      %v1635 = vmul.f32 %v1567, %v1602
      %v1636 = vmul.f32 %v1568, %v1602
      %v1637 = vmul.f32 %v1569, %v1602
      %v1638 = vmul.f32 %v1570, %v1602
      %v1639 = vmul.f32 %v1571, %v1602
      %v1640 = vmul.f32 %v1572, %v1602
      %v1641 = vmul.f32 %v1573, %v1602
      %v1642 = vmul.f32 %v1574, %v1602
      %v1643 = vmul.f32 %v1575, %v1602
      %v1644 = vmul.f32 %v1576, %v1602
      %v1645 = vmul.f32 %v1577, %v1602
      %v1646 = vmul.f32 %v1578, %v1602
      %v1647 = vmul.f32 %v1579, %v1602
      %v1648 = vmul.f32 %v1580, %v1602
      %v1649 = vmul.f32 %v1581, %v1602
      %v1650 = vmul.f32 %v1582, %v1602
      %v1651 = vmul.f32 %v1583, %v1602
      %v1652 = vmul.f32 %v1584, %v1602
      %v1653 = vmul.f32 %v1585, %v1602
      %v1654 = vmul.f32 %v1586, %v1602
      %v1655 = vmul.f32 %v1587, %v1602
      %v1656 = vmul.f32 %v1588, %v1602
      %v1657 = vmul.f32 %v1589, %v1602
      %v1658 = vmul.f32 %v1590, %v1602
      %v1659 = vmul.f32 %v1591, %v1602
      %v1660 = vmul.f32 %v1592, %v1602
      %v1661 = vmul.f32 %v1593, %v1602
      %v1662 = vmul.f32 %v1594, %v1602
      %v1663 = vmul.f32 %v1595, %v1602
      %v1664 = vmul.f32 %v1596, %v1602
      %v1665 = vmul.f32 %v1597, %v1602
      %v1666 = vmul.f32 %v1598, %v1602
      %v1667 = vadd.f32 %v1603, 0.0
      %v1668 = vadd.f32 %v1604, 0.0
      %v1669 = vadd.f32 %v1605, 0.0
      %v1670 = vadd.f32 %v1606, 0.0
      %v1671 = vadd.f32 %v1607, 0.0
      %v1672 = vadd.f32 %v1608, 0.0
      %v1673 = vadd.f32 %v1609, 0.0
      %v1674 = vadd.f32 %v1610, 0.0
      %v1675 = vadd.f32 %v1611, 0.0
      %v1676 = vadd.f32 %v1612, 0.0
      %v1677 = vadd.f32 %v1613, 0.0
      %v1678 = vadd.f32 %v1614, 0.0
      %v1679 = vadd.f32 %v1615, 0.0
      %v1680 = vadd.f32 %v1616, 0.0
      %v1681 = vadd.f32 %v1617, 0.0
      %v1682 = vadd.f32 %v1618, 0.0
      %v1683 = vadd.f32 %v1619, 0.0
      %v1684 = vadd.f32 %v1620, 0.0
      %v1685 = vadd.f32 %v1621, 0.0
      %v1686 = vadd.f32 %v1622, 0.0
      %v1687 = vadd.f32 %v1623, 0.0
      %v1688 = vadd.f32 %v1624, 0.0
      %v1689 = vadd.f32 %v1625, 0.0
      %v1690 = vadd.f32 %v1626, 0.0
      %v1691 = vadd.f32 %v1627, 0.0
      %v1692 = vadd.f32 %v1628, 0.0
      %v1693 = vadd.f32 %v1629, 0.0
      %v1694 = vadd.f32 %v1630, 0.0
      %v1695 = vadd.f32 %v1631, 0.0
      %v1696 = vadd.f32 %v1632, 0.0
      %v1697 = vadd.f32 %v1633, 0.0
      %v1698 = vadd.f32 %v1634, 0.0
      %v1699 = vadd.f32 %v1635, 0.0
      %v1700 = vadd.f32 %v1636, 0.0
      %v1701 = vadd.f32 %v1637, 0.0
      %v1702 = vadd.f32 %v1638, 0.0
      %v1703 = vadd.f32 %v1639, 0.0
      %v1704 = vadd.f32 %v1640, 0.0
      %v1705 = vadd.f32 %v1641, 0.0
      %v1706 = vadd.f32 %v1642, 0.0
      %v1707 = vadd.f32 %v1643, 0.0
      %v1708 = vadd.f32 %v1644, 0.0
      %v1709 = vadd.f32 %v1645, 0.0
      %v1710 = vadd.f32 %v1646, 0.0
      %v1711 = vadd.f32 %v1647, 0.0
      %v1712 = vadd.f32 %v1648, 0.0
      %v1713 = vadd.f32 %v1649, 0.0
      %v1714 = vadd.f32 %v1650, 0.0
      %v1715 = vadd.f32 %v1651, 0.0
      %v1716 = vadd.f32 %v1652, 0.0
      %v1717 = vadd.f32 %v1653, 0.0
      %v1718 = vadd.f32 %v1654, 0.0
      %v1719 = vadd.f32 %v1655, 0.0
      %v1720 = vadd.f32 %v1656, 0.0
      %v1721 = vadd.f32 %v1657, 0.0
      %v1722 = vadd.f32 %v1658, 0.0
      %v1723 = vadd.f32 %v1659, 0.0
      %v1724 = vadd.f32 %v1660, 0.0
      %v1725 = vadd.f32 %v1661, 0.0
      %v1726 = vadd.f32 %v1662, 0.0
      %v1727 = vadd.f32 %v1663, 0.0
      %v1728 = vadd.f32 %v1664, 0.0
      %v1729 = vadd.f32 %v1665, 0.0
      %v1730 = vadd.f32 %v1666, 0.0
      %v1731 = vld [vmem:[#allocation2 + $0x1] sm:$0xff]
      %v1732 = vld [vmem:[#allocation2 + $0x9] sm:$0xff]
      %v1733 = vld [vmem:[#allocation2 + $0x19] sm:$0xff]
      %v1734 = vld [vmem:[#allocation2 + $0x21] sm:$0xff]
      %v1735 = vld [vmem:[#allocation2 + $0x31] sm:$0xff]
      %v1736 = vld [vmem:[#allocation2 + $0x39] sm:$0xff]
      %v1737 = vld [vmem:[#allocation2 + $0x49] sm:$0xff]
      %v1738 = vld [vmem:[#allocation2 + $0x51] sm:$0xff]
      %v1739 = vld [vmem:[#allocation2 + $0x61] sm:$0xff]
      %v1740 = vld [vmem:[#allocation2 + $0x69] sm:$0xff]
      %v1741 = vld [vmem:[#allocation2 + $0x79] sm:$0xff]
      %v1742 = vld [vmem:[#allocation2 + $0x81] sm:$0xff]
      %v1743 = vld [vmem:[#allocation2 + $0x91] sm:$0xff]
      %v1744 = vld [vmem:[#allocation2 + $0x99] sm:$0xff]
      %v1745 = vld [vmem:[#allocation2 + $0xa9] sm:$0xff]
      %v1746 = vld [vmem:[#allocation2 + $0xb1] sm:$0xff]
      %v1747 = vld [vmem:[#allocation2 + $0xc1] sm:$0xff]
      %v1748 = vld [vmem:[#allocation2 + $0xc9] sm:$0xff]
      %v1749 = vld [vmem:[#allocation2 + $0xd9] sm:$0xff]
      %v1750 = vld [vmem:[#allocation2 + $0xe1] sm:$0xff]
      %v1751 = vld [vmem:[#allocation2 + $0xf1] sm:$0xff]
      %v1752 = vld [vmem:[#allocation2 + $0xf9] sm:$0xff]
      %v1753 = vld [vmem:[#allocation2 + $0x109] sm:$0xff]
      %v1754 = vld [vmem:[#allocation2 + $0x111] sm:$0xff]
      %v1755 = vld [vmem:[#allocation2 + $0x121] sm:$0xff]
      %v1756 = vld [vmem:[#allocation2 + $0x129] sm:$0xff]
      %v1757 = vld [vmem:[#allocation2 + $0x139] sm:$0xff]
      %v1758 = vld [vmem:[#allocation2 + $0x141] sm:$0xff]
      %v1759 = vld [vmem:[#allocation2 + $0x151] sm:$0xff]
      %v1760 = vld [vmem:[#allocation2 + $0x159] sm:$0xff]
      %v1761 = vld [vmem:[#allocation2 + $0x169] sm:$0xff]
      %v1762 = vld [vmem:[#allocation2 + $0x171] sm:$0xff]
      %v1763 = vld [vmem:[#allocation2 + $0x1b1] sm:$0xff]
      %v1764 = vld [vmem:[#allocation2 + $0x1b9] sm:$0xff]
      %v1765 = vld [vmem:[#allocation2 + $0x1c9] sm:$0xff]
      %v1766 = vld [vmem:[#allocation2 + $0x1d1] sm:$0xff]
      %v1767 = vld [vmem:[#allocation2 + $0x1e1] sm:$0xff]
      %v1768 = vld [vmem:[#allocation2 + $0x1e9] sm:$0xff]
      %v1769 = vld [vmem:[#allocation2 + $0x1f9] sm:$0xff]
      %v1770 = vld [vmem:[#allocation2 + $0x201] sm:$0xff]
      %v1771 = vld [vmem:[#allocation2 + $0x211] sm:$0xff]
      %v1772 = vld [vmem:[#allocation2 + $0x219] sm:$0xff]
      %v1773 = vld [vmem:[#allocation2 + $0x229] sm:$0xff]
      %v1774 = vld [vmem:[#allocation2 + $0x231] sm:$0xff]
      %v1775 = vld [vmem:[#allocation2 + $0x241] sm:$0xff]
      %v1776 = vld [vmem:[#allocation2 + $0x249] sm:$0xff]
      %v1777 = vld [vmem:[#allocation2 + $0x259] sm:$0xff]
      %v1778 = vld [vmem:[#allocation2 + $0x261] sm:$0xff]
      %v1779 = vld [vmem:[#allocation2 + $0x271] sm:$0xff]
      %v1780 = vld [vmem:[#allocation2 + $0x279] sm:$0xff]
      %v1781 = vld [vmem:[#allocation2 + $0x289] sm:$0xff]
      %v1782 = vld [vmem:[#allocation2 + $0x291] sm:$0xff]
      %v1783 = vld [vmem:[#allocation2 + $0x2a1] sm:$0xff]
      %v1784 = vld [vmem:[#allocation2 + $0x2a9] sm:$0xff]
      %v1785 = vld [vmem:[#allocation2 + $0x2b9] sm:$0xff]
      %v1786 = vld [vmem:[#allocation2 + $0x2c1] sm:$0xff]
      %v1787 = vld [vmem:[#allocation2 + $0x2d1] sm:$0xff]
      %v1788 = vld [vmem:[#allocation2 + $0x2d9] sm:$0xff]
      %v1789 = vld [vmem:[#allocation2 + $0x2e9] sm:$0xff]
      %v1790 = vld [vmem:[#allocation2 + $0x2f1] sm:$0xff]
      %v1791 = vld [vmem:[#allocation2 + $0x301] sm:$0xff]
      %v1792 = vld [vmem:[#allocation2 + $0x309] sm:$0xff]
      %v1793 = vld [vmem:[#allocation2 + $0x319] sm:$0xff]
      %v1794 = vld [vmem:[#allocation2 + $0x321] sm:$0xff]
      %v1795 = vlaneseq
      %v1796 = vshrl.u32 %v1795, 7
      %v1797 = vsub.s32 1, %v1796
      %v1798 = vrot.slane %v1533, %v1797
      %v1799 = vmul.f32 %v1731, %v1798
      %v1800 = vmul.f32 %v1732, %v1798
      %v1801 = vmul.f32 %v1733, %v1798
      %v1802 = vmul.f32 %v1734, %v1798
      %v1803 = vmul.f32 %v1735, %v1798
      %v1804 = vmul.f32 %v1736, %v1798
      %v1805 = vmul.f32 %v1737, %v1798
      %v1806 = vmul.f32 %v1738, %v1798
      %v1807 = vmul.f32 %v1739, %v1798
      %v1808 = vmul.f32 %v1740, %v1798
      %v1809 = vmul.f32 %v1741, %v1798
      %v1810 = vmul.f32 %v1742, %v1798
      %v1811 = vmul.f32 %v1743, %v1798
      %v1812 = vmul.f32 %v1744, %v1798
      %v1813 = vmul.f32 %v1745, %v1798
      %v1814 = vmul.f32 %v1746, %v1798
      %v1815 = vmul.f32 %v1747, %v1798
      %v1816 = vmul.f32 %v1748, %v1798
      %v1817 = vmul.f32 %v1749, %v1798
      %v1818 = vmul.f32 %v1750, %v1798
      %v1819 = vmul.f32 %v1751, %v1798
      %v1820 = vmul.f32 %v1752, %v1798
      %v1821 = vmul.f32 %v1753, %v1798
      %v1822 = vmul.f32 %v1754, %v1798
      %v1823 = vmul.f32 %v1755, %v1798
      %v1824 = vmul.f32 %v1756, %v1798
      %v1825 = vmul.f32 %v1757, %v1798
      %v1826 = vmul.f32 %v1758, %v1798
      %v1827 = vmul.f32 %v1759, %v1798
      %v1828 = vmul.f32 %v1760, %v1798
      %v1829 = vmul.f32 %v1761, %v1798
      %v1830 = vmul.f32 %v1762, %v1798
      %v1831 = vmul.f32 %v1763, %v1798
      %v1832 = vmul.f32 %v1764, %v1798
      %v1833 = vmul.f32 %v1765, %v1798
      %v1834 = vmul.f32 %v1766, %v1798
      %v1835 = vmul.f32 %v1767, %v1798
      %v1836 = vmul.f32 %v1768, %v1798
      %v1837 = vmul.f32 %v1769, %v1798
      %v1838 = vmul.f32 %v1770, %v1798
      %v1839 = vmul.f32 %v1771, %v1798
      %v1840 = vmul.f32 %v1772, %v1798
      %v1841 = vmul.f32 %v1773, %v1798
      %v1842 = vmul.f32 %v1774, %v1798
      %v1843 = vmul.f32 %v1775, %v1798
      %v1844 = vmul.f32 %v1776, %v1798
      %v1845 = vmul.f32 %v1777, %v1798
      %v1846 = vmul.f32 %v1778, %v1798
      %v1847 = vmul.f32 %v1779, %v1798
      %v1848 = vmul.f32 %v1780, %v1798
      %v1849 = vmul.f32 %v1781, %v1798
      %v1850 = vmul.f32 %v1782, %v1798
      %v1851 = vmul.f32 %v1783, %v1798
      %v1852 = vmul.f32 %v1784, %v1798
      %v1853 = vmul.f32 %v1785, %v1798
      %v1854 = vmul.f32 %v1786, %v1798
      %v1855 = vmul.f32 %v1787, %v1798
      %v1856 = vmul.f32 %v1788, %v1798
      %v1857 = vmul.f32 %v1789, %v1798
      %v1858 = vmul.f32 %v1790, %v1798
      %v1859 = vmul.f32 %v1791, %v1798
      %v1860 = vmul.f32 %v1792, %v1798
      %v1861 = vmul.f32 %v1793, %v1798
      %v1862 = vmul.f32 %v1794, %v1798
      %v1863 = vadd.f32 %v1667, %v1799
      %v1864 = vadd.f32 %v1668, %v1800
      %v1865 = vadd.f32 %v1669, %v1801
      %v1866 = vadd.f32 %v1670, %v1802
      %v1867 = vadd.f32 %v1671, %v1803
      %v1868 = vadd.f32 %v1672, %v1804
      %v1869 = vadd.f32 %v1673, %v1805
      %v1870 = vadd.f32 %v1674, %v1806
      %v1871 = vadd.f32 %v1675, %v1807
      %v1872 = vadd.f32 %v1676, %v1808
      %v1873 = vadd.f32 %v1677, %v1809
      %v1874 = vadd.f32 %v1678, %v1810
      %v1875 = vadd.f32 %v1679, %v1811
      %v1876 = vadd.f32 %v1680, %v1812
      %v1877 = vadd.f32 %v1681, %v1813
      %v1878 = vadd.f32 %v1682, %v1814
      %v1879 = vadd.f32 %v1683, %v1815
      %v1880 = vadd.f32 %v1684, %v1816
      %v1881 = vadd.f32 %v1685, %v1817
      %v1882 = vadd.f32 %v1686, %v1818
      %v1883 = vadd.f32 %v1687, %v1819
      %v1884 = vadd.f32 %v1688, %v1820
      %v1885 = vadd.f32 %v1689, %v1821
      %v1886 = vadd.f32 %v1690, %v1822
      %v1887 = vadd.f32 %v1691, %v1823
      %v1888 = vadd.f32 %v1692, %v1824
      %v1889 = vadd.f32 %v1693, %v1825
      %v1890 = vadd.f32 %v1694, %v1826
      %v1891 = vadd.f32 %v1695, %v1827
      %v1892 = vadd.f32 %v1696, %v1828
      %v1893 = vadd.f32 %v1697, %v1829
      %v1894 = vadd.f32 %v1698, %v1830
      %v1895 = vadd.f32 %v1699, %v1831
      %v1896 = vadd.f32 %v1700, %v1832
      %v1897 = vadd.f32 %v1701, %v1833
      %v1898 = vadd.f32 %v1702, %v1834
      %v1899 = vadd.f32 %v1703, %v1835
      %v1900 = vadd.f32 %v1704, %v1836
      %v1901 = vadd.f32 %v1705, %v1837
      %v1902 = vadd.f32 %v1706, %v1838
      %v1903 = vadd.f32 %v1707, %v1839
      %v1904 = vadd.f32 %v1708, %v1840
      %v1905 = vadd.f32 %v1709, %v1841
      %v1906 = vadd.f32 %v1710, %v1842
      %v1907 = vadd.f32 %v1711, %v1843
      %v1908 = vadd.f32 %v1712, %v1844
      %v1909 = vadd.f32 %v1713, %v1845
      %v1910 = vadd.f32 %v1714, %v1846
      %v1911 = vadd.f32 %v1715, %v1847
      %v1912 = vadd.f32 %v1716, %v1848
      %v1913 = vadd.f32 %v1717, %v1849
      %v1914 = vadd.f32 %v1718, %v1850
      %v1915 = vadd.f32 %v1719, %v1851
      %v1916 = vadd.f32 %v1720, %v1852
      %v1917 = vadd.f32 %v1721, %v1853
      %v1918 = vadd.f32 %v1722, %v1854
      %v1919 = vadd.f32 %v1723, %v1855
      %v1920 = vadd.f32 %v1724, %v1856
      %v1921 = vadd.f32 %v1725, %v1857
      %v1922 = vadd.f32 %v1726, %v1858
      %v1923 = vadd.f32 %v1727, %v1859
      %v1924 = vadd.f32 %v1728, %v1860
      %v1925 = vadd.f32 %v1729, %v1861
      %v1926 = vadd.f32 %v1730, %v1862
      %v1927 = vld [vmem:[#allocation2 + $0x2] sm:$0xff]
      %v1928 = vld [vmem:[#allocation2 + $0xa] sm:$0xff]
      %v1929 = vld [vmem:[#allocation2 + $0x1a] sm:$0xff]
      %v1930 = vld [vmem:[#allocation2 + $0x22] sm:$0xff]
      %v1931 = vld [vmem:[#allocation2 + $0x32] sm:$0xff]
      %v1932 = vld [vmem:[#allocation2 + $0x3a] sm:$0xff]
      %v1933 = vld [vmem:[#allocation2 + $0x4a] sm:$0xff]
      %v1934 = vld [vmem:[#allocation2 + $0x52] sm:$0xff]
      %v1935 = vld [vmem:[#allocation2 + $0x62] sm:$0xff]
      %v1936 = vld [vmem:[#allocation2 + $0x6a] sm:$0xff]
      %v1937 = vld [vmem:[#allocation2 + $0x7a] sm:$0xff]
      %v1938 = vld [vmem:[#allocation2 + $0x82] sm:$0xff]
      %v1939 = vld [vmem:[#allocation2 + $0x92] sm:$0xff]
      %v1940 = vld [vmem:[#allocation2 + $0x9a] sm:$0xff]
      %v1941 = vld [vmem:[#allocation2 + $0xaa] sm:$0xff]
      %v1942 = vld [vmem:[#allocation2 + $0xb2] sm:$0xff]
      %v1943 = vld [vmem:[#allocation2 + $0xc2] sm:$0xff]
      %v1944 = vld [vmem:[#allocation2 + $0xca] sm:$0xff]
      %v1945 = vld [vmem:[#allocation2 + $0xda] sm:$0xff]
      %v1946 = vld [vmem:[#allocation2 + $0xe2] sm:$0xff]
      %v1947 = vld [vmem:[#allocation2 + $0xf2] sm:$0xff]
      %v1948 = vld [vmem:[#allocation2 + $0xfa] sm:$0xff]
      %v1949 = vld [vmem:[#allocation2 + $0x10a] sm:$0xff]
      %v1950 = vld [vmem:[#allocation2 + $0x112] sm:$0xff]
      %v1951 = vld [vmem:[#allocation2 + $0x122] sm:$0xff]
      %v1952 = vld [vmem:[#allocation2 + $0x12a] sm:$0xff]
      %v1953 = vld [vmem:[#allocation2 + $0x13a] sm:$0xff]
      %v1954 = vld [vmem:[#allocation2 + $0x142] sm:$0xff]
      %v1955 = vld [vmem:[#allocation2 + $0x152] sm:$0xff]
      %v1956 = vld [vmem:[#allocation2 + $0x15a] sm:$0xff]
      %v1957 = vld [vmem:[#allocation2 + $0x16a] sm:$0xff]
      %v1958 = vld [vmem:[#allocation2 + $0x172] sm:$0xff]
      %v1959 = vld [vmem:[#allocation2 + $0x1b2] sm:$0xff]
      %v1960 = vld [vmem:[#allocation2 + $0x1ba] sm:$0xff]
      %v1961 = vld [vmem:[#allocation2 + $0x1ca] sm:$0xff]
      %v1962 = vld [vmem:[#allocation2 + $0x1d2] sm:$0xff]
      %v1963 = vld [vmem:[#allocation2 + $0x1e2] sm:$0xff]
      %v1964 = vld [vmem:[#allocation2 + $0x1ea] sm:$0xff]
      %v1965 = vld [vmem:[#allocation2 + $0x1fa] sm:$0xff]
      %v1966 = vld [vmem:[#allocation2 + $0x202] sm:$0xff]
      %v1967 = vld [vmem:[#allocation2 + $0x212] sm:$0xff]
      %v1968 = vld [vmem:[#allocation2 + $0x21a] sm:$0xff]
      %v1969 = vld [vmem:[#allocation2 + $0x22a] sm:$0xff]
      %v1970 = vld [vmem:[#allocation2 + $0x232] sm:$0xff]
      %v1971 = vld [vmem:[#allocation2 + $0x242] sm:$0xff]
      %v1972 = vld [vmem:[#allocation2 + $0x24a] sm:$0xff]
      %v1973 = vld [vmem:[#allocation2 + $0x25a] sm:$0xff]
      %v1974 = vld [vmem:[#allocation2 + $0x262] sm:$0xff]
      %v1975 = vld [vmem:[#allocation2 + $0x272] sm:$0xff]
      %v1976 = vld [vmem:[#allocation2 + $0x27a] sm:$0xff]
      %v1977 = vld [vmem:[#allocation2 + $0x28a] sm:$0xff]
      %v1978 = vld [vmem:[#allocation2 + $0x292] sm:$0xff]
      %v1979 = vld [vmem:[#allocation2 + $0x2a2] sm:$0xff]
      %v1980 = vld [vmem:[#allocation2 + $0x2aa] sm:$0xff]
      %v1981 = vld [vmem:[#allocation2 + $0x2ba] sm:$0xff]
      %v1982 = vld [vmem:[#allocation2 + $0x2c2] sm:$0xff]
      %v1983 = vld [vmem:[#allocation2 + $0x2d2] sm:$0xff]
      %v1984 = vld [vmem:[#allocation2 + $0x2da] sm:$0xff]
      %v1985 = vld [vmem:[#allocation2 + $0x2ea] sm:$0xff]
      %v1986 = vld [vmem:[#allocation2 + $0x2f2] sm:$0xff]
      %v1987 = vld [vmem:[#allocation2 + $0x302] sm:$0xff]
      %v1988 = vld [vmem:[#allocation2 + $0x30a] sm:$0xff]
      %v1989 = vld [vmem:[#allocation2 + $0x31a] sm:$0xff]
      %v1990 = vld [vmem:[#allocation2 + $0x322] sm:$0xff]
      %v1991 = vlaneseq
      %v1992 = vshrl.u32 %v1991, 7
      %v1993 = vsub.s32 2, %v1992
      %v1994 = vrot.slane %v1533, %v1993
      %v1995 = vmul.f32 %v1927, %v1994
      %v1996 = vmul.f32 %v1928, %v1994
      %v1997 = vmul.f32 %v1929, %v1994
      %v1998 = vmul.f32 %v1930, %v1994
      %v1999 = vmul.f32 %v1931, %v1994
      %v2000 = vmul.f32 %v1932, %v1994
      %v2001 = vmul.f32 %v1933, %v1994
      %v2002 = vmul.f32 %v1934, %v1994
      %v2003 = vmul.f32 %v1935, %v1994
      %v2004 = vmul.f32 %v1936, %v1994
      %v2005 = vmul.f32 %v1937, %v1994
      %v2006 = vmul.f32 %v1938, %v1994
      %v2007 = vmul.f32 %v1939, %v1994
      %v2008 = vmul.f32 %v1940, %v1994
      %v2009 = vmul.f32 %v1941, %v1994
      %v2010 = vmul.f32 %v1942, %v1994
      %v2011 = vmul.f32 %v1943, %v1994
      %v2012 = vmul.f32 %v1944, %v1994
      %v2013 = vmul.f32 %v1945, %v1994
      %v2014 = vmul.f32 %v1946, %v1994
      %v2015 = vmul.f32 %v1947, %v1994
      %v2016 = vmul.f32 %v1948, %v1994
      %v2017 = vmul.f32 %v1949, %v1994
      %v2018 = vmul.f32 %v1950, %v1994
      %v2019 = vmul.f32 %v1951, %v1994
      %v2020 = vmul.f32 %v1952, %v1994
      %v2021 = vmul.f32 %v1953, %v1994
      %v2022 = vmul.f32 %v1954, %v1994
      %v2023 = vmul.f32 %v1955, %v1994
      %v2024 = vmul.f32 %v1956, %v1994
      %v2025 = vmul.f32 %v1957, %v1994
      %v2026 = vmul.f32 %v1958, %v1994
      %v2027 = vmul.f32 %v1959, %v1994
      %v2028 = vmul.f32 %v1960, %v1994
      %v2029 = vmul.f32 %v1961, %v1994
      %v2030 = vmul.f32 %v1962, %v1994
      %v2031 = vmul.f32 %v1963, %v1994
      %v2032 = vmul.f32 %v1964, %v1994
      %v2033 = vmul.f32 %v1965, %v1994
      %v2034 = vmul.f32 %v1966, %v1994
      %v2035 = vmul.f32 %v1967, %v1994
      %v2036 = vmul.f32 %v1968, %v1994
      %v2037 = vmul.f32 %v1969, %v1994
      %v2038 = vmul.f32 %v1970, %v1994
      %v2039 = vmul.f32 %v1971, %v1994
      %v2040 = vmul.f32 %v1972, %v1994
      %v2041 = vmul.f32 %v1973, %v1994
      %v2042 = vmul.f32 %v1974, %v1994
      %v2043 = vmul.f32 %v1975, %v1994
      %v2044 = vmul.f32 %v1976, %v1994
      %v2045 = vmul.f32 %v1977, %v1994
      %v2046 = vmul.f32 %v1978, %v1994
      %v2047 = vmul.f32 %v1979, %v1994
      %v2048 = vmul.f32 %v1980, %v1994
      %v2049 = vmul.f32 %v1981, %v1994
      %v2050 = vmul.f32 %v1982, %v1994
      %v2051 = vmul.f32 %v1983, %v1994
      %v2052 = vmul.f32 %v1984, %v1994
      %v2053 = vmul.f32 %v1985, %v1994
      %v2054 = vmul.f32 %v1986, %v1994
      %v2055 = vmul.f32 %v1987, %v1994
      %v2056 = vmul.f32 %v1988, %v1994
      %v2057 = vmul.f32 %v1989, %v1994
      %v2058 = vmul.f32 %v1990, %v1994
      %v2059 = vadd.f32 %v1863, %v1995
      %v2060 = vadd.f32 %v1864, %v1996
      %v2061 = vadd.f32 %v1865, %v1997
      %v2062 = vadd.f32 %v1866, %v1998
      %v2063 = vadd.f32 %v1867, %v1999
      %v2064 = vadd.f32 %v1868, %v2000
      %v2065 = vadd.f32 %v1869, %v2001
      %v2066 = vadd.f32 %v1870, %v2002
      %v2067 = vadd.f32 %v1871, %v2003
      %v2068 = vadd.f32 %v1872, %v2004
      %v2069 = vadd.f32 %v1873, %v2005
      %v2070 = vadd.f32 %v1874, %v2006
      %v2071 = vadd.f32 %v1875, %v2007
      %v2072 = vadd.f32 %v1876, %v2008
      %v2073 = vadd.f32 %v1877, %v2009
      %v2074 = vadd.f32 %v1878, %v2010
      %v2075 = vadd.f32 %v1879, %v2011
      %v2076 = vadd.f32 %v1880, %v2012
      %v2077 = vadd.f32 %v1881, %v2013
      %v2078 = vadd.f32 %v1882, %v2014
      %v2079 = vadd.f32 %v1883, %v2015
      %v2080 = vadd.f32 %v1884, %v2016
      %v2081 = vadd.f32 %v1885, %v2017
      %v2082 = vadd.f32 %v1886, %v2018
      %v2083 = vadd.f32 %v1887, %v2019
      %v2084 = vadd.f32 %v1888, %v2020
      %v2085 = vadd.f32 %v1889, %v2021
      %v2086 = vadd.f32 %v1890, %v2022
      %v2087 = vadd.f32 %v1891, %v2023
      %v2088 = vadd.f32 %v1892, %v2024
      %v2089 = vadd.f32 %v1893, %v2025
      %v2090 = vadd.f32 %v1894, %v2026
      %v2091 = vadd.f32 %v1895, %v2027
      %v2092 = vadd.f32 %v1896, %v2028
      %v2093 = vadd.f32 %v1897, %v2029
      %v2094 = vadd.f32 %v1898, %v2030
      %v2095 = vadd.f32 %v1899, %v2031
      %v2096 = vadd.f32 %v1900, %v2032
      %v2097 = vadd.f32 %v1901, %v2033
      %v2098 = vadd.f32 %v1902, %v2034
      %v2099 = vadd.f32 %v1903, %v2035
      %v2100 = vadd.f32 %v1904, %v2036
      %v2101 = vadd.f32 %v1905, %v2037
      %v2102 = vadd.f32 %v1906, %v2038
      %v2103 = vadd.f32 %v1907, %v2039
      %v2104 = vadd.f32 %v1908, %v2040
      %v2105 = vadd.f32 %v1909, %v2041
      %v2106 = vadd.f32 %v1910, %v2042
      %v2107 = vadd.f32 %v1911, %v2043
      %v2108 = vadd.f32 %v1912, %v2044
      %v2109 = vadd.f32 %v1913, %v2045
      %v2110 = vadd.f32 %v1914, %v2046
      %v2111 = vadd.f32 %v1915, %v2047
      %v2112 = vadd.f32 %v1916, %v2048
      %v2113 = vadd.f32 %v1917, %v2049
      %v2114 = vadd.f32 %v1918, %v2050
      %v2115 = vadd.f32 %v1919, %v2051
      %v2116 = vadd.f32 %v1920, %v2052
      %v2117 = vadd.f32 %v1921, %v2053
      %v2118 = vadd.f32 %v1922, %v2054
      %v2119 = vadd.f32 %v1923, %v2055
      %v2120 = vadd.f32 %v1924, %v2056
      %v2121 = vadd.f32 %v1925, %v2057
      %v2122 = vadd.f32 %v1926, %v2058
      %v2123 = vld [vmem:[%s1403] sm:$0xff]
      %v2124 = vld [vmem:[%s1403 + $0x8] sm:$0xff]
      %v2125 = vld [vmem:[%s1403 + $0x18] sm:$0xff]
      %v2126 = vld [vmem:[%s1403 + $0x20] sm:$0xff]
      %v2127 = vld [vmem:[%s1403 + $0x30] sm:$0xff]
      %v2128 = vld [vmem:[%s1403 + $0x38] sm:$0xff]
      %v2129 = vld [vmem:[%s1403 + $0x48] sm:$0xff]
      %v2130 = vld [vmem:[%s1403 + $0x50] sm:$0xff]
      %v2131 = vld [vmem:[%s1403 + $0x60] sm:$0xff]
      %v2132 = vld [vmem:[%s1403 + $0x68] sm:$0xff]
      %v2133 = vld [vmem:[%s1403 + $0x78] sm:$0xff]
      %v2134 = vld [vmem:[%s1403 + $0x80] sm:$0xff]
      %v2135 = vld [vmem:[%s1403 + $0x90] sm:$0xff]
      %v2136 = vld [vmem:[%s1403 + $0x98] sm:$0xff]
      %v2137 = vld [vmem:[%s1403 + $0xa8] sm:$0xff]
      %v2138 = vld [vmem:[%s1403 + $0xb0] sm:$0xff]
      %v2139 = vld [vmem:[%s1403 + $0xc0] sm:$0xff]
      %v2140 = vld [vmem:[%s1403 + $0xc8] sm:$0xff]
      %v2141 = vld [vmem:[%s1403 + $0xd8] sm:$0xff]
      %v2142 = vld [vmem:[%s1403 + $0xe0] sm:$0xff]
      %v2143 = vld [vmem:[%s1403 + $0xf0] sm:$0xff]
      %v2144 = vld [vmem:[%s1403 + $0xf8] sm:$0xff]
      %v2145 = vld [vmem:[%s1403 + $0x108] sm:$0xff]
      %v2146 = vld [vmem:[%s1403 + $0x110] sm:$0xff]
      %v2147 = vld [vmem:[%s1403 + $0x120] sm:$0xff]
      %v2148 = vld [vmem:[%s1403 + $0x128] sm:$0xff]
      %v2149 = vld [vmem:[%s1403 + $0x138] sm:$0xff]
      %v2150 = vld [vmem:[%s1403 + $0x140] sm:$0xff]
      %v2151 = vld [vmem:[%s1403 + $0x150] sm:$0xff]
      %v2152 = vld [vmem:[%s1403 + $0x158] sm:$0xff]
      %v2153 = vld [vmem:[%s1403 + $0x168] sm:$0xff]
      %v2154 = vld [vmem:[%s1403 + $0x170] sm:$0xff]
      %v2155 = vld [vmem:[%s1403 + $0x1b0] sm:$0xff]
      %v2156 = vld [vmem:[%s1403 + $0x1b8] sm:$0xff]
      %v2157 = vld [vmem:[%s1403 + $0x1c8] sm:$0xff]
      %v2158 = vld [vmem:[%s1403 + $0x1d0] sm:$0xff]
      %v2159 = vld [vmem:[%s1403 + $0x1e0] sm:$0xff]
      %v2160 = vld [vmem:[%s1403 + $0x1e8] sm:$0xff]
      %v2161 = vld [vmem:[%s1403 + $0x1f8] sm:$0xff]
      %v2162 = vld [vmem:[%s1403 + $0x200] sm:$0xff]
      %v2163 = vld [vmem:[%s1403 + $0x210] sm:$0xff]
      %v2164 = vld [vmem:[%s1403 + $0x218] sm:$0xff]
      %v2165 = vld [vmem:[%s1403 + $0x228] sm:$0xff]
      %v2166 = vld [vmem:[%s1403 + $0x230] sm:$0xff]
      %v2167 = vld [vmem:[%s1403 + $0x240] sm:$0xff]
      %v2168 = vld [vmem:[%s1403 + $0x248] sm:$0xff]
      %v2169 = vld [vmem:[%s1403 + $0x258] sm:$0xff]
      %v2170 = vld [vmem:[%s1403 + $0x260] sm:$0xff]
      %v2171 = vld [vmem:[%s1403 + $0x270] sm:$0xff]
      %v2172 = vld [vmem:[%s1403 + $0x278] sm:$0xff]
      %v2173 = vld [vmem:[%s1403 + $0x288] sm:$0xff]
      %v2174 = vld [vmem:[%s1403 + $0x290] sm:$0xff]
      %v2175 = vld [vmem:[%s1403 + $0x2a0] sm:$0xff]
      %v2176 = vld [vmem:[%s1403 + $0x2a8] sm:$0xff]
      %v2177 = vld [vmem:[%s1403 + $0x2b8] sm:$0xff]
      %v2178 = vld [vmem:[%s1403 + $0x2c0] sm:$0xff]
      %v2179 = vld [vmem:[%s1403 + $0x2d0] sm:$0xff]
      %v2180 = vld [vmem:[%s1403 + $0x2d8] sm:$0xff]
      %v2181 = vld [vmem:[%s1403 + $0x2e8] sm:$0xff]
      %v2182 = vld [vmem:[%s1403 + $0x2f0] sm:$0xff]
      %v2183 = vld [vmem:[%s1403 + $0x300] sm:$0xff]
      %v2184 = vld [vmem:[%s1403 + $0x308] sm:$0xff]
      %v2185 = vld [vmem:[%s1403 + $0x318] sm:$0xff]
      %v2186 = vld [vmem:[%s1403 + $0x320] sm:$0xff]
      %v2187 = vlaneseq
      %v2188 = vshrl.u32 %v2187, 7
      %v2189 = vsub.s32 3, %v2188
      %v2190 = vrot.slane %v1533, %v2189
      %v2191 = vmul.f32 %v2123, %v2190
      %v2192 = vmul.f32 %v2124, %v2190
      %v2193 = vmul.f32 %v2125, %v2190
      %v2194 = vmul.f32 %v2126, %v2190
      %v2195 = vmul.f32 %v2127, %v2190
      %v2196 = vmul.f32 %v2128, %v2190
      %v2197 = vmul.f32 %v2129, %v2190
      %v2198 = vmul.f32 %v2130, %v2190
      %v2199 = vmul.f32 %v2131, %v2190
      %v2200 = vmul.f32 %v2132, %v2190
      %v2201 = vmul.f32 %v2133, %v2190
      %v2202 = vmul.f32 %v2134, %v2190
      %v2203 = vmul.f32 %v2135, %v2190
      %v2204 = vmul.f32 %v2136, %v2190
      %v2205 = vmul.f32 %v2137, %v2190
      %v2206 = vmul.f32 %v2138, %v2190
      %v2207 = vmul.f32 %v2139, %v2190
      %v2208 = vmul.f32 %v2140, %v2190
      %v2209 = vmul.f32 %v2141, %v2190
      %v2210 = vmul.f32 %v2142, %v2190
      %v2211 = vmul.f32 %v2143, %v2190
      %v2212 = vmul.f32 %v2144, %v2190
      %v2213 = vmul.f32 %v2145, %v2190
      %v2214 = vmul.f32 %v2146, %v2190
      %v2215 = vmul.f32 %v2147, %v2190
      %v2216 = vmul.f32 %v2148, %v2190
      %v2217 = vmul.f32 %v2149, %v2190
      %v2218 = vmul.f32 %v2150, %v2190
      %v2219 = vmul.f32 %v2151, %v2190
      %v2220 = vmul.f32 %v2152, %v2190
      %v2221 = vmul.f32 %v2153, %v2190
      %v2222 = vmul.f32 %v2154, %v2190
      %v2223 = vmul.f32 %v2155, %v2190
      %v2224 = vmul.f32 %v2156, %v2190
      %v2225 = vmul.f32 %v2157, %v2190
      %v2226 = vmul.f32 %v2158, %v2190
      %v2227 = vmul.f32 %v2159, %v2190
      %v2228 = vmul.f32 %v2160, %v2190
      %v2229 = vmul.f32 %v2161, %v2190
      %v2230 = vmul.f32 %v2162, %v2190
      %v2231 = vmul.f32 %v2163, %v2190
      %v2232 = vmul.f32 %v2164, %v2190
      %v2233 = vmul.f32 %v2165, %v2190
      %v2234 = vmul.f32 %v2166, %v2190
      %v2235 = vmul.f32 %v2167, %v2190
      %v2236 = vmul.f32 %v2168, %v2190
      %v2237 = vmul.f32 %v2169, %v2190
      %v2238 = vmul.f32 %v2170, %v2190
      %v2239 = vmul.f32 %v2171, %v2190
      %v2240 = vmul.f32 %v2172, %v2190
      %v2241 = vmul.f32 %v2173, %v2190
      %v2242 = vmul.f32 %v2174, %v2190
      %v2243 = vmul.f32 %v2175, %v2190
      %v2244 = vmul.f32 %v2176, %v2190
      %v2245 = vmul.f32 %v2177, %v2190
      %v2246 = vmul.f32 %v2178, %v2190
      %v2247 = vmul.f32 %v2179, %v2190
      %v2248 = vmul.f32 %v2180, %v2190
      %v2249 = vmul.f32 %v2181, %v2190
      %v2250 = vmul.f32 %v2182, %v2190
      %v2251 = vmul.f32 %v2183, %v2190
      %v2252 = vmul.f32 %v2184, %v2190
      %v2253 = vmul.f32 %v2185, %v2190
      %v2254 = vmul.f32 %v2186, %v2190
      %v2255 = vadd.f32 %v2059, %v2191
      %v2256 = vadd.f32 %v2060, %v2192
      %v2257 = vadd.f32 %v2061, %v2193
      %v2258 = vadd.f32 %v2062, %v2194
      %v2259 = vadd.f32 %v2063, %v2195
      %v2260 = vadd.f32 %v2064, %v2196
      %v2261 = vadd.f32 %v2065, %v2197
      %v2262 = vadd.f32 %v2066, %v2198
      %v2263 = vadd.f32 %v2067, %v2199
      %v2264 = vadd.f32 %v2068, %v2200
      %v2265 = vadd.f32 %v2069, %v2201
      %v2266 = vadd.f32 %v2070, %v2202
      %v2267 = vadd.f32 %v2071, %v2203
      %v2268 = vadd.f32 %v2072, %v2204
      %v2269 = vadd.f32 %v2073, %v2205
      %v2270 = vadd.f32 %v2074, %v2206
      %v2271 = vadd.f32 %v2075, %v2207
      %v2272 = vadd.f32 %v2076, %v2208
      %v2273 = vadd.f32 %v2077, %v2209
      %v2274 = vadd.f32 %v2078, %v2210
      %v2275 = vadd.f32 %v2079, %v2211
      %v2276 = vadd.f32 %v2080, %v2212
      %v2277 = vadd.f32 %v2081, %v2213
      %v2278 = vadd.f32 %v2082, %v2214
      %v2279 = vadd.f32 %v2083, %v2215
      %v2280 = vadd.f32 %v2084, %v2216
      %v2281 = vadd.f32 %v2085, %v2217
      %v2282 = vadd.f32 %v2086, %v2218
      %v2283 = vadd.f32 %v2087, %v2219
      %v2284 = vadd.f32 %v2088, %v2220
      %v2285 = vadd.f32 %v2089, %v2221
      %v2286 = vadd.f32 %v2090, %v2222
      %v2287 = vadd.f32 %v2091, %v2223
      %v2288 = vadd.f32 %v2092, %v2224
      %v2289 = vadd.f32 %v2093, %v2225
      %v2290 = vadd.f32 %v2094, %v2226
      %v2291 = vadd.f32 %v2095, %v2227
      %v2292 = vadd.f32 %v2096, %v2228
      %v2293 = vadd.f32 %v2097, %v2229
      %v2294 = vadd.f32 %v2098, %v2230
      %v2295 = vadd.f32 %v2099, %v2231
      %v2296 = vadd.f32 %v2100, %v2232
      %v2297 = vadd.f32 %v2101, %v2233
      %v2298 = vadd.f32 %v2102, %v2234
      %v2299 = vadd.f32 %v2103, %v2235
      %v2300 = vadd.f32 %v2104, %v2236
      %v2301 = vadd.f32 %v2105, %v2237
      %v2302 = vadd.f32 %v2106, %v2238
      %v2303 = vadd.f32 %v2107, %v2239
      %v2304 = vadd.f32 %v2108, %v2240
      %v2305 = vadd.f32 %v2109, %v2241
      %v2306 = vadd.f32 %v2110, %v2242
      %v2307 = vadd.f32 %v2111, %v2243
      %v2308 = vadd.f32 %v2112, %v2244
      %v2309 = vadd.f32 %v2113, %v2245
      %v2310 = vadd.f32 %v2114, %v2246
      %v2311 = vadd.f32 %v2115, %v2247
      %v2312 = vadd.f32 %v2116, %v2248
      %v2313 = vadd.f32 %v2117, %v2249
      %v2314 = vadd.f32 %v2118, %v2250
      %v2315 = vadd.f32 %v2119, %v2251
      %v2316 = vadd.f32 %v2120, %v2252
      %v2317 = vadd.f32 %v2121, %v2253
      %v2318 = vadd.f32 %v2122, %v2254
      %v2319 = vld [vmem:[%s1403 + $0x1] sm:$0xff]
      %v2320 = vld [vmem:[%s1403 + $0x9] sm:$0xff]
      %v2321 = vld [vmem:[%s1403 + $0x19] sm:$0xff]
      %v2322 = vld [vmem:[%s1403 + $0x21] sm:$0xff]
      %v2323 = vld [vmem:[%s1403 + $0x31] sm:$0xff]
      %v2324 = vld [vmem:[%s1403 + $0x39] sm:$0xff]
      %v2325 = vld [vmem:[%s1403 + $0x49] sm:$0xff]
      %v2326 = vld [vmem:[%s1403 + $0x51] sm:$0xff]
      %v2327 = vld [vmem:[%s1403 + $0x61] sm:$0xff]
      %v2328 = vld [vmem:[%s1403 + $0x69] sm:$0xff]
      %v2329 = vld [vmem:[%s1403 + $0x79] sm:$0xff]
      %v2330 = vld [vmem:[%s1403 + $0x81] sm:$0xff]
      %v2331 = vld [vmem:[%s1403 + $0x91] sm:$0xff]
      %v2332 = vld [vmem:[%s1403 + $0x99] sm:$0xff]
      %v2333 = vld [vmem:[%s1403 + $0xa9] sm:$0xff]
      %v2334 = vld [vmem:[%s1403 + $0xb1] sm:$0xff]
      %v2335 = vld [vmem:[%s1403 + $0xc1] sm:$0xff]
      %v2336 = vld [vmem:[%s1403 + $0xc9] sm:$0xff]
      %v2337 = vld [vmem:[%s1403 + $0xd9] sm:$0xff]
      %v2338 = vld [vmem:[%s1403 + $0xe1] sm:$0xff]
      %v2339 = vld [vmem:[%s1403 + $0xf1] sm:$0xff]
      %v2340 = vld [vmem:[%s1403 + $0xf9] sm:$0xff]
      %v2341 = vld [vmem:[%s1403 + $0x109] sm:$0xff]
      %v2342 = vld [vmem:[%s1403 + $0x111] sm:$0xff]
      %v2343 = vld [vmem:[%s1403 + $0x121] sm:$0xff]
      %v2344 = vld [vmem:[%s1403 + $0x129] sm:$0xff]
      %v2345 = vld [vmem:[%s1403 + $0x139] sm:$0xff]
      %v2346 = vld [vmem:[%s1403 + $0x141] sm:$0xff]
      %v2347 = vld [vmem:[%s1403 + $0x151] sm:$0xff]
      %v2348 = vld [vmem:[%s1403 + $0x159] sm:$0xff]
      %v2349 = vld [vmem:[%s1403 + $0x169] sm:$0xff]
      %v2350 = vld [vmem:[%s1403 + $0x171] sm:$0xff]
      %v2351 = vld [vmem:[%s1403 + $0x1b1] sm:$0xff]
      %v2352 = vld [vmem:[%s1403 + $0x1b9] sm:$0xff]
      %v2353 = vld [vmem:[%s1403 + $0x1c9] sm:$0xff]
      %v2354 = vld [vmem:[%s1403 + $0x1d1] sm:$0xff]
      %v2355 = vld [vmem:[%s1403 + $0x1e1] sm:$0xff]
      %v2356 = vld [vmem:[%s1403 + $0x1e9] sm:$0xff]
      %v2357 = vld [vmem:[%s1403 + $0x1f9] sm:$0xff]
      %v2358 = vld [vmem:[%s1403 + $0x201] sm:$0xff]
      %v2359 = vld [vmem:[%s1403 + $0x211] sm:$0xff]
      %v2360 = vld [vmem:[%s1403 + $0x219] sm:$0xff]
      %v2361 = vld [vmem:[%s1403 + $0x229] sm:$0xff]
      %v2362 = vld [vmem:[%s1403 + $0x231] sm:$0xff]
      %v2363 = vld [vmem:[%s1403 + $0x241] sm:$0xff]
      %v2364 = vld [vmem:[%s1403 + $0x249] sm:$0xff]
      %v2365 = vld [vmem:[%s1403 + $0x259] sm:$0xff]
      %v2366 = vld [vmem:[%s1403 + $0x261] sm:$0xff]
      %v2367 = vld [vmem:[%s1403 + $0x271] sm:$0xff]
      %v2368 = vld [vmem:[%s1403 + $0x279] sm:$0xff]
      %v2369 = vld [vmem:[%s1403 + $0x289] sm:$0xff]
      %v2370 = vld [vmem:[%s1403 + $0x291] sm:$0xff]
      %v2371 = vld [vmem:[%s1403 + $0x2a1] sm:$0xff]
      %v2372 = vld [vmem:[%s1403 + $0x2a9] sm:$0xff]
      %v2373 = vld [vmem:[%s1403 + $0x2b9] sm:$0xff]
      %v2374 = vld [vmem:[%s1403 + $0x2c1] sm:$0xff]
      %v2375 = vld [vmem:[%s1403 + $0x2d1] sm:$0xff]
      %v2376 = vld [vmem:[%s1403 + $0x2d9] sm:$0xff]
      %v2377 = vld [vmem:[%s1403 + $0x2e9] sm:$0xff]
      %v2378 = vld [vmem:[%s1403 + $0x2f1] sm:$0xff]
      %v2379 = vld [vmem:[%s1403 + $0x301] sm:$0xff]
      %v2380 = vld [vmem:[%s1403 + $0x309] sm:$0xff]
      %v2381 = vld [vmem:[%s1403 + $0x319] sm:$0xff]
      %v2382 = vld [vmem:[%s1403 + $0x321] sm:$0xff]
      %v2383 = vlaneseq
      %v2384 = vshrl.u32 %v2383, 7
      %v2385 = vsub.s32 4, %v2384
      %v2386 = vrot.slane %v1533, %v2385
      %v2387 = vmul.f32 %v2319, %v2386
      %v2388 = vmul.f32 %v2320, %v2386
      %v2389 = vmul.f32 %v2321, %v2386
      %v2390 = vmul.f32 %v2322, %v2386
      %v2391 = vmul.f32 %v2323, %v2386
      %v2392 = vmul.f32 %v2324, %v2386
      %v2393 = vmul.f32 %v2325, %v2386
      %v2394 = vmul.f32 %v2326, %v2386
      %v2395 = vmul.f32 %v2327, %v2386
      %v2396 = vmul.f32 %v2328, %v2386
      %v2397 = vmul.f32 %v2329, %v2386
      %v2398 = vmul.f32 %v2330, %v2386
      %v2399 = vmul.f32 %v2331, %v2386
      %v2400 = vmul.f32 %v2332, %v2386
      %v2401 = vmul.f32 %v2333, %v2386
      %v2402 = vmul.f32 %v2334, %v2386
      %v2403 = vmul.f32 %v2335, %v2386
      %v2404 = vmul.f32 %v2336, %v2386
      %v2405 = vmul.f32 %v2337, %v2386
      %v2406 = vmul.f32 %v2338, %v2386
      %v2407 = vmul.f32 %v2339, %v2386
      %v2408 = vmul.f32 %v2340, %v2386
      %v2409 = vmul.f32 %v2341, %v2386
      %v2410 = vmul.f32 %v2342, %v2386
      %v2411 = vmul.f32 %v2343, %v2386
      %v2412 = vmul.f32 %v2344, %v2386
      %v2413 = vmul.f32 %v2345, %v2386
      %v2414 = vmul.f32 %v2346, %v2386
      %v2415 = vmul.f32 %v2347, %v2386
      %v2416 = vmul.f32 %v2348, %v2386
      %v2417 = vmul.f32 %v2349, %v2386
      %v2418 = vmul.f32 %v2350, %v2386
      %v2419 = vmul.f32 %v2351, %v2386
      %v2420 = vmul.f32 %v2352, %v2386
      %v2421 = vmul.f32 %v2353, %v2386
      %v2422 = vmul.f32 %v2354, %v2386
      %v2423 = vmul.f32 %v2355, %v2386
      %v2424 = vmul.f32 %v2356, %v2386
      %v2425 = vmul.f32 %v2357, %v2386
      %v2426 = vmul.f32 %v2358, %v2386
      %v2427 = vmul.f32 %v2359, %v2386
      %v2428 = vmul.f32 %v2360, %v2386
      %v2429 = vmul.f32 %v2361, %v2386
      %v2430 = vmul.f32 %v2362, %v2386
      %v2431 = vmul.f32 %v2363, %v2386
      %v2432 = vmul.f32 %v2364, %v2386
      %v2433 = vmul.f32 %v2365, %v2386
      %v2434 = vmul.f32 %v2366, %v2386
      %v2435 = vmul.f32 %v2367, %v2386
      %v2436 = vmul.f32 %v2368, %v2386
      %v2437 = vmul.f32 %v2369, %v2386
      %v2438 = vmul.f32 %v2370, %v2386
      %v2439 = vmul.f32 %v2371, %v2386
      %v2440 = vmul.f32 %v2372, %v2386
      %v2441 = vmul.f32 %v2373, %v2386
      %v2442 = vmul.f32 %v2374, %v2386
      %v2443 = vmul.f32 %v2375, %v2386
      %v2444 = vmul.f32 %v2376, %v2386
      %v2445 = vmul.f32 %v2377, %v2386
      %v2446 = vmul.f32 %v2378, %v2386
      %v2447 = vmul.f32 %v2379, %v2386
      %v2448 = vmul.f32 %v2380, %v2386
      %v2449 = vmul.f32 %v2381, %v2386
      %v2450 = vmul.f32 %v2382, %v2386
      %v2451 = vadd.f32 %v2255, %v2387
      %v2452 = vadd.f32 %v2256, %v2388
      %v2453 = vadd.f32 %v2257, %v2389
      %v2454 = vadd.f32 %v2258, %v2390
      %v2455 = vadd.f32 %v2259, %v2391
      %v2456 = vadd.f32 %v2260, %v2392
      %v2457 = vadd.f32 %v2261, %v2393
      %v2458 = vadd.f32 %v2262, %v2394
      %v2459 = vadd.f32 %v2263, %v2395
      %v2460 = vadd.f32 %v2264, %v2396
      %v2461 = vadd.f32 %v2265, %v2397
      %v2462 = vadd.f32 %v2266, %v2398
      %v2463 = vadd.f32 %v2267, %v2399
      %v2464 = vadd.f32 %v2268, %v2400
      %v2465 = vadd.f32 %v2269, %v2401
      %v2466 = vadd.f32 %v2270, %v2402
      %v2467 = vadd.f32 %v2271, %v2403
      %v2468 = vadd.f32 %v2272, %v2404
      %v2469 = vadd.f32 %v2273, %v2405
      %v2470 = vadd.f32 %v2274, %v2406
      %v2471 = vadd.f32 %v2275, %v2407
      %v2472 = vadd.f32 %v2276, %v2408
      %v2473 = vadd.f32 %v2277, %v2409
      %v2474 = vadd.f32 %v2278, %v2410
      %v2475 = vadd.f32 %v2279, %v2411
      %v2476 = vadd.f32 %v2280, %v2412
      %v2477 = vadd.f32 %v2281, %v2413
      %v2478 = vadd.f32 %v2282, %v2414
      %v2479 = vadd.f32 %v2283, %v2415
      %v2480 = vadd.f32 %v2284, %v2416
      %v2481 = vadd.f32 %v2285, %v2417
      %v2482 = vadd.f32 %v2286, %v2418
      %v2483 = vadd.f32 %v2287, %v2419
      %v2484 = vadd.f32 %v2288, %v2420
      %v2485 = vadd.f32 %v2289, %v2421
      %v2486 = vadd.f32 %v2290, %v2422
      %v2487 = vadd.f32 %v2291, %v2423
      %v2488 = vadd.f32 %v2292, %v2424
      %v2489 = vadd.f32 %v2293, %v2425
      %v2490 = vadd.f32 %v2294, %v2426
      %v2491 = vadd.f32 %v2295, %v2427
      %v2492 = vadd.f32 %v2296, %v2428
      %v2493 = vadd.f32 %v2297, %v2429
      %v2494 = vadd.f32 %v2298, %v2430
      %v2495 = vadd.f32 %v2299, %v2431
      %v2496 = vadd.f32 %v2300, %v2432
      %v2497 = vadd.f32 %v2301, %v2433
      %v2498 = vadd.f32 %v2302, %v2434
      %v2499 = vadd.f32 %v2303, %v2435
      %v2500 = vadd.f32 %v2304, %v2436
      %v2501 = vadd.f32 %v2305, %v2437
      %v2502 = vadd.f32 %v2306, %v2438
      %v2503 = vadd.f32 %v2307, %v2439
      %v2504 = vadd.f32 %v2308, %v2440
      %v2505 = vadd.f32 %v2309, %v2441
      %v2506 = vadd.f32 %v2310, %v2442
      %v2507 = vadd.f32 %v2311, %v2443
      %v2508 = vadd.f32 %v2312, %v2444
      %v2509 = vadd.f32 %v2313, %v2445
      %v2510 = vadd.f32 %v2314, %v2446
      %v2511 = vadd.f32 %v2315, %v2447
      %v2512 = vadd.f32 %v2316, %v2448
      %v2513 = vadd.f32 %v2317, %v2449
      %v2514 = vadd.f32 %v2318, %v2450
      %v2515 = vld [vmem:[%s1403 + $0x2] sm:$0xff]
      %v2516 = vld [vmem:[%s1403 + $0xa] sm:$0xff]
      %v2517 = vld [vmem:[%s1403 + $0x1a] sm:$0xff]
      %v2518 = vld [vmem:[%s1403 + $0x22] sm:$0xff]
      %v2519 = vld [vmem:[%s1403 + $0x32] sm:$0xff]
      %v2520 = vld [vmem:[%s1403 + $0x3a] sm:$0xff]
      %v2521 = vld [vmem:[%s1403 + $0x4a] sm:$0xff]
      %v2522 = vld [vmem:[%s1403 + $0x52] sm:$0xff]
      %v2523 = vld [vmem:[%s1403 + $0x62] sm:$0xff]
      %v2524 = vld [vmem:[%s1403 + $0x6a] sm:$0xff]
      %v2525 = vld [vmem:[%s1403 + $0x7a] sm:$0xff]
      %v2526 = vld [vmem:[%s1403 + $0x82] sm:$0xff]
      %v2527 = vld [vmem:[%s1403 + $0x92] sm:$0xff]
      %v2528 = vld [vmem:[%s1403 + $0x9a] sm:$0xff]
      %v2529 = vld [vmem:[%s1403 + $0xaa] sm:$0xff]
      %v2530 = vld [vmem:[%s1403 + $0xb2] sm:$0xff]
      %v2531 = vld [vmem:[%s1403 + $0xc2] sm:$0xff]
      %v2532 = vld [vmem:[%s1403 + $0xca] sm:$0xff]
      %v2533 = vld [vmem:[%s1403 + $0xda] sm:$0xff]
      %v2534 = vld [vmem:[%s1403 + $0xe2] sm:$0xff]
      %v2535 = vld [vmem:[%s1403 + $0xf2] sm:$0xff]
      %v2536 = vld [vmem:[%s1403 + $0xfa] sm:$0xff]
      %v2537 = vld [vmem:[%s1403 + $0x10a] sm:$0xff]
      %v2538 = vld [vmem:[%s1403 + $0x112] sm:$0xff]
      %v2539 = vld [vmem:[%s1403 + $0x122] sm:$0xff]
      %v2540 = vld [vmem:[%s1403 + $0x12a] sm:$0xff]
      %v2541 = vld [vmem:[%s1403 + $0x13a] sm:$0xff]
      %v2542 = vld [vmem:[%s1403 + $0x142] sm:$0xff]
      %v2543 = vld [vmem:[%s1403 + $0x152] sm:$0xff]
      %v2544 = vld [vmem:[%s1403 + $0x15a] sm:$0xff]
      %v2545 = vld [vmem:[%s1403 + $0x16a] sm:$0xff]
      %v2546 = vld [vmem:[%s1403 + $0x172] sm:$0xff]
      %v2547 = vld [vmem:[%s1403 + $0x1b2] sm:$0xff]
      %v2548 = vld [vmem:[%s1403 + $0x1ba] sm:$0xff]
      %v2549 = vld [vmem:[%s1403 + $0x1ca] sm:$0xff]
      %v2550 = vld [vmem:[%s1403 + $0x1d2] sm:$0xff]
      %v2551 = vld [vmem:[%s1403 + $0x1e2] sm:$0xff]
      %v2552 = vld [vmem:[%s1403 + $0x1ea] sm:$0xff]
      %v2553 = vld [vmem:[%s1403 + $0x1fa] sm:$0xff]
      %v2554 = vld [vmem:[%s1403 + $0x202] sm:$0xff]
      %v2555 = vld [vmem:[%s1403 + $0x212] sm:$0xff]
      %v2556 = vld [vmem:[%s1403 + $0x21a] sm:$0xff]
      %v2557 = vld [vmem:[%s1403 + $0x22a] sm:$0xff]
      %v2558 = vld [vmem:[%s1403 + $0x232] sm:$0xff]
      %v2559 = vld [vmem:[%s1403 + $0x242] sm:$0xff]
      %v2560 = vld [vmem:[%s1403 + $0x24a] sm:$0xff]
      %v2561 = vld [vmem:[%s1403 + $0x25a] sm:$0xff]
      %v2562 = vld [vmem:[%s1403 + $0x262] sm:$0xff]
      %v2563 = vld [vmem:[%s1403 + $0x272] sm:$0xff]
      %v2564 = vld [vmem:[%s1403 + $0x27a] sm:$0xff]
      %v2565 = vld [vmem:[%s1403 + $0x28a] sm:$0xff]
      %v2566 = vld [vmem:[%s1403 + $0x292] sm:$0xff]
      %v2567 = vld [vmem:[%s1403 + $0x2a2] sm:$0xff]
      %v2568 = vld [vmem:[%s1403 + $0x2aa] sm:$0xff]
      %v2569 = vld [vmem:[%s1403 + $0x2ba] sm:$0xff]
      %v2570 = vld [vmem:[%s1403 + $0x2c2] sm:$0xff]
      %v2571 = vld [vmem:[%s1403 + $0x2d2] sm:$0xff]
      %v2572 = vld [vmem:[%s1403 + $0x2da] sm:$0xff]
      %v2573 = vld [vmem:[%s1403 + $0x2ea] sm:$0xff]
      %v2574 = vld [vmem:[%s1403 + $0x2f2] sm:$0xff]
      %v2575 = vld [vmem:[%s1403 + $0x302] sm:$0xff]
      %v2576 = vld [vmem:[%s1403 + $0x30a] sm:$0xff]
      %v2577 = vld [vmem:[%s1403 + $0x31a] sm:$0xff]
      %v2578 = vld [vmem:[%s1403 + $0x322] sm:$0xff]
      %v2579 = vlaneseq
      %v2580 = vshrl.u32 %v2579, 7
      %v2581 = vsub.s32 5, %v2580
      %v2582 = vrot.slane %v1533, %v2581
      %v2583 = vmul.f32 %v2515, %v2582
      %v2584 = vmul.f32 %v2516, %v2582
      %v2585 = vmul.f32 %v2517, %v2582
      %v2586 = vmul.f32 %v2518, %v2582
      %v2587 = vmul.f32 %v2519, %v2582
      %v2588 = vmul.f32 %v2520, %v2582
      %v2589 = vmul.f32 %v2521, %v2582
      %v2590 = vmul.f32 %v2522, %v2582
      %v2591 = vmul.f32 %v2523, %v2582
      %v2592 = vmul.f32 %v2524, %v2582
      %v2593 = vmul.f32 %v2525, %v2582
      %v2594 = vmul.f32 %v2526, %v2582
      %v2595 = vmul.f32 %v2527, %v2582
      %v2596 = vmul.f32 %v2528, %v2582
      %v2597 = vmul.f32 %v2529, %v2582
      %v2598 = vmul.f32 %v2530, %v2582
      %v2599 = vmul.f32 %v2531, %v2582
      %v2600 = vmul.f32 %v2532, %v2582
      %v2601 = vmul.f32 %v2533, %v2582
      %v2602 = vmul.f32 %v2534, %v2582
      %v2603 = vmul.f32 %v2535, %v2582
      %v2604 = vmul.f32 %v2536, %v2582
      %v2605 = vmul.f32 %v2537, %v2582
      %v2606 = vmul.f32 %v2538, %v2582
      %v2607 = vmul.f32 %v2539, %v2582
      %v2608 = vmul.f32 %v2540, %v2582
      %v2609 = vmul.f32 %v2541, %v2582
      %v2610 = vmul.f32 %v2542, %v2582
      %v2611 = vmul.f32 %v2543, %v2582
      %v2612 = vmul.f32 %v2544, %v2582
      %v2613 = vmul.f32 %v2545, %v2582
      %v2614 = vmul.f32 %v2546, %v2582
      %v2615 = vmul.f32 %v2547, %v2582
      %v2616 = vmul.f32 %v2548, %v2582
      %v2617 = vmul.f32 %v2549, %v2582
      %v2618 = vmul.f32 %v2550, %v2582
      %v2619 = vmul.f32 %v2551, %v2582
      %v2620 = vmul.f32 %v2552, %v2582
      %v2621 = vmul.f32 %v2553, %v2582
      %v2622 = vmul.f32 %v2554, %v2582
      %v2623 = vmul.f32 %v2555, %v2582
      %v2624 = vmul.f32 %v2556, %v2582
      %v2625 = vmul.f32 %v2557, %v2582
      %v2626 = vmul.f32 %v2558, %v2582
      %v2627 = vmul.f32 %v2559, %v2582
      %v2628 = vmul.f32 %v2560, %v2582
      %v2629 = vmul.f32 %v2561, %v2582
      %v2630 = vmul.f32 %v2562, %v2582
      %v2631 = vmul.f32 %v2563, %v2582
      %v2632 = vmul.f32 %v2564, %v2582
      %v2633 = vmul.f32 %v2565, %v2582
      %v2634 = vmul.f32 %v2566, %v2582
      %v2635 = vmul.f32 %v2567, %v2582
      %v2636 = vmul.f32 %v2568, %v2582
      %v2637 = vmul.f32 %v2569, %v2582
      %v2638 = vmul.f32 %v2570, %v2582
      %v2639 = vmul.f32 %v2571, %v2582
      %v2640 = vmul.f32 %v2572, %v2582
      %v2641 = vmul.f32 %v2573, %v2582
      %v2642 = vmul.f32 %v2574, %v2582
      %v2643 = vmul.f32 %v2575, %v2582
      %v2644 = vmul.f32 %v2576, %v2582
      %v2645 = vmul.f32 %v2577, %v2582
      %v2646 = vmul.f32 %v2578, %v2582
      %v2647 = vadd.f32 %v2451, %v2583
      %v2648 = vadd.f32 %v2452, %v2584
      %v2649 = vadd.f32 %v2453, %v2585
      %v2650 = vadd.f32 %v2454, %v2586
      %v2651 = vadd.f32 %v2455, %v2587
      %v2652 = vadd.f32 %v2456, %v2588
      %v2653 = vadd.f32 %v2457, %v2589
      %v2654 = vadd.f32 %v2458, %v2590
      %v2655 = vadd.f32 %v2459, %v2591
      %v2656 = vadd.f32 %v2460, %v2592
      %v2657 = vadd.f32 %v2461, %v2593
      %v2658 = vadd.f32 %v2462, %v2594
      %v2659 = vadd.f32 %v2463, %v2595
      %v2660 = vadd.f32 %v2464, %v2596
      %v2661 = vadd.f32 %v2465, %v2597
      %v2662 = vadd.f32 %v2466, %v2598
      %v2663 = vadd.f32 %v2467, %v2599
      %v2664 = vadd.f32 %v2468, %v2600
      %v2665 = vadd.f32 %v2469, %v2601
      %v2666 = vadd.f32 %v2470, %v2602
      %v2667 = vadd.f32 %v2471, %v2603
      %v2668 = vadd.f32 %v2472, %v2604
      %v2669 = vadd.f32 %v2473, %v2605
      %v2670 = vadd.f32 %v2474, %v2606
      %v2671 = vadd.f32 %v2475, %v2607
      %v2672 = vadd.f32 %v2476, %v2608
      %v2673 = vadd.f32 %v2477, %v2609
      %v2674 = vadd.f32 %v2478, %v2610
      %v2675 = vadd.f32 %v2479, %v2611
      %v2676 = vadd.f32 %v2480, %v2612
      %v2677 = vadd.f32 %v2481, %v2613
      %v2678 = vadd.f32 %v2482, %v2614
      %v2679 = vadd.f32 %v2483, %v2615
      %v2680 = vadd.f32 %v2484, %v2616
      %v2681 = vadd.f32 %v2485, %v2617
      %v2682 = vadd.f32 %v2486, %v2618
      %v2683 = vadd.f32 %v2487, %v2619
      %v2684 = vadd.f32 %v2488, %v2620
      %v2685 = vadd.f32 %v2489, %v2621
      %v2686 = vadd.f32 %v2490, %v2622
      %v2687 = vadd.f32 %v2491, %v2623
      %v2688 = vadd.f32 %v2492, %v2624
      %v2689 = vadd.f32 %v2493, %v2625
      %v2690 = vadd.f32 %v2494, %v2626
      %v2691 = vadd.f32 %v2495, %v2627
      %v2692 = vadd.f32 %v2496, %v2628
      %v2693 = vadd.f32 %v2497, %v2629
      %v2694 = vadd.f32 %v2498, %v2630
      %v2695 = vadd.f32 %v2499, %v2631
      %v2696 = vadd.f32 %v2500, %v2632
      %v2697 = vadd.f32 %v2501, %v2633
      %v2698 = vadd.f32 %v2502, %v2634
      %v2699 = vadd.f32 %v2503, %v2635
      %v2700 = vadd.f32 %v2504, %v2636
      %v2701 = vadd.f32 %v2505, %v2637
      %v2702 = vadd.f32 %v2506, %v2638
      %v2703 = vadd.f32 %v2507, %v2639
      %v2704 = vadd.f32 %v2508, %v2640
      %v2705 = vadd.f32 %v2509, %v2641
      %v2706 = vadd.f32 %v2510, %v2642
      %v2707 = vadd.f32 %v2511, %v2643
      %v2708 = vadd.f32 %v2512, %v2644
      %v2709 = vadd.f32 %v2513, %v2645
      %v2710 = vadd.f32 %v2514, %v2646
      %s2711 = scalar_lea.vmem [#allocation2], 48
      %v2712 = vld [vmem:[%s2711] sm:$0xff]
      %v2713 = vld [vmem:[%s2711 + $0x8] sm:$0xff]
      %v2714 = vld [vmem:[%s2711 + $0x18] sm:$0xff]
      %v2715 = vld [vmem:[%s2711 + $0x20] sm:$0xff]
      %v2716 = vld [vmem:[%s2711 + $0x30] sm:$0xff]
      %v2717 = vld [vmem:[%s2711 + $0x38] sm:$0xff]
      %v2718 = vld [vmem:[%s2711 + $0x48] sm:$0xff]
      %v2719 = vld [vmem:[%s2711 + $0x50] sm:$0xff]
      %v2720 = vld [vmem:[%s2711 + $0x60] sm:$0xff]
      %v2721 = vld [vmem:[%s2711 + $0x68] sm:$0xff]
      %v2722 = vld [vmem:[%s2711 + $0x78] sm:$0xff]
      %v2723 = vld [vmem:[%s2711 + $0x80] sm:$0xff]
      %v2724 = vld [vmem:[%s2711 + $0x90] sm:$0xff]
      %v2725 = vld [vmem:[%s2711 + $0x98] sm:$0xff]
      %v2726 = vld [vmem:[%s2711 + $0xa8] sm:$0xff]
      %v2727 = vld [vmem:[%s2711 + $0xb0] sm:$0xff]
      %v2728 = vld [vmem:[%s2711 + $0xc0] sm:$0xff]
      %v2729 = vld [vmem:[%s2711 + $0xc8] sm:$0xff]
      %v2730 = vld [vmem:[%s2711 + $0xd8] sm:$0xff]
      %v2731 = vld [vmem:[%s2711 + $0xe0] sm:$0xff]
      %v2732 = vld [vmem:[%s2711 + $0xf0] sm:$0xff]
      %v2733 = vld [vmem:[%s2711 + $0xf8] sm:$0xff]
      %v2734 = vld [vmem:[%s2711 + $0x108] sm:$0xff]
      %v2735 = vld [vmem:[%s2711 + $0x110] sm:$0xff]
      %v2736 = vld [vmem:[%s2711 + $0x120] sm:$0xff]
      %v2737 = vld [vmem:[%s2711 + $0x128] sm:$0xff]
      %v2738 = vld [vmem:[%s2711 + $0x138] sm:$0xff]
      %v2739 = vld [vmem:[%s2711 + $0x140] sm:$0xff]
      %v2740 = vld [vmem:[%s2711 + $0x150] sm:$0xff]
      %v2741 = vld [vmem:[%s2711 + $0x158] sm:$0xff]
      %v2742 = vld [vmem:[%s2711 + $0x168] sm:$0xff]
      %v2743 = vld [vmem:[%s2711 + $0x170] sm:$0xff]
      %v2744 = vld [vmem:[%s2711 + $0x1b0] sm:$0xff]
      %v2745 = vld [vmem:[%s2711 + $0x1b8] sm:$0xff]
      %v2746 = vld [vmem:[%s2711 + $0x1c8] sm:$0xff]
      %v2747 = vld [vmem:[%s2711 + $0x1d0] sm:$0xff]
      %v2748 = vld [vmem:[%s2711 + $0x1e0] sm:$0xff]
      %v2749 = vld [vmem:[%s2711 + $0x1e8] sm:$0xff]
      %v2750 = vld [vmem:[%s2711 + $0x1f8] sm:$0xff]
      %v2751 = vld [vmem:[%s2711 + $0x200] sm:$0xff]
      %v2752 = vld [vmem:[%s2711 + $0x210] sm:$0xff]
      %v2753 = vld [vmem:[%s2711 + $0x218] sm:$0xff]
      %v2754 = vld [vmem:[%s2711 + $0x228] sm:$0xff]
      %v2755 = vld [vmem:[%s2711 + $0x230] sm:$0xff]
      %v2756 = vld [vmem:[%s2711 + $0x240] sm:$0xff]
      %v2757 = vld [vmem:[%s2711 + $0x248] sm:$0xff]
      %v2758 = vld [vmem:[%s2711 + $0x258] sm:$0xff]
      %v2759 = vld [vmem:[%s2711 + $0x260] sm:$0xff]
      %v2760 = vld [vmem:[%s2711 + $0x270] sm:$0xff]
      %v2761 = vld [vmem:[%s2711 + $0x278] sm:$0xff]
      %v2762 = vld [vmem:[%s2711 + $0x288] sm:$0xff]
      %v2763 = vld [vmem:[%s2711 + $0x290] sm:$0xff]
      %v2764 = vld [vmem:[%s2711 + $0x2a0] sm:$0xff]
      %v2765 = vld [vmem:[%s2711 + $0x2a8] sm:$0xff]
      %v2766 = vld [vmem:[%s2711 + $0x2b8] sm:$0xff]
      %v2767 = vld [vmem:[%s2711 + $0x2c0] sm:$0xff]
      %v2768 = vld [vmem:[%s2711 + $0x2d0] sm:$0xff]
      %v2769 = vld [vmem:[%s2711 + $0x2d8] sm:$0xff]
      %v2770 = vld [vmem:[%s2711 + $0x2e8] sm:$0xff]
      %v2771 = vld [vmem:[%s2711 + $0x2f0] sm:$0xff]
      %v2772 = vld [vmem:[%s2711 + $0x300] sm:$0xff]
      %v2773 = vld [vmem:[%s2711 + $0x308] sm:$0xff]
      %v2774 = vld [vmem:[%s2711 + $0x318] sm:$0xff]
      %v2775 = vld [vmem:[%s2711 + $0x320] sm:$0xff]
      %v2776 = vlaneseq
      %v2777 = vshrl.u32 %v2776, 7
      %v2778 = vsub.s32 6, %v2777
      %v2779 = vrot.slane %v1533, %v2778
      %v2780 = vmul.f32 %v2712, %v2779
      %v2781 = vmul.f32 %v2713, %v2779
      %v2782 = vmul.f32 %v2714, %v2779
      %v2783 = vmul.f32 %v2715, %v2779
      %v2784 = vmul.f32 %v2716, %v2779
      %v2785 = vmul.f32 %v2717, %v2779
      %v2786 = vmul.f32 %v2718, %v2779
      %v2787 = vmul.f32 %v2719, %v2779
      %v2788 = vmul.f32 %v2720, %v2779
      %v2789 = vmul.f32 %v2721, %v2779
      %v2790 = vmul.f32 %v2722, %v2779
      %v2791 = vmul.f32 %v2723, %v2779
      %v2792 = vmul.f32 %v2724, %v2779
      %v2793 = vmul.f32 %v2725, %v2779
      %v2794 = vmul.f32 %v2726, %v2779
      %v2795 = vmul.f32 %v2727, %v2779
      %v2796 = vmul.f32 %v2728, %v2779
      %v2797 = vmul.f32 %v2729, %v2779
      %v2798 = vmul.f32 %v2730, %v2779
      %v2799 = vmul.f32 %v2731, %v2779
      %v2800 = vmul.f32 %v2732, %v2779
      %v2801 = vmul.f32 %v2733, %v2779
      %v2802 = vmul.f32 %v2734, %v2779
      %v2803 = vmul.f32 %v2735, %v2779
      %v2804 = vmul.f32 %v2736, %v2779
      %v2805 = vmul.f32 %v2737, %v2779
      %v2806 = vmul.f32 %v2738, %v2779
      %v2807 = vmul.f32 %v2739, %v2779
      %v2808 = vmul.f32 %v2740, %v2779
      %v2809 = vmul.f32 %v2741, %v2779
      %v2810 = vmul.f32 %v2742, %v2779
      %v2811 = vmul.f32 %v2743, %v2779
      %v2812 = vmul.f32 %v2744, %v2779
      %v2813 = vmul.f32 %v2745, %v2779
      %v2814 = vmul.f32 %v2746, %v2779
      %v2815 = vmul.f32 %v2747, %v2779
      %v2816 = vmul.f32 %v2748, %v2779
      %v2817 = vmul.f32 %v2749, %v2779
      %v2818 = vmul.f32 %v2750, %v2779
      %v2819 = vmul.f32 %v2751, %v2779
      %v2820 = vmul.f32 %v2752, %v2779
      %v2821 = vmul.f32 %v2753, %v2779
      %v2822 = vmul.f32 %v2754, %v2779
      %v2823 = vmul.f32 %v2755, %v2779
      %v2824 = vmul.f32 %v2756, %v2779
      %v2825 = vmul.f32 %v2757, %v2779
      %v2826 = vmul.f32 %v2758, %v2779
      %v2827 = vmul.f32 %v2759, %v2779
      %v2828 = vmul.f32 %v2760, %v2779
      %v2829 = vmul.f32 %v2761, %v2779
      %v2830 = vmul.f32 %v2762, %v2779
      %v2831 = vmul.f32 %v2763, %v2779
      %v2832 = vmul.f32 %v2764, %v2779
      %v2833 = vmul.f32 %v2765, %v2779
      %v2834 = vmul.f32 %v2766, %v2779
      %v2835 = vmul.f32 %v2767, %v2779
      %v2836 = vmul.f32 %v2768, %v2779
      %v2837 = vmul.f32 %v2769, %v2779
      %v2838 = vmul.f32 %v2770, %v2779
      %v2839 = vmul.f32 %v2771, %v2779
      %v2840 = vmul.f32 %v2772, %v2779
      %v2841 = vmul.f32 %v2773, %v2779
      %v2842 = vmul.f32 %v2774, %v2779
      %v2843 = vmul.f32 %v2775, %v2779
      %v2844 = vadd.f32 %v2647, %v2780
      %v2845 = vadd.f32 %v2648, %v2781
      %v2846 = vadd.f32 %v2649, %v2782
      %v2847 = vadd.f32 %v2650, %v2783
      %v2848 = vadd.f32 %v2651, %v2784
      %v2849 = vadd.f32 %v2652, %v2785
      %v2850 = vadd.f32 %v2653, %v2786
      %v2851 = vadd.f32 %v2654, %v2787
      %v2852 = vadd.f32 %v2655, %v2788
      %v2853 = vadd.f32 %v2656, %v2789
      %v2854 = vadd.f32 %v2657, %v2790
      %v2855 = vadd.f32 %v2658, %v2791
      %v2856 = vadd.f32 %v2659, %v2792
      %v2857 = vadd.f32 %v2660, %v2793
      %v2858 = vadd.f32 %v2661, %v2794
      %v2859 = vadd.f32 %v2662, %v2795
      %v2860 = vadd.f32 %v2663, %v2796
      %v2861 = vadd.f32 %v2664, %v2797
      %v2862 = vadd.f32 %v2665, %v2798
      %v2863 = vadd.f32 %v2666, %v2799
      %v2864 = vadd.f32 %v2667, %v2800
      %v2865 = vadd.f32 %v2668, %v2801
      %v2866 = vadd.f32 %v2669, %v2802
      %v2867 = vadd.f32 %v2670, %v2803
      %v2868 = vadd.f32 %v2671, %v2804
      %v2869 = vadd.f32 %v2672, %v2805
      %v2870 = vadd.f32 %v2673, %v2806
      %v2871 = vadd.f32 %v2674, %v2807
      %v2872 = vadd.f32 %v2675, %v2808
      %v2873 = vadd.f32 %v2676, %v2809
      %v2874 = vadd.f32 %v2677, %v2810
      %v2875 = vadd.f32 %v2678, %v2811
      %v2876 = vadd.f32 %v2679, %v2812
      %v2877 = vadd.f32 %v2680, %v2813
      %v2878 = vadd.f32 %v2681, %v2814
      %v2879 = vadd.f32 %v2682, %v2815
      %v2880 = vadd.f32 %v2683, %v2816
      %v2881 = vadd.f32 %v2684, %v2817
      %v2882 = vadd.f32 %v2685, %v2818
      %v2883 = vadd.f32 %v2686, %v2819
      %v2884 = vadd.f32 %v2687, %v2820
      %v2885 = vadd.f32 %v2688, %v2821
      %v2886 = vadd.f32 %v2689, %v2822
      %v2887 = vadd.f32 %v2690, %v2823
      %v2888 = vadd.f32 %v2691, %v2824
      %v2889 = vadd.f32 %v2692, %v2825
      %v2890 = vadd.f32 %v2693, %v2826
      %v2891 = vadd.f32 %v2694, %v2827
      %v2892 = vadd.f32 %v2695, %v2828
      %v2893 = vadd.f32 %v2696, %v2829
      %v2894 = vadd.f32 %v2697, %v2830
      %v2895 = vadd.f32 %v2698, %v2831
      %v2896 = vadd.f32 %v2699, %v2832
      %v2897 = vadd.f32 %v2700, %v2833
      %v2898 = vadd.f32 %v2701, %v2834
      %v2899 = vadd.f32 %v2702, %v2835
      %v2900 = vadd.f32 %v2703, %v2836
      %v2901 = vadd.f32 %v2704, %v2837
      %v2902 = vadd.f32 %v2705, %v2838
      %v2903 = vadd.f32 %v2706, %v2839
      %v2904 = vadd.f32 %v2707, %v2840
      %v2905 = vadd.f32 %v2708, %v2841
      %v2906 = vadd.f32 %v2709, %v2842
      %v2907 = vadd.f32 %v2710, %v2843
      %v2908 = vld [vmem:[%s2711 + $0x1] sm:$0xff]
      %v2909 = vld [vmem:[%s2711 + $0x9] sm:$0xff]
      %v2910 = vld [vmem:[%s2711 + $0x19] sm:$0xff]
      %v2911 = vld [vmem:[%s2711 + $0x21] sm:$0xff]
      %v2912 = vld [vmem:[%s2711 + $0x31] sm:$0xff]
      %v2913 = vld [vmem:[%s2711 + $0x39] sm:$0xff]
      %v2914 = vld [vmem:[%s2711 + $0x49] sm:$0xff]
      %v2915 = vld [vmem:[%s2711 + $0x51] sm:$0xff]
      %v2916 = vld [vmem:[%s2711 + $0x61] sm:$0xff]
      %v2917 = vld [vmem:[%s2711 + $0x69] sm:$0xff]
      %v2918 = vld [vmem:[%s2711 + $0x79] sm:$0xff]
      %v2919 = vld [vmem:[%s2711 + $0x81] sm:$0xff]
      %v2920 = vld [vmem:[%s2711 + $0x91] sm:$0xff]
      %v2921 = vld [vmem:[%s2711 + $0x99] sm:$0xff]
      %v2922 = vld [vmem:[%s2711 + $0xa9] sm:$0xff]
      %v2923 = vld [vmem:[%s2711 + $0xb1] sm:$0xff]
      %v2924 = vld [vmem:[%s2711 + $0xc1] sm:$0xff]
      %v2925 = vld [vmem:[%s2711 + $0xc9] sm:$0xff]
      %v2926 = vld [vmem:[%s2711 + $0xd9] sm:$0xff]
      %v2927 = vld [vmem:[%s2711 + $0xe1] sm:$0xff]
      %v2928 = vld [vmem:[%s2711 + $0xf1] sm:$0xff]
      %v2929 = vld [vmem:[%s2711 + $0xf9] sm:$0xff]
      %v2930 = vld [vmem:[%s2711 + $0x109] sm:$0xff]
      %v2931 = vld [vmem:[%s2711 + $0x111] sm:$0xff]
      %v2932 = vld [vmem:[%s2711 + $0x121] sm:$0xff]
      %v2933 = vld [vmem:[%s2711 + $0x129] sm:$0xff]
      %v2934 = vld [vmem:[%s2711 + $0x139] sm:$0xff]
      %v2935 = vld [vmem:[%s2711 + $0x141] sm:$0xff]
      %v2936 = vld [vmem:[%s2711 + $0x151] sm:$0xff]
      %v2937 = vld [vmem:[%s2711 + $0x159] sm:$0xff]
      %v2938 = vld [vmem:[%s2711 + $0x169] sm:$0xff]
      %v2939 = vld [vmem:[%s2711 + $0x171] sm:$0xff]
      %v2940 = vld [vmem:[%s2711 + $0x1b1] sm:$0xff]
      %v2941 = vld [vmem:[%s2711 + $0x1b9] sm:$0xff]
      %v2942 = vld [vmem:[%s2711 + $0x1c9] sm:$0xff]
      %v2943 = vld [vmem:[%s2711 + $0x1d1] sm:$0xff]
      %v2944 = vld [vmem:[%s2711 + $0x1e1] sm:$0xff]
      %v2945 = vld [vmem:[%s2711 + $0x1e9] sm:$0xff]
      %v2946 = vld [vmem:[%s2711 + $0x1f9] sm:$0xff]
      %v2947 = vld [vmem:[%s2711 + $0x201] sm:$0xff]
      %v2948 = vld [vmem:[%s2711 + $0x211] sm:$0xff]
      %v2949 = vld [vmem:[%s2711 + $0x219] sm:$0xff]
      %v2950 = vld [vmem:[%s2711 + $0x229] sm:$0xff]
      %v2951 = vld [vmem:[%s2711 + $0x231] sm:$0xff]
      %v2952 = vld [vmem:[%s2711 + $0x241] sm:$0xff]
      %v2953 = vld [vmem:[%s2711 + $0x249] sm:$0xff]
      %v2954 = vld [vmem:[%s2711 + $0x259] sm:$0xff]
      %v2955 = vld [vmem:[%s2711 + $0x261] sm:$0xff]
      %v2956 = vld [vmem:[%s2711 + $0x271] sm:$0xff]
      %v2957 = vld [vmem:[%s2711 + $0x279] sm:$0xff]
      %v2958 = vld [vmem:[%s2711 + $0x289] sm:$0xff]
      %v2959 = vld [vmem:[%s2711 + $0x291] sm:$0xff]
      %v2960 = vld [vmem:[%s2711 + $0x2a1] sm:$0xff]
      %v2961 = vld [vmem:[%s2711 + $0x2a9] sm:$0xff]
      %v2962 = vld [vmem:[%s2711 + $0x2b9] sm:$0xff]
      %v2963 = vld [vmem:[%s2711 + $0x2c1] sm:$0xff]
      %v2964 = vld [vmem:[%s2711 + $0x2d1] sm:$0xff]
      %v2965 = vld [vmem:[%s2711 + $0x2d9] sm:$0xff]
      %v2966 = vld [vmem:[%s2711 + $0x2e9] sm:$0xff]
      %v2967 = vld [vmem:[%s2711 + $0x2f1] sm:$0xff]
      %v2968 = vld [vmem:[%s2711 + $0x301] sm:$0xff]
      %v2969 = vld [vmem:[%s2711 + $0x309] sm:$0xff]
      %v2970 = vld [vmem:[%s2711 + $0x319] sm:$0xff]
      %v2971 = vld [vmem:[%s2711 + $0x321] sm:$0xff]
      %v2972 = vlaneseq
      %v2973 = vshrl.u32 %v2972, 7
      %v2974 = vsub.s32 7, %v2973
      %v2975 = vrot.slane %v1533, %v2974
      %v2976 = vmul.f32 %v2908, %v2975
      %v2977 = vmul.f32 %v2909, %v2975
      %v2978 = vmul.f32 %v2910, %v2975
      %v2979 = vmul.f32 %v2911, %v2975
      %v2980 = vmul.f32 %v2912, %v2975
      %v2981 = vmul.f32 %v2913, %v2975
      %v2982 = vmul.f32 %v2914, %v2975
      %v2983 = vmul.f32 %v2915, %v2975
      %v2984 = vmul.f32 %v2916, %v2975
      %v2985 = vmul.f32 %v2917, %v2975
      %v2986 = vmul.f32 %v2918, %v2975
      %v2987 = vmul.f32 %v2919, %v2975
      %v2988 = vmul.f32 %v2920, %v2975
      %v2989 = vmul.f32 %v2921, %v2975
      %v2990 = vmul.f32 %v2922, %v2975
      %v2991 = vmul.f32 %v2923, %v2975
      %v2992 = vmul.f32 %v2924, %v2975
      %v2993 = vmul.f32 %v2925, %v2975
      %v2994 = vmul.f32 %v2926, %v2975
      %v2995 = vmul.f32 %v2927, %v2975
      %v2996 = vmul.f32 %v2928, %v2975
      %v2997 = vmul.f32 %v2929, %v2975
      %v2998 = vmul.f32 %v2930, %v2975
      %v2999 = vmul.f32 %v2931, %v2975
      %v3000 = vmul.f32 %v2932, %v2975
      %v3001 = vmul.f32 %v2933, %v2975
      %v3002 = vmul.f32 %v2934, %v2975
      %v3003 = vmul.f32 %v2935, %v2975
      %v3004 = vmul.f32 %v2936, %v2975
      %v3005 = vmul.f32 %v2937, %v2975
      %v3006 = vmul.f32 %v2938, %v2975
      %v3007 = vmul.f32 %v2939, %v2975
      %v3008 = vmul.f32 %v2940, %v2975
      %v3009 = vmul.f32 %v2941, %v2975
      %v3010 = vmul.f32 %v2942, %v2975
      %v3011 = vmul.f32 %v2943, %v2975
      %v3012 = vmul.f32 %v2944, %v2975
      %v3013 = vmul.f32 %v2945, %v2975
      %v3014 = vmul.f32 %v2946, %v2975
      %v3015 = vmul.f32 %v2947, %v2975
      %v3016 = vmul.f32 %v2948, %v2975
      %v3017 = vmul.f32 %v2949, %v2975
      %v3018 = vmul.f32 %v2950, %v2975
      %v3019 = vmul.f32 %v2951, %v2975
      %v3020 = vmul.f32 %v2952, %v2975
      %v3021 = vmul.f32 %v2953, %v2975
      %v3022 = vmul.f32 %v2954, %v2975
      %v3023 = vmul.f32 %v2955, %v2975
      %v3024 = vmul.f32 %v2956, %v2975
      %v3025 = vmul.f32 %v2957, %v2975
      %v3026 = vmul.f32 %v2958, %v2975
      %v3027 = vmul.f32 %v2959, %v2975
      %v3028 = vmul.f32 %v2960, %v2975
      %v3029 = vmul.f32 %v2961, %v2975
      %v3030 = vmul.f32 %v2962, %v2975
      %v3031 = vmul.f32 %v2963, %v2975
      %v3032 = vmul.f32 %v2964, %v2975
      %v3033 = vmul.f32 %v2965, %v2975
      %v3034 = vmul.f32 %v2966, %v2975
      %v3035 = vmul.f32 %v2967, %v2975
      %v3036 = vmul.f32 %v2968, %v2975
      %v3037 = vmul.f32 %v2969, %v2975
      %v3038 = vmul.f32 %v2970, %v2975
      %v3039 = vmul.f32 %v2971, %v2975
      %v3040 = vadd.f32 %v2844, %v2976
      %v3041 = vadd.f32 %v2845, %v2977
      %v3042 = vadd.f32 %v2846, %v2978
      %v3043 = vadd.f32 %v2847, %v2979
      %v3044 = vadd.f32 %v2848, %v2980
      %v3045 = vadd.f32 %v2849, %v2981
      %v3046 = vadd.f32 %v2850, %v2982
      %v3047 = vadd.f32 %v2851, %v2983
      %v3048 = vadd.f32 %v2852, %v2984
      %v3049 = vadd.f32 %v2853, %v2985
      %v3050 = vadd.f32 %v2854, %v2986
      %v3051 = vadd.f32 %v2855, %v2987
      %v3052 = vadd.f32 %v2856, %v2988
      %v3053 = vadd.f32 %v2857, %v2989
      %v3054 = vadd.f32 %v2858, %v2990
      %v3055 = vadd.f32 %v2859, %v2991
      %v3056 = vadd.f32 %v2860, %v2992
      %v3057 = vadd.f32 %v2861, %v2993
      %v3058 = vadd.f32 %v2862, %v2994
      %v3059 = vadd.f32 %v2863, %v2995
      %v3060 = vadd.f32 %v2864, %v2996
      %v3061 = vadd.f32 %v2865, %v2997
      %v3062 = vadd.f32 %v2866, %v2998
      %v3063 = vadd.f32 %v2867, %v2999
      %v3064 = vadd.f32 %v2868, %v3000
      %v3065 = vadd.f32 %v2869, %v3001
      %v3066 = vadd.f32 %v2870, %v3002
      %v3067 = vadd.f32 %v2871, %v3003
      %v3068 = vadd.f32 %v2872, %v3004
      %v3069 = vadd.f32 %v2873, %v3005
      %v3070 = vadd.f32 %v2874, %v3006
      %v3071 = vadd.f32 %v2875, %v3007
      %v3072 = vadd.f32 %v2876, %v3008
      %v3073 = vadd.f32 %v2877, %v3009
      %v3074 = vadd.f32 %v2878, %v3010
      %v3075 = vadd.f32 %v2879, %v3011
      %v3076 = vadd.f32 %v2880, %v3012
      %v3077 = vadd.f32 %v2881, %v3013
      %v3078 = vadd.f32 %v2882, %v3014
      %v3079 = vadd.f32 %v2883, %v3015
      %v3080 = vadd.f32 %v2884, %v3016
      %v3081 = vadd.f32 %v2885, %v3017
      %v3082 = vadd.f32 %v2886, %v3018
      %v3083 = vadd.f32 %v2887, %v3019
      %v3084 = vadd.f32 %v2888, %v3020
      %v3085 = vadd.f32 %v2889, %v3021
      %v3086 = vadd.f32 %v2890, %v3022
      %v3087 = vadd.f32 %v2891, %v3023
      %v3088 = vadd.f32 %v2892, %v3024
      %v3089 = vadd.f32 %v2893, %v3025
      %v3090 = vadd.f32 %v2894, %v3026
      %v3091 = vadd.f32 %v2895, %v3027
      %v3092 = vadd.f32 %v2896, %v3028
      %v3093 = vadd.f32 %v2897, %v3029
      %v3094 = vadd.f32 %v2898, %v3030
      %v3095 = vadd.f32 %v2899, %v3031
      %v3096 = vadd.f32 %v2900, %v3032
      %v3097 = vadd.f32 %v2901, %v3033
      %v3098 = vadd.f32 %v2902, %v3034
      %v3099 = vadd.f32 %v2903, %v3035
      %v3100 = vadd.f32 %v2904, %v3036
      %v3101 = vadd.f32 %v2905, %v3037
      %v3102 = vadd.f32 %v2906, %v3038
      %v3103 = vadd.f32 %v2907, %v3039
      %v3104 = vld [vmem:[%s2711 + $0x2] sm:$0xff]
      %v3105 = vld [vmem:[%s2711 + $0xa] sm:$0xff]
      %v3106 = vld [vmem:[%s2711 + $0x1a] sm:$0xff]
      %v3107 = vld [vmem:[%s2711 + $0x22] sm:$0xff]
      %v3108 = vld [vmem:[%s2711 + $0x32] sm:$0xff]
      %v3109 = vld [vmem:[%s2711 + $0x3a] sm:$0xff]
      %v3110 = vld [vmem:[%s2711 + $0x4a] sm:$0xff]
      %v3111 = vld [vmem:[%s2711 + $0x52] sm:$0xff]
      %v3112 = vld [vmem:[%s2711 + $0x62] sm:$0xff]
      %v3113 = vld [vmem:[%s2711 + $0x6a] sm:$0xff]
      %v3114 = vld [vmem:[%s2711 + $0x7a] sm:$0xff]
      %v3115 = vld [vmem:[%s2711 + $0x82] sm:$0xff]
      %v3116 = vld [vmem:[%s2711 + $0x92] sm:$0xff]
      %v3117 = vld [vmem:[%s2711 + $0x9a] sm:$0xff]
      %v3118 = vld [vmem:[%s2711 + $0xaa] sm:$0xff]
      %v3119 = vld [vmem:[%s2711 + $0xb2] sm:$0xff]
      %v3120 = vld [vmem:[%s2711 + $0xc2] sm:$0xff]
      %v3121 = vld [vmem:[%s2711 + $0xca] sm:$0xff]
      %v3122 = vld [vmem:[%s2711 + $0xda] sm:$0xff]
      %v3123 = vld [vmem:[%s2711 + $0xe2] sm:$0xff]
      %v3124 = vld [vmem:[%s2711 + $0xf2] sm:$0xff]
      %v3125 = vld [vmem:[%s2711 + $0xfa] sm:$0xff]
      %v3126 = vld [vmem:[%s2711 + $0x10a] sm:$0xff]
      %v3127 = vld [vmem:[%s2711 + $0x112] sm:$0xff]
      %v3128 = vld [vmem:[%s2711 + $0x122] sm:$0xff]
      %v3129 = vld [vmem:[%s2711 + $0x12a] sm:$0xff]
      %v3130 = vld [vmem:[%s2711 + $0x13a] sm:$0xff]
      %v3131 = vld [vmem:[%s2711 + $0x142] sm:$0xff]
      %v3132 = vld [vmem:[%s2711 + $0x152] sm:$0xff]
      %v3133 = vld [vmem:[%s2711 + $0x15a] sm:$0xff]
      %v3134 = vld [vmem:[%s2711 + $0x16a] sm:$0xff]
      %v3135 = vld [vmem:[%s2711 + $0x172] sm:$0xff]
      %v3136 = vld [vmem:[%s2711 + $0x1b2] sm:$0xff]
      %v3137 = vld [vmem:[%s2711 + $0x1ba] sm:$0xff]
      %v3138 = vld [vmem:[%s2711 + $0x1ca] sm:$0xff]
      %v3139 = vld [vmem:[%s2711 + $0x1d2] sm:$0xff]
      %v3140 = vld [vmem:[%s2711 + $0x1e2] sm:$0xff]
      %v3141 = vld [vmem:[%s2711 + $0x1ea] sm:$0xff]
      %v3142 = vld [vmem:[%s2711 + $0x1fa] sm:$0xff]
      %v3143 = vld [vmem:[%s2711 + $0x202] sm:$0xff]
      %v3144 = vld [vmem:[%s2711 + $0x212] sm:$0xff]
      %v3145 = vld [vmem:[%s2711 + $0x21a] sm:$0xff]
      %v3146 = vld [vmem:[%s2711 + $0x22a] sm:$0xff]
      %v3147 = vld [vmem:[%s2711 + $0x232] sm:$0xff]
      %v3148 = vld [vmem:[%s2711 + $0x242] sm:$0xff]
      %v3149 = vld [vmem:[%s2711 + $0x24a] sm:$0xff]
      %v3150 = vld [vmem:[%s2711 + $0x25a] sm:$0xff]
      %v3151 = vld [vmem:[%s2711 + $0x262] sm:$0xff]
      %v3152 = vld [vmem:[%s2711 + $0x272] sm:$0xff]
      %v3153 = vld [vmem:[%s2711 + $0x27a] sm:$0xff]
      %v3154 = vld [vmem:[%s2711 + $0x28a] sm:$0xff]
      %v3155 = vld [vmem:[%s2711 + $0x292] sm:$0xff]
      %v3156 = vld [vmem:[%s2711 + $0x2a2] sm:$0xff]
      %v3157 = vld [vmem:[%s2711 + $0x2aa] sm:$0xff]
      %v3158 = vld [vmem:[%s2711 + $0x2ba] sm:$0xff]
      %v3159 = vld [vmem:[%s2711 + $0x2c2] sm:$0xff]
      %v3160 = vld [vmem:[%s2711 + $0x2d2] sm:$0xff]
      %v3161 = vld [vmem:[%s2711 + $0x2da] sm:$0xff]
      %v3162 = vld [vmem:[%s2711 + $0x2ea] sm:$0xff]
      %v3163 = vld [vmem:[%s2711 + $0x2f2] sm:$0xff]
      %v3164 = vld [vmem:[%s2711 + $0x302] sm:$0xff]
      %v3165 = vld [vmem:[%s2711 + $0x30a] sm:$0xff]
      %v3166 = vld [vmem:[%s2711 + $0x31a] sm:$0xff]
      %v3167 = vld [vmem:[%s2711 + $0x322] sm:$0xff]
      %v3168 = vlaneseq
      %v3169 = vshrl.u32 %v3168, 7
      %v3170 = vsub.s32 0, %v3169
      %v3171 = vrot.slane %v1534, %v3170
      %v3172 = vmul.f32 %v3104, %v3171
      %v3173 = vmul.f32 %v3105, %v3171
      %v3174 = vmul.f32 %v3106, %v3171
      %v3175 = vmul.f32 %v3107, %v3171
      %v3176 = vmul.f32 %v3108, %v3171
      %v3177 = vmul.f32 %v3109, %v3171
      %v3178 = vmul.f32 %v3110, %v3171
      %v3179 = vmul.f32 %v3111, %v3171
      %v3180 = vmul.f32 %v3112, %v3171
      %v3181 = vmul.f32 %v3113, %v3171
      %v3182 = vmul.f32 %v3114, %v3171
      %v3183 = vmul.f32 %v3115, %v3171
      %v3184 = vmul.f32 %v3116, %v3171
      %v3185 = vmul.f32 %v3117, %v3171
      %v3186 = vmul.f32 %v3118, %v3171
      %v3187 = vmul.f32 %v3119, %v3171
      %v3188 = vmul.f32 %v3120, %v3171
      %v3189 = vmul.f32 %v3121, %v3171
      %v3190 = vmul.f32 %v3122, %v3171
      %v3191 = vmul.f32 %v3123, %v3171
      %v3192 = vmul.f32 %v3124, %v3171
      %v3193 = vmul.f32 %v3125, %v3171
      %v3194 = vmul.f32 %v3126, %v3171
      %v3195 = vmul.f32 %v3127, %v3171
      %v3196 = vmul.f32 %v3128, %v3171
      %v3197 = vmul.f32 %v3129, %v3171
      %v3198 = vmul.f32 %v3130, %v3171
      %v3199 = vmul.f32 %v3131, %v3171
      %v3200 = vmul.f32 %v3132, %v3171
      %v3201 = vmul.f32 %v3133, %v3171
      %v3202 = vmul.f32 %v3134, %v3171
      %v3203 = vmul.f32 %v3135, %v3171
      %v3204 = vmul.f32 %v3136, %v3171
      %v3205 = vmul.f32 %v3137, %v3171
      %v3206 = vmul.f32 %v3138, %v3171
      %v3207 = vmul.f32 %v3139, %v3171
      %v3208 = vmul.f32 %v3140, %v3171
      %v3209 = vmul.f32 %v3141, %v3171
      %v3210 = vmul.f32 %v3142, %v3171
      %v3211 = vmul.f32 %v3143, %v3171
      %v3212 = vmul.f32 %v3144, %v3171
      %v3213 = vmul.f32 %v3145, %v3171
      %v3214 = vmul.f32 %v3146, %v3171
      %v3215 = vmul.f32 %v3147, %v3171
      %v3216 = vmul.f32 %v3148, %v3171
      %v3217 = vmul.f32 %v3149, %v3171
      %v3218 = vmul.f32 %v3150, %v3171
      %v3219 = vmul.f32 %v3151, %v3171
      %v3220 = vmul.f32 %v3152, %v3171
      %v3221 = vmul.f32 %v3153, %v3171
      %v3222 = vmul.f32 %v3154, %v3171
      %v3223 = vmul.f32 %v3155, %v3171
      %v3224 = vmul.f32 %v3156, %v3171
      %v3225 = vmul.f32 %v3157, %v3171
      %v3226 = vmul.f32 %v3158, %v3171
      %v3227 = vmul.f32 %v3159, %v3171
      %v3228 = vmul.f32 %v3160, %v3171
      %v3229 = vmul.f32 %v3161, %v3171
      %v3230 = vmul.f32 %v3162, %v3171
      %v3231 = vmul.f32 %v3163, %v3171
      %v3232 = vmul.f32 %v3164, %v3171
      %v3233 = vmul.f32 %v3165, %v3171
      %v3234 = vmul.f32 %v3166, %v3171
      %v3235 = vmul.f32 %v3167, %v3171
      %v3236 = vadd.f32 %v3040, %v3172
      %v3237 = vadd.f32 %v3041, %v3173
      %v3238 = vadd.f32 %v3042, %v3174
      %v3239 = vadd.f32 %v3043, %v3175
      %v3240 = vadd.f32 %v3044, %v3176
      %v3241 = vadd.f32 %v3045, %v3177
      %v3242 = vadd.f32 %v3046, %v3178
      %v3243 = vadd.f32 %v3047, %v3179
      %v3244 = vadd.f32 %v3048, %v3180
      %v3245 = vadd.f32 %v3049, %v3181
      %v3246 = vadd.f32 %v3050, %v3182
      %v3247 = vadd.f32 %v3051, %v3183
      %v3248 = vadd.f32 %v3052, %v3184
      %v3249 = vadd.f32 %v3053, %v3185
      %v3250 = vadd.f32 %v3054, %v3186
      %v3251 = vadd.f32 %v3055, %v3187
      %v3252 = vadd.f32 %v3056, %v3188
      %v3253 = vadd.f32 %v3057, %v3189
      %v3254 = vadd.f32 %v3058, %v3190
      %v3255 = vadd.f32 %v3059, %v3191
      %v3256 = vadd.f32 %v3060, %v3192
      %v3257 = vadd.f32 %v3061, %v3193
      %v3258 = vadd.f32 %v3062, %v3194
      %v3259 = vadd.f32 %v3063, %v3195
      %v3260 = vadd.f32 %v3064, %v3196
      %v3261 = vadd.f32 %v3065, %v3197
      %v3262 = vadd.f32 %v3066, %v3198
      %v3263 = vadd.f32 %v3067, %v3199
      %v3264 = vadd.f32 %v3068, %v3200
      %v3265 = vadd.f32 %v3069, %v3201
      %v3266 = vadd.f32 %v3070, %v3202
      %v3267 = vadd.f32 %v3071, %v3203
      %v3268 = vadd.f32 %v3072, %v3204
      %v3269 = vadd.f32 %v3073, %v3205
      %v3270 = vadd.f32 %v3074, %v3206
      %v3271 = vadd.f32 %v3075, %v3207
      %v3272 = vadd.f32 %v3076, %v3208
      %v3273 = vadd.f32 %v3077, %v3209
      %v3274 = vadd.f32 %v3078, %v3210
      %v3275 = vadd.f32 %v3079, %v3211
      %v3276 = vadd.f32 %v3080, %v3212
      %v3277 = vadd.f32 %v3081, %v3213
      %v3278 = vadd.f32 %v3082, %v3214
      %v3279 = vadd.f32 %v3083, %v3215
      %v3280 = vadd.f32 %v3084, %v3216
      %v3281 = vadd.f32 %v3085, %v3217
      %v3282 = vadd.f32 %v3086, %v3218
      %v3283 = vadd.f32 %v3087, %v3219
      %v3284 = vadd.f32 %v3088, %v3220
      %v3285 = vadd.f32 %v3089, %v3221
      %v3286 = vadd.f32 %v3090, %v3222
      %v3287 = vadd.f32 %v3091, %v3223
      %v3288 = vadd.f32 %v3092, %v3224
      %v3289 = vadd.f32 %v3093, %v3225
      %v3290 = vadd.f32 %v3094, %v3226
      %v3291 = vadd.f32 %v3095, %v3227
      %v3292 = vadd.f32 %v3096, %v3228
      %v3293 = vadd.f32 %v3097, %v3229
      %v3294 = vadd.f32 %v3098, %v3230
      %v3295 = vadd.f32 %v3099, %v3231
      %v3296 = vadd.f32 %v3100, %v3232
      %v3297 = vadd.f32 %v3101, %v3233
      %v3298 = vadd.f32 %v3102, %v3234
      %v3299 = vadd.f32 %v3103, %v3235
      %v3300 = vld [vmem:[%s5] sm:$0x1]
      %v3302 = vlaneseq
      %v3303 = vshrl.u32 %v3302, 7
      %v3304 = vsub.s32 0, %v3303
      %v3305 = vrot.slane %v3300, %v3304
      %v3307 = vmul.f32 %v3236, %v3305
      %v3308 = vmul.f32 %v3237, %v3305
      %v3309 = vmul.f32 %v3238, %v3305
      %v3310 = vmul.f32 %v3239, %v3305
      %v3311 = vmul.f32 %v3240, %v3305
      %v3312 = vmul.f32 %v3241, %v3305
      %v3313 = vmul.f32 %v3242, %v3305
      %v3314 = vmul.f32 %v3243, %v3305
      %v3315 = vmul.f32 %v3244, %v3305
      %v3316 = vmul.f32 %v3245, %v3305
      %v3317 = vmul.f32 %v3246, %v3305
      %v3318 = vmul.f32 %v3247, %v3305
      %v3319 = vmul.f32 %v3248, %v3305
      %v3320 = vmul.f32 %v3249, %v3305
      %v3321 = vmul.f32 %v3250, %v3305
      %v3322 = vmul.f32 %v3251, %v3305
      %v3323 = vmul.f32 %v3252, %v3305
      %v3324 = vmul.f32 %v3253, %v3305
      %v3325 = vmul.f32 %v3254, %v3305
      %v3326 = vmul.f32 %v3255, %v3305
      %v3327 = vmul.f32 %v3256, %v3305
      %v3328 = vmul.f32 %v3257, %v3305
      %v3329 = vmul.f32 %v3258, %v3305
      %v3330 = vmul.f32 %v3259, %v3305
      %v3331 = vmul.f32 %v3260, %v3305
      %v3332 = vmul.f32 %v3261, %v3305
      %v3333 = vmul.f32 %v3262, %v3305
      %v3334 = vmul.f32 %v3263, %v3305
      %v3335 = vmul.f32 %v3264, %v3305
      %v3336 = vmul.f32 %v3265, %v3305
      %v3337 = vmul.f32 %v3266, %v3305
      %v3338 = vmul.f32 %v3267, %v3305
      %v3339 = vmul.f32 %v3268, %v3305
      %v3340 = vmul.f32 %v3269, %v3305
      %v3341 = vmul.f32 %v3270, %v3305
      %v3342 = vmul.f32 %v3271, %v3305
      %v3343 = vmul.f32 %v3272, %v3305
      %v3344 = vmul.f32 %v3273, %v3305
      %v3345 = vmul.f32 %v3274, %v3305
      %v3346 = vmul.f32 %v3275, %v3305
      %v3347 = vmul.f32 %v3276, %v3305
      %v3348 = vmul.f32 %v3277, %v3305
      %v3349 = vmul.f32 %v3278, %v3305
      %v3350 = vmul.f32 %v3279, %v3305
      %v3351 = vmul.f32 %v3280, %v3305
      %v3352 = vmul.f32 %v3281, %v3305
      %v3353 = vmul.f32 %v3282, %v3305
      %v3354 = vmul.f32 %v3283, %v3305
      %v3355 = vmul.f32 %v3284, %v3305
      %v3356 = vmul.f32 %v3285, %v3305
      %v3357 = vmul.f32 %v3286, %v3305
      %v3358 = vmul.f32 %v3287, %v3305
      %v3359 = vmul.f32 %v3288, %v3305
      %v3360 = vmul.f32 %v3289, %v3305
      %v3361 = vmul.f32 %v3290, %v3305
      %v3362 = vmul.f32 %v3291, %v3305
      %v3363 = vmul.f32 %v3292, %v3305
      %v3364 = vmul.f32 %v3293, %v3305
      %v3365 = vmul.f32 %v3294, %v3305
      %v3366 = vmul.f32 %v3295, %v3305
      %v3367 = vmul.f32 %v3296, %v3305
      %v3368 = vmul.f32 %v3297, %v3305
      %v3369 = vmul.f32 %v3298, %v3305
      %v3370 = vmul.f32 %v3299, %v3305
      %v3371 = vld [vmem:[%s6] sm:$0x1]
      %v3373 = vlaneseq
      %v3374 = vshrl.u32 %v3373, 7
      %v3375 = vsub.s32 0, %v3374
      %v3376 = vrot.slane %v3371, %v3375
      %v3378 = vadd.f32 %v3307, %v3376
      %v3379 = vadd.f32 %v3308, %v3376
      %v3380 = vadd.f32 %v3309, %v3376
      %v3381 = vadd.f32 %v3310, %v3376
      %v3382 = vadd.f32 %v3311, %v3376
      %v3383 = vadd.f32 %v3312, %v3376
      %v3384 = vadd.f32 %v3313, %v3376
      %v3385 = vadd.f32 %v3314, %v3376
      %v3386 = vadd.f32 %v3315, %v3376
      %v3387 = vadd.f32 %v3316, %v3376
      %v3388 = vadd.f32 %v3317, %v3376
      %v3389 = vadd.f32 %v3318, %v3376
      %v3390 = vadd.f32 %v3319, %v3376
      %v3391 = vadd.f32 %v3320, %v3376
      %v3392 = vadd.f32 %v3321, %v3376
      %v3393 = vadd.f32 %v3322, %v3376
      %v3394 = vadd.f32 %v3323, %v3376
      %v3395 = vadd.f32 %v3324, %v3376
      %v3396 = vadd.f32 %v3325, %v3376
      %v3397 = vadd.f32 %v3326, %v3376
      %v3398 = vadd.f32 %v3327, %v3376
      %v3399 = vadd.f32 %v3328, %v3376
      %v3400 = vadd.f32 %v3329, %v3376
      %v3401 = vadd.f32 %v3330, %v3376
      %v3402 = vadd.f32 %v3331, %v3376
      %v3403 = vadd.f32 %v3332, %v3376
      %v3404 = vadd.f32 %v3333, %v3376
      %v3405 = vadd.f32 %v3334, %v3376
      %v3406 = vadd.f32 %v3335, %v3376
      %v3407 = vadd.f32 %v3336, %v3376
      %v3408 = vadd.f32 %v3337, %v3376
      %v3409 = vadd.f32 %v3338, %v3376
      %v3410 = vadd.f32 %v3339, %v3376
      %v3411 = vadd.f32 %v3340, %v3376
      %v3412 = vadd.f32 %v3341, %v3376
      %v3413 = vadd.f32 %v3342, %v3376
      %v3414 = vadd.f32 %v3343, %v3376
      %v3415 = vadd.f32 %v3344, %v3376
      %v3416 = vadd.f32 %v3345, %v3376
      %v3417 = vadd.f32 %v3346, %v3376
      %v3418 = vadd.f32 %v3347, %v3376
      %v3419 = vadd.f32 %v3348, %v3376
      %v3420 = vadd.f32 %v3349, %v3376
      %v3421 = vadd.f32 %v3350, %v3376
      %v3422 = vadd.f32 %v3351, %v3376
      %v3423 = vadd.f32 %v3352, %v3376
      %v3424 = vadd.f32 %v3353, %v3376
      %v3425 = vadd.f32 %v3354, %v3376
      %v3426 = vadd.f32 %v3355, %v3376
      %v3427 = vadd.f32 %v3356, %v3376
      %v3428 = vadd.f32 %v3357, %v3376
      %v3429 = vadd.f32 %v3358, %v3376
      %v3430 = vadd.f32 %v3359, %v3376
      %v3431 = vadd.f32 %v3360, %v3376
      %v3432 = vadd.f32 %v3361, %v3376
      %v3433 = vadd.f32 %v3362, %v3376
      %v3434 = vadd.f32 %v3363, %v3376
      %v3435 = vadd.f32 %v3364, %v3376
      %v3436 = vadd.f32 %v3365, %v3376
      %v3437 = vadd.f32 %v3366, %v3376
      %v3438 = vadd.f32 %v3367, %v3376
      %v3439 = vadd.f32 %v3368, %v3376
      %v3440 = vadd.f32 %v3369, %v3376
      %v3441 = vadd.f32 %v3370, %v3376
      %v3442 = vadd.f32 %v3378, 3.0
      %v3443 = vadd.f32 %v3379, 3.0
      %v3444 = vadd.f32 %v3380, 3.0
      %v3445 = vadd.f32 %v3381, 3.0
      %v3446 = vadd.f32 %v3382, 3.0
      %v3447 = vadd.f32 %v3383, 3.0
      %v3448 = vadd.f32 %v3384, 3.0
      %v3449 = vadd.f32 %v3385, 3.0
      %v3450 = vadd.f32 %v3386, 3.0
      %v3451 = vadd.f32 %v3387, 3.0
      %v3452 = vadd.f32 %v3388, 3.0
      %v3453 = vadd.f32 %v3389, 3.0
      %v3454 = vadd.f32 %v3390, 3.0
      %v3455 = vadd.f32 %v3391, 3.0
      %v3456 = vadd.f32 %v3392, 3.0
      %v3457 = vadd.f32 %v3393, 3.0
      %v3458 = vadd.f32 %v3394, 3.0
      %v3459 = vadd.f32 %v3395, 3.0
      %v3460 = vadd.f32 %v3396, 3.0
      %v3461 = vadd.f32 %v3397, 3.0
      %v3462 = vadd.f32 %v3398, 3.0
      %v3463 = vadd.f32 %v3399, 3.0
      %v3464 = vadd.f32 %v3400, 3.0
      %v3465 = vadd.f32 %v3401, 3.0
      %v3466 = vadd.f32 %v3402, 3.0
      %v3467 = vadd.f32 %v3403, 3.0
      %v3468 = vadd.f32 %v3404, 3.0
      %v3469 = vadd.f32 %v3405, 3.0
      %v3470 = vadd.f32 %v3406, 3.0
      %v3471 = vadd.f32 %v3407, 3.0
      %v3472 = vadd.f32 %v3408, 3.0
      %v3473 = vadd.f32 %v3409, 3.0
      %v3474 = vadd.f32 %v3410, 3.0
      %v3475 = vadd.f32 %v3411, 3.0
      %v3476 = vadd.f32 %v3412, 3.0
      %v3477 = vadd.f32 %v3413, 3.0
      %v3478 = vadd.f32 %v3414, 3.0
      %v3479 = vadd.f32 %v3415, 3.0
      %v3480 = vadd.f32 %v3416, 3.0
      %v3481 = vadd.f32 %v3417, 3.0
      %v3482 = vadd.f32 %v3418, 3.0
      %v3483 = vadd.f32 %v3419, 3.0
      %v3484 = vadd.f32 %v3420, 3.0
      %v3485 = vadd.f32 %v3421, 3.0
      %v3486 = vadd.f32 %v3422, 3.0
      %v3487 = vadd.f32 %v3423, 3.0
      %v3488 = vadd.f32 %v3424, 3.0
      %v3489 = vadd.f32 %v3425, 3.0
      %v3490 = vadd.f32 %v3426, 3.0
      %v3491 = vadd.f32 %v3427, 3.0
      %v3492 = vadd.f32 %v3428, 3.0
      %v3493 = vadd.f32 %v3429, 3.0
      %v3494 = vadd.f32 %v3430, 3.0
      %v3495 = vadd.f32 %v3431, 3.0
      %v3496 = vadd.f32 %v3432, 3.0
      %v3497 = vadd.f32 %v3433, 3.0
      %v3498 = vadd.f32 %v3434, 3.0
      %v3499 = vadd.f32 %v3435, 3.0
      %v3500 = vadd.f32 %v3436, 3.0
      %v3501 = vadd.f32 %v3437, 3.0
      %v3502 = vadd.f32 %v3438, 3.0
      %v3503 = vadd.f32 %v3439, 3.0
      %v3504 = vadd.f32 %v3440, 3.0
      %v3505 = vadd.f32 %v3441, 3.0
      %v3506 = vmax.f32 %v3442, 0.0
      %v3507 = vmax.f32 %v3443, 0.0
      %v3508 = vmax.f32 %v3444, 0.0
      %v3509 = vmax.f32 %v3445, 0.0
      %v3510 = vmax.f32 %v3446, 0.0
      %v3511 = vmax.f32 %v3447, 0.0
      %v3512 = vmax.f32 %v3448, 0.0
      %v3513 = vmax.f32 %v3449, 0.0
      %v3514 = vmax.f32 %v3450, 0.0
      %v3515 = vmax.f32 %v3451, 0.0
      %v3516 = vmax.f32 %v3452, 0.0
      %v3517 = vmax.f32 %v3453, 0.0
      %v3518 = vmax.f32 %v3454, 0.0
      %v3519 = vmax.f32 %v3455, 0.0
      %v3520 = vmax.f32 %v3456, 0.0
      %v3521 = vmax.f32 %v3457, 0.0
      %v3522 = vmax.f32 %v3458, 0.0
      %v3523 = vmax.f32 %v3459, 0.0
      %v3524 = vmax.f32 %v3460, 0.0
      %v3525 = vmax.f32 %v3461, 0.0
      %v3526 = vmax.f32 %v3462, 0.0
      %v3527 = vmax.f32 %v3463, 0.0
      %v3528 = vmax.f32 %v3464, 0.0
      %v3529 = vmax.f32 %v3465, 0.0
      %v3530 = vmax.f32 %v3466, 0.0
      %v3531 = vmax.f32 %v3467, 0.0
      %v3532 = vmax.f32 %v3468, 0.0
      %v3533 = vmax.f32 %v3469, 0.0
      %v3534 = vmax.f32 %v3470, 0.0
      %v3535 = vmax.f32 %v3471, 0.0
      %v3536 = vmax.f32 %v3472, 0.0
      %v3537 = vmax.f32 %v3473, 0.0
      %v3538 = vmax.f32 %v3474, 0.0
      %v3539 = vmax.f32 %v3475, 0.0
      %v3540 = vmax.f32 %v3476, 0.0
      %v3541 = vmax.f32 %v3477, 0.0
      %v3542 = vmax.f32 %v3478, 0.0
      %v3543 = vmax.f32 %v3479, 0.0
      %v3544 = vmax.f32 %v3480, 0.0
      %v3545 = vmax.f32 %v3481, 0.0
      %v3546 = vmax.f32 %v3482, 0.0
      %v3547 = vmax.f32 %v3483, 0.0
      %v3548 = vmax.f32 %v3484, 0.0
      %v3549 = vmax.f32 %v3485, 0.0
      %v3550 = vmax.f32 %v3486, 0.0
      %v3551 = vmax.f32 %v3487, 0.0
      %v3552 = vmax.f32 %v3488, 0.0
      %v3553 = vmax.f32 %v3489, 0.0
      %v3554 = vmax.f32 %v3490, 0.0
      %v3555 = vmax.f32 %v3491, 0.0
      %v3556 = vmax.f32 %v3492, 0.0
      %v3557 = vmax.f32 %v3493, 0.0
      %v3558 = vmax.f32 %v3494, 0.0
      %v3559 = vmax.f32 %v3495, 0.0
      %v3560 = vmax.f32 %v3496, 0.0
      %v3561 = vmax.f32 %v3497, 0.0
      %v3562 = vmax.f32 %v3498, 0.0
      %v3563 = vmax.f32 %v3499, 0.0
      %v3564 = vmax.f32 %v3500, 0.0
      %v3565 = vmax.f32 %v3501, 0.0
      %v3566 = vmax.f32 %v3502, 0.0
      %v3567 = vmax.f32 %v3503, 0.0
      %v3568 = vmax.f32 %v3504, 0.0
      %v3569 = vmax.f32 %v3505, 0.0
      %v3570 = vmin.f32 %v3506, 6.0
      %v3571 = vmin.f32 %v3507, 6.0
      %v3572 = vmin.f32 %v3508, 6.0
      %v3573 = vmin.f32 %v3509, 6.0
      %v3574 = vmin.f32 %v3510, 6.0
      %v3575 = vmin.f32 %v3511, 6.0
      %v3576 = vmin.f32 %v3512, 6.0
      %v3577 = vmin.f32 %v3513, 6.0
      %v3578 = vmin.f32 %v3514, 6.0
      %v3579 = vmin.f32 %v3515, 6.0
      %v3580 = vmin.f32 %v3516, 6.0
      %v3581 = vmin.f32 %v3517, 6.0
      %v3582 = vmin.f32 %v3518, 6.0
      %v3583 = vmin.f32 %v3519, 6.0
      %v3584 = vmin.f32 %v3520, 6.0
      %v3585 = vmin.f32 %v3521, 6.0
      %v3586 = vmin.f32 %v3522, 6.0
      %v3587 = vmin.f32 %v3523, 6.0
      %v3588 = vmin.f32 %v3524, 6.0
      %v3589 = vmin.f32 %v3525, 6.0
      %v3590 = vmin.f32 %v3526, 6.0
      %v3591 = vmin.f32 %v3527, 6.0
      %v3592 = vmin.f32 %v3528, 6.0
      %v3593 = vmin.f32 %v3529, 6.0
      %v3594 = vmin.f32 %v3530, 6.0
      %v3595 = vmin.f32 %v3531, 6.0
      %v3596 = vmin.f32 %v3532, 6.0
      %v3597 = vmin.f32 %v3533, 6.0
      %v3598 = vmin.f32 %v3534, 6.0
      %v3599 = vmin.f32 %v3535, 6.0
      %v3600 = vmin.f32 %v3536, 6.0
      %v3601 = vmin.f32 %v3537, 6.0
      %v3602 = vmin.f32 %v3538, 6.0
      %v3603 = vmin.f32 %v3539, 6.0
      %v3604 = vmin.f32 %v3540, 6.0
      %v3605 = vmin.f32 %v3541, 6.0
      %v3606 = vmin.f32 %v3542, 6.0
      %v3607 = vmin.f32 %v3543, 6.0
      %v3608 = vmin.f32 %v3544, 6.0
      %v3609 = vmin.f32 %v3545, 6.0
      %v3610 = vmin.f32 %v3546, 6.0
      %v3611 = vmin.f32 %v3547, 6.0
      %v3612 = vmin.f32 %v3548, 6.0
      %v3613 = vmin.f32 %v3549, 6.0
      %v3614 = vmin.f32 %v3550, 6.0
      %v3615 = vmin.f32 %v3551, 6.0
      %v3616 = vmin.f32 %v3552, 6.0
      %v3617 = vmin.f32 %v3553, 6.0
      %v3618 = vmin.f32 %v3554, 6.0
      %v3619 = vmin.f32 %v3555, 6.0
      %v3620 = vmin.f32 %v3556, 6.0
      %v3621 = vmin.f32 %v3557, 6.0
      %v3622 = vmin.f32 %v3558, 6.0
      %v3623 = vmin.f32 %v3559, 6.0
      %v3624 = vmin.f32 %v3560, 6.0
      %v3625 = vmin.f32 %v3561, 6.0
      %v3626 = vmin.f32 %v3562, 6.0
      %v3627 = vmin.f32 %v3563, 6.0
      %v3628 = vmin.f32 %v3564, 6.0
      %v3629 = vmin.f32 %v3565, 6.0
      %v3630 = vmin.f32 %v3566, 6.0
      %v3631 = vmin.f32 %v3567, 6.0
      %v3632 = vmin.f32 %v3568, 6.0
      %v3633 = vmin.f32 %v3569, 6.0
      %v3634 = vmul.f32 %v3570, 0.16666667
      %v3635 = vmul.f32 %v3571, 0.16666667
      %v3636 = vmul.f32 %v3572, 0.16666667
      %v3637 = vmul.f32 %v3573, 0.16666667
      %v3638 = vmul.f32 %v3574, 0.16666667
      %v3639 = vmul.f32 %v3575, 0.16666667
      %v3640 = vmul.f32 %v3576, 0.16666667
      %v3641 = vmul.f32 %v3577, 0.16666667
      %v3642 = vmul.f32 %v3578, 0.16666667
      %v3643 = vmul.f32 %v3579, 0.16666667
      %v3644 = vmul.f32 %v3580, 0.16666667
      %v3645 = vmul.f32 %v3581, 0.16666667
      %v3646 = vmul.f32 %v3582, 0.16666667
      %v3647 = vmul.f32 %v3583, 0.16666667
      %v3648 = vmul.f32 %v3584, 0.16666667
      %v3649 = vmul.f32 %v3585, 0.16666667
      %v3650 = vmul.f32 %v3586, 0.16666667
      %v3651 = vmul.f32 %v3587, 0.16666667
      %v3652 = vmul.f32 %v3588, 0.16666667
      %v3653 = vmul.f32 %v3589, 0.16666667
      %v3654 = vmul.f32 %v3590, 0.16666667
      %v3655 = vmul.f32 %v3591, 0.16666667
      %v3656 = vmul.f32 %v3592, 0.16666667
      %v3657 = vmul.f32 %v3593, 0.16666667
      %v3658 = vmul.f32 %v3594, 0.16666667
      %v3659 = vmul.f32 %v3595, 0.16666667
      %v3660 = vmul.f32 %v3596, 0.16666667
      %v3661 = vmul.f32 %v3597, 0.16666667
      %v3662 = vmul.f32 %v3598, 0.16666667
      %v3663 = vmul.f32 %v3599, 0.16666667
      %v3664 = vmul.f32 %v3600, 0.16666667
      %v3665 = vmul.f32 %v3601, 0.16666667
      %v3666 = vmul.f32 %v3602, 0.16666667
      %v3667 = vmul.f32 %v3603, 0.16666667
      %v3668 = vmul.f32 %v3604, 0.16666667
      %v3669 = vmul.f32 %v3605, 0.16666667
      %v3670 = vmul.f32 %v3606, 0.16666667
      %v3671 = vmul.f32 %v3607, 0.16666667
      %v3672 = vmul.f32 %v3608, 0.16666667
      %v3673 = vmul.f32 %v3609, 0.16666667
      %v3674 = vmul.f32 %v3610, 0.16666667
      %v3675 = vmul.f32 %v3611, 0.16666667
      %v3676 = vmul.f32 %v3612, 0.16666667
      %v3677 = vmul.f32 %v3613, 0.16666667
      %v3678 = vmul.f32 %v3614, 0.16666667
      %v3679 = vmul.f32 %v3615, 0.16666667
      %v3680 = vmul.f32 %v3616, 0.16666667
      %v3681 = vmul.f32 %v3617, 0.16666667
      %v3682 = vmul.f32 %v3618, 0.16666667
      %v3683 = vmul.f32 %v3619, 0.16666667
      %v3684 = vmul.f32 %v3620, 0.16666667
      %v3685 = vmul.f32 %v3621, 0.16666667
      %v3686 = vmul.f32 %v3622, 0.16666667
      %v3687 = vmul.f32 %v3623, 0.16666667
      %v3688 = vmul.f32 %v3624, 0.16666667
      %v3689 = vmul.f32 %v3625, 0.16666667
      %v3690 = vmul.f32 %v3626, 0.16666667
      %v3691 = vmul.f32 %v3627, 0.16666667
      %v3692 = vmul.f32 %v3628, 0.16666667
      %v3693 = vmul.f32 %v3629, 0.16666667
      %v3694 = vmul.f32 %v3630, 0.16666667
      %v3695 = vmul.f32 %v3631, 0.16666667
      %v3696 = vmul.f32 %v3632, 0.16666667
      %v3697 = vmul.f32 %v3633, 0.16666667
      %v3698 = vmul.f32 %v3634, %v3378
      %v3699 = vmul.f32 %v3635, %v3379
      %v3700 = vmul.f32 %v3636, %v3380
      %v3701 = vmul.f32 %v3637, %v3381
      %v3702 = vmul.f32 %v3638, %v3382
      %v3703 = vmul.f32 %v3639, %v3383
      %v3704 = vmul.f32 %v3640, %v3384
      %v3705 = vmul.f32 %v3641, %v3385
      %v3706 = vmul.f32 %v3642, %v3386
      %v3707 = vmul.f32 %v3643, %v3387
      %v3708 = vmul.f32 %v3644, %v3388
      %v3709 = vmul.f32 %v3645, %v3389
      %v3710 = vmul.f32 %v3646, %v3390
      %v3711 = vmul.f32 %v3647, %v3391
      %v3712 = vmul.f32 %v3648, %v3392
      %v3713 = vmul.f32 %v3649, %v3393
      %v3714 = vmul.f32 %v3650, %v3394
      %v3715 = vmul.f32 %v3651, %v3395
      %v3716 = vmul.f32 %v3652, %v3396
      %v3717 = vmul.f32 %v3653, %v3397
      %v3718 = vmul.f32 %v3654, %v3398
      %v3719 = vmul.f32 %v3655, %v3399
      %v3720 = vmul.f32 %v3656, %v3400
      %v3721 = vmul.f32 %v3657, %v3401
      %v3722 = vmul.f32 %v3658, %v3402
      %v3723 = vmul.f32 %v3659, %v3403
      %v3724 = vmul.f32 %v3660, %v3404
      %v3725 = vmul.f32 %v3661, %v3405
      %v3726 = vmul.f32 %v3662, %v3406
      %v3727 = vmul.f32 %v3663, %v3407
      %v3728 = vmul.f32 %v3664, %v3408
      %v3729 = vmul.f32 %v3665, %v3409
      %v3730 = vmul.f32 %v3666, %v3410
      %v3731 = vmul.f32 %v3667, %v3411
      %v3732 = vmul.f32 %v3668, %v3412
      %v3733 = vmul.f32 %v3669, %v3413
      %v3734 = vmul.f32 %v3670, %v3414
      %v3735 = vmul.f32 %v3671, %v3415
      %v3736 = vmul.f32 %v3672, %v3416
      %v3737 = vmul.f32 %v3673, %v3417
      %v3738 = vmul.f32 %v3674, %v3418
      %v3739 = vmul.f32 %v3675, %v3419
      %v3740 = vmul.f32 %v3676, %v3420
      %v3741 = vmul.f32 %v3677, %v3421
      %v3742 = vmul.f32 %v3678, %v3422
      %v3743 = vmul.f32 %v3679, %v3423
      %v3744 = vmul.f32 %v3680, %v3424
      %v3745 = vmul.f32 %v3681, %v3425
      %v3746 = vmul.f32 %v3682, %v3426
      %v3747 = vmul.f32 %v3683, %v3427
      %v3748 = vmul.f32 %v3684, %v3428
      %v3749 = vmul.f32 %v3685, %v3429
      %v3750 = vmul.f32 %v3686, %v3430
      %v3751 = vmul.f32 %v3687, %v3431
      %v3752 = vmul.f32 %v3688, %v3432
      %v3753 = vmul.f32 %v3689, %v3433
      %v3754 = vmul.f32 %v3690, %v3434
      %v3755 = vmul.f32 %v3691, %v3435
      %v3756 = vmul.f32 %v3692, %v3436
      %v3757 = vmul.f32 %v3693, %v3437
      %v3758 = vmul.f32 %v3694, %v3438
      %v3759 = vmul.f32 %v3695, %v3439
      %v3760 = vmul.f32 %v3696, %v3440
      %v3761 = vmul.f32 %v3697, %v3441
      %v3762 = vsel %vm1388, %v3698, 0.0
      %v3763 = vsel %vm1388, %v3699, 0.0
      %v3764 = vadd.f32 %v3762, %v3763
      %v3765 = vsel %vm1388, %v3700, 0.0
      %v3766 = vadd.f32 %v3764, %v3765
      %v3767 = vsel %vm1388, %v3701, 0.0
      %v3768 = vadd.f32 %v3766, %v3767
      %v3769 = vsel %vm1388, %v3702, 0.0
      %v3770 = vadd.f32 %v3768, %v3769
      %v3771 = vsel %vm1388, %v3703, 0.0
      %v3772 = vadd.f32 %v3770, %v3771
      %v3773 = vsel %vm1388, %v3704, 0.0
      %v3774 = vadd.f32 %v3772, %v3773
      %v3775 = vsel %vm1388, %v3705, 0.0
      %v3776 = vadd.f32 %v3774, %v3775
      %v3777 = vsel %vm1388, %v3706, 0.0
      %v3778 = vadd.f32 %v3776, %v3777
      %v3779 = vsel %vm1388, %v3707, 0.0
      %v3780 = vadd.f32 %v3778, %v3779
      %v3781 = vsel %vm1388, %v3708, 0.0
      %v3782 = vadd.f32 %v3780, %v3781
      %v3783 = vsel %vm1388, %v3709, 0.0
      %v3784 = vadd.f32 %v3782, %v3783
      %v3785 = vsel %vm1388, %v3710, 0.0
      %v3786 = vadd.f32 %v3784, %v3785
      %v3787 = vsel %vm1388, %v3711, 0.0
      %v3788 = vadd.f32 %v3786, %v3787
      %v3789 = vsel %vm1388, %v3712, 0.0
      %v3790 = vadd.f32 %v3788, %v3789
      %v3791 = vsel %vm1388, %v3713, 0.0
      %v3792 = vadd.f32 %v3790, %v3791
      %v3793 = vsel %vm1388, %v3714, 0.0
      %v3794 = vadd.f32 %v3792, %v3793
      %v3795 = vsel %vm1388, %v3715, 0.0
      %v3796 = vadd.f32 %v3794, %v3795
      %v3797 = vsel %vm1388, %v3716, 0.0
      %v3798 = vadd.f32 %v3796, %v3797
      %v3799 = vsel %vm1388, %v3717, 0.0
      %v3800 = vadd.f32 %v3798, %v3799
      %v3801 = vsel %vm1388, %v3718, 0.0
      %v3802 = vadd.f32 %v3800, %v3801
      %v3803 = vsel %vm1388, %v3719, 0.0
      %v3804 = vadd.f32 %v3802, %v3803
      %v3805 = vsel %vm1388, %v3720, 0.0
      %v3806 = vadd.f32 %v3804, %v3805
      %v3807 = vsel %vm1388, %v3721, 0.0
      %v3808 = vadd.f32 %v3806, %v3807
      %v3809 = vsel %vm1388, %v3722, 0.0
      %v3810 = vadd.f32 %v3808, %v3809
      %v3811 = vsel %vm1388, %v3723, 0.0
      %v3812 = vadd.f32 %v3810, %v3811
      %v3813 = vsel %vm1388, %v3724, 0.0
      %v3814 = vadd.f32 %v3812, %v3813
      %v3815 = vsel %vm1388, %v3725, 0.0
      %v3816 = vadd.f32 %v3814, %v3815
      %v3817 = vsel %vm1388, %v3726, 0.0
      %v3818 = vadd.f32 %v3816, %v3817
      %v3819 = vsel %vm1388, %v3727, 0.0
      %v3820 = vadd.f32 %v3818, %v3819
      %v3821 = vsel %vm1388, %v3728, 0.0
      %v3822 = vadd.f32 %v3820, %v3821
      %v3823 = vsel %vm1388, %v3729, 0.0
      %v3824 = vadd.f32 %v3822, %v3823
      %v3825 = vrot.slane %v3824, 4
      %v3826 = vadd.f32 %v3824, %v3825
      %v3827 = vrot.slane %v3826, 2
      %v3828 = vadd.f32 %v3826, %v3827
      %v3829 = vrot.slane %v3828, 1
      %v3830 = vadd.f32 %v3828, %v3829
      %v3831 = vsel %vm1388, %v3730, 0.0
      %v3832 = vsel %vm1388, %v3731, 0.0
      %v3833 = vadd.f32 %v3831, %v3832
      %v3834 = vsel %vm1388, %v3732, 0.0
      %v3835 = vadd.f32 %v3833, %v3834
      %v3836 = vsel %vm1388, %v3733, 0.0
      %v3837 = vadd.f32 %v3835, %v3836
      %v3838 = vsel %vm1388, %v3734, 0.0
      %v3839 = vadd.f32 %v3837, %v3838
      %v3840 = vsel %vm1388, %v3735, 0.0
      %v3841 = vadd.f32 %v3839, %v3840
      %v3842 = vsel %vm1388, %v3736, 0.0
      %v3843 = vadd.f32 %v3841, %v3842
      %v3844 = vsel %vm1388, %v3737, 0.0
      %v3845 = vadd.f32 %v3843, %v3844
      %v3846 = vsel %vm1388, %v3738, 0.0
      %v3847 = vadd.f32 %v3845, %v3846
      %v3848 = vsel %vm1388, %v3739, 0.0
      %v3849 = vadd.f32 %v3847, %v3848
      %v3850 = vsel %vm1388, %v3740, 0.0
      %v3851 = vadd.f32 %v3849, %v3850
      %v3852 = vsel %vm1388, %v3741, 0.0
      %v3853 = vadd.f32 %v3851, %v3852
      %v3854 = vsel %vm1388, %v3742, 0.0
      %v3855 = vadd.f32 %v3853, %v3854
      %v3856 = vsel %vm1388, %v3743, 0.0
      %v3857 = vadd.f32 %v3855, %v3856
      %v3858 = vsel %vm1388, %v3744, 0.0
      %v3859 = vadd.f32 %v3857, %v3858
      %v3860 = vsel %vm1388, %v3745, 0.0
      %v3861 = vadd.f32 %v3859, %v3860
      %v3862 = vsel %vm1388, %v3746, 0.0
      %v3863 = vadd.f32 %v3861, %v3862
      %v3864 = vsel %vm1388, %v3747, 0.0
      %v3865 = vadd.f32 %v3863, %v3864
      %v3866 = vsel %vm1388, %v3748, 0.0
      %v3867 = vadd.f32 %v3865, %v3866
      %v3868 = vsel %vm1388, %v3749, 0.0
      %v3869 = vadd.f32 %v3867, %v3868
      %v3870 = vsel %vm1388, %v3750, 0.0
      %v3871 = vadd.f32 %v3869, %v3870
      %v3872 = vsel %vm1388, %v3751, 0.0
      %v3873 = vadd.f32 %v3871, %v3872
      %v3874 = vsel %vm1388, %v3752, 0.0
      %v3875 = vadd.f32 %v3873, %v3874
      %v3876 = vsel %vm1388, %v3753, 0.0
      %v3877 = vadd.f32 %v3875, %v3876
      %v3878 = vsel %vm1388, %v3754, 0.0
      %v3879 = vadd.f32 %v3877, %v3878
      %v3880 = vsel %vm1388, %v3755, 0.0
      %v3881 = vadd.f32 %v3879, %v3880
      %v3882 = vsel %vm1388, %v3756, 0.0
      %v3883 = vadd.f32 %v3881, %v3882
      %v3884 = vsel %vm1388, %v3757, 0.0
      %v3885 = vadd.f32 %v3883, %v3884
      %v3886 = vsel %vm1388, %v3758, 0.0
      %v3887 = vadd.f32 %v3885, %v3886
      %v3888 = vsel %vm1388, %v3759, 0.0
      %v3889 = vadd.f32 %v3887, %v3888
      %v3890 = vsel %vm1388, %v3760, 0.0
      %v3891 = vadd.f32 %v3889, %v3890
      %v3892 = vsel %vm1388, %v3761, 0.0
      %v3893 = vadd.f32 %v3891, %v3892
      %v3894 = vrot.slane %v3893, 4
      %v3895 = vadd.f32 %v3893, %v3894
      %v3896 = vrot.slane %v3895, 2
      %v3897 = vadd.f32 %v3895, %v3896
      %v3898 = vrot.slane %v3897, 1
      %v3899 = vadd.f32 %v3897, %v3898
      %v3900 = vmul.f32 %v3830, 0.00390625
      %v3901 = vmul.f32 %v3899, 0.00390625
      %v3902 = vld [vmem:[%s7] sm:$0xff]
      %v3903 = vld [vmem:[%s7 + $0x8] sm:$0xff]
      %v3904 = vld [vmem:[%s7 + $0x10] sm:$0xff]
      %v3905 = vld [vmem:[%s7 + $0x18] sm:$0xff]
      %v3906 = vld [vmem:[%s7 + $0x20] sm:$0xff]
      %v3907 = vld [vmem:[%s7 + $0x28] sm:$0xff]
      %v3908 = vld [vmem:[%s7 + $0x30] sm:$0xff]
      %v3909 = vld [vmem:[%s7 + $0x38] sm:$0xff]
      %v3910 = vld [vmem:[%s8] sm:$0x1]
      %v3912 = vlaneseq
      %v3913 = vshrl.u32 %v3912, 7
      %v3914 = vsub.s32 0, %v3913
      %v3915 = vrot.slane %v3910, %v3914
      %vm3919 = vcmask 1041409
      %v3920 = vsel %vm3919, %v3901, %v3900
      %v3921 = vsel %vm1388, %v3920, 0
      %3923 = vmatprep.subr.mxu0 0.0
      %3924 = vmatpush1.msra.mxu0 %v3902
      %3925 = vmatprep.subr.mxu0 0.0
      %3926 = vmatpush1.msra.mxu0 %v3903
      %3927 = vmatprep.subr.mxu0 0.0
      %3928 = vmatpush1.msra.mxu0 %v3904
      %3929 = vmatprep.subr.mxu0 0.0
      %3930 = vmatpush1.msra.mxu0 %v3905
      %3931 = vmatprep.subr.mxu0 0.0
      %3932 = vmatpush1.msra.mxu0 %v3906
      %3933 = vmatprep.subr.mxu0 0.0
      %3934 = vmatpush1.msra.mxu0 %v3907
      %3935 = vmatprep.subr.mxu0 0.0
      %3936 = vmatpush1.msra.mxu0 %v3908
      %3937 = vmatprep.subr.mxu0 0.0
      %3938 = vmatpush1.msra.mxu0 %v3909
      %3939 = vmatprep.subr.mxu0 0.0
      %3940 = vmatpush1.msra.mxu0 0.0
      %3941 = vmatprep.subr.mxu0 0.0
      %3942 = vmatpush1.msra.mxu0 0.0
      %3943 = vmatprep.subr.mxu0 0.0
      %3944 = vmatpush1.msra.mxu0 0.0
      %3945 = vmatprep.subr.mxu0 0.0
      %3946 = vmatpush1.msra.mxu0 0.0
      %3947 = vmatprep.subr.mxu0 0.0
      %3948 = vmatpush1.msra.mxu0 0.0
      %3949 = vmatprep.subr.mxu0 0.0
      %3950 = vmatpush1.msra.mxu0 0.0
      %3951 = vmatprep.subr.mxu0 0.0
      %3952 = vmatpush1.msra.mxu0 0.0
      %3953 = vmatprep.subr.mxu0 0.0
      %3954 = vmatpush1.msra.mxu0 0.0
      %3955 = vmatprep.subr.mxu0 0.0
      %3956 = vmatpush1.msra.mxu0 0.0
      %3957 = vmatprep.subr.mxu0 0.0
      %3958 = vmatpush1.msra.mxu0 0.0
      %3959 = vmatprep.subr.mxu0 0.0
      %3960 = vmatpush1.msra.mxu0 0.0
      %3961 = vmatprep.subr.mxu0 0.0
      %3962 = vmatpush1.msra.mxu0 0.0
      %3963 = vmatprep.subr.mxu0 0.0
      %3964 = vmatpush1.msra.mxu0 0.0
      %3965 = vmatprep.subr.mxu0 0.0
      %3966 = vmatpush1.msra.mxu0 0.0
      %3967 = vmatprep.subr.mxu0 0.0
      %3968 = vmatpush1.msra.mxu0 0.0
      %3969 = vmatprep.subr.mxu0 0.0
      %3970 = vmatpush1.msra.mxu0 0.0
      %3971 = vmatprep.subr.mxu0 0.0
      %3972 = vmatpush1.msra.mxu0 0.0
      %3973 = vmatprep.subr.mxu0 0.0
      %3974 = vmatpush1.msra.mxu0 0.0
      %3975 = vmatprep.subr.mxu0 0.0
      %3976 = vmatpush1.msra.mxu0 0.0
      %3977 = vmatprep.subr.mxu0 0.0
      %3978 = vmatpush1.msra.mxu0 0.0
      %3979 = vmatprep.subr.mxu0 0.0
      %3980 = vmatpush1.msra.mxu0 0.0
      %3981 = vmatprep.subr.mxu0 0.0
      %3982 = vmatpush1.msra.mxu0 0.0
      %3983 = vmatprep.subr.mxu0 0.0
      %3984 = vmatpush1.msra.mxu0 0.0
      %3985 = vmatprep.subr.mxu0 0.0
      %3986 = vmatpush1.msra.mxu0 0.0
      %3987 = vmatprep.mubr.f32.mxu0 0.0
      %3988 = vmatmul.mubr.f32.gmra.mrb[0].mxu0 %v3921
      %v3989 = vpop.f32.mrb[0].mxu0
      %v3990 = vadd.f32 %v3915, %v3989
      %v3991 = vpop.f32.mrb[0].mxu0
      %3992 = vdwg.mxu0
      %v3993 = vmax.f32 %v3990, 0.0
      %v3994 = vld [vmem:[%s9] sm:$0xff]
      %v3995 = vld [vmem:[%s9 + $0x8] sm:$0xff]
      %v3996 = vld [vmem:[%s10] sm:$0x1]
      %v3998 = vlaneseq
      %v3999 = vshrl.u32 %v3998, 7
      %v4000 = vsub.s32 0, %v3999
      %v4001 = vrot.slane %v3996, %v4000
      %vm4003 = vcmask 130048
      %v4005 = vsel %vm4003, %v3993, 0
      %4007 = vmatprep.subr.mxu0 0.0
      %4008 = vmatpush1.msra.mxu0 %v3994
      %4009 = vmatprep.subr.mxu0 0.0
      %4010 = vmatpush1.msra.mxu0 %v3995
      %4011 = vmatprep.subr.mxu0 0.0
      %4012 = vmatpush1.msra.mxu0 0.0
      %4013 = vmatprep.subr.mxu0 0.0
      %4014 = vmatpush1.msra.mxu0 0.0
      %4015 = vmatprep.subr.mxu0 0.0
      %4016 = vmatpush1.msra.mxu0 0.0
      %4017 = vmatprep.subr.mxu0 0.0
      %4018 = vmatpush1.msra.mxu0 0.0
      %4019 = vmatprep.subr.mxu0 0.0
      %4020 = vmatpush1.msra.mxu0 0.0
      %4021 = vmatprep.subr.mxu0 0.0
      %4022 = vmatpush1.msra.mxu0 0.0
      %4023 = vmatprep.subr.mxu0 0.0
      %4024 = vmatpush1.msra.mxu0 0.0
      %4025 = vmatprep.subr.mxu0 0.0
      %4026 = vmatpush1.msra.mxu0 0.0
      %4027 = vmatprep.subr.mxu0 0.0
      %4028 = vmatpush1.msra.mxu0 0.0
      %4029 = vmatprep.subr.mxu0 0.0
      %4030 = vmatpush1.msra.mxu0 0.0
      %4031 = vmatprep.subr.mxu0 0.0
      %4032 = vmatpush1.msra.mxu0 0.0
      %4033 = vmatprep.subr.mxu0 0.0
      %4034 = vmatpush1.msra.mxu0 0.0
      %4035 = vmatprep.subr.mxu0 0.0
      %4036 = vmatpush1.msra.mxu0 0.0
      %4037 = vmatprep.subr.mxu0 0.0
      %4038 = vmatpush1.msra.mxu0 0.0
      %4039 = vmatprep.subr.mxu0 0.0
      %4040 = vmatpush1.msra.mxu0 0.0
      %4041 = vmatprep.subr.mxu0 0.0
      %4042 = vmatpush1.msra.mxu0 0.0
      %4043 = vmatprep.subr.mxu0 0.0
      %4044 = vmatpush1.msra.mxu0 0.0
      %4045 = vmatprep.subr.mxu0 0.0
      %4046 = vmatpush1.msra.mxu0 0.0
      %4047 = vmatprep.subr.mxu0 0.0
      %4048 = vmatpush1.msra.mxu0 0.0
      %4049 = vmatprep.subr.mxu0 0.0
      %4050 = vmatpush1.msra.mxu0 0.0
      %4051 = vmatprep.subr.mxu0 0.0
      %4052 = vmatpush1.msra.mxu0 0.0
      %4053 = vmatprep.subr.mxu0 0.0
      %4054 = vmatpush1.msra.mxu0 0.0
      %4055 = vmatprep.subr.mxu0 0.0
      %4056 = vmatpush1.msra.mxu0 0.0
      %4057 = vmatprep.subr.mxu0 0.0
      %4058 = vmatpush1.msra.mxu0 0.0
      %4059 = vmatprep.subr.mxu0 0.0
      %4060 = vmatpush1.msra.mxu0 0.0
      %4061 = vmatprep.subr.mxu0 0.0
      %4062 = vmatpush1.msra.mxu0 0.0
      %4063 = vmatprep.subr.mxu0 0.0
      %4064 = vmatpush1.msra.mxu0 0.0
      %4065 = vmatprep.subr.mxu0 0.0
      %4066 = vmatpush1.msra.mxu0 0.0
      %4067 = vmatprep.subr.mxu0 0.0
      %4068 = vmatpush1.msra.mxu0 0.0
      %4069 = vmatprep.subr.mxu0 0.0
      %4070 = vmatpush1.msra.mxu0 0.0
      %4071 = vmatprep.mubr.f32.mxu0 0.0
      %4072 = vmatmul.mubr.f32.gmra.mrb[0].mxu0 %v4005
      %v4073 = vpop.f32.mrb[0].mxu0
      %v4074 = vadd.f32 %v4001, %v4073
      %v4075 = vpop.f32.mrb[0].mxu0
      %4076 = vdwg.mxu0
      %v4077 = vadd.f32 %v4074, 3.0
      %v4078 = vmax.f32 %v4077, 0.0
      %v4079 = vmin.f32 %v4078, 6.0
      %v4080 = vmul.f32 %v4079, 0.16666667
      %v4083 = vunpack.c.l.s4 1966171168
      %v4084 = vunpack.c.0.s8 %v4083
      %v4085 = vlaneseq
      %v4086 = vshrl.u32 %v4085, 7
      %v4087 = vsub.s32 %v4084, %v4086
      %v4088 = vrot.slane %v4080, %v4087
      %v4089 = vcombine.high %v4088, %v4088
      %v4091 = vunpack.c.l.s4 1966171168
      %v4092 = vunpack.c.0.s8 %v4091
      %v4093 = vlaneseq
      %v4094 = vshrl.u32 %v4093, 7
      %v4095 = vsub.s32 %v4092, %v4094
      %v4096 = vrot.slane %v4088, %v4095
      %v4098 = vunpack.c.l.s4 1966171168
      %v4099 = vunpack.c.0.s8 %v4098
      %v4100 = vlaneseq
      %v4101 = vshrl.u32 %v4100, 7
      %v4102 = vsub.s32 %v4099, %v4101
      %v4103 = vrot.slane %v4089, %v4102
      %v4104 = vlaneseq
      %v4105 = vshrl.u32 %v4104, 7
      %v4106 = vsub.s32 0, %v4105
      %v4107 = vrot.slane %v4096, %v4106
      %v4108 = vlaneseq
      %v4109 = vshrl.u32 %v4108, 7
      %v4110 = vsub.s32 0, %v4109
      %v4111 = vrot.slane %v4103, %v4110
      %v4114 = vmul.f32 %v3698, %v4107
      %v4115 = vmul.f32 %v3699, %v4107
      %v4116 = vmul.f32 %v3700, %v4107
      %v4117 = vmul.f32 %v3701, %v4107
      %v4118 = vmul.f32 %v3702, %v4107
      %v4119 = vmul.f32 %v3703, %v4107
      %v4120 = vmul.f32 %v3704, %v4107
      %v4121 = vmul.f32 %v3705, %v4107
      %v4122 = vmul.f32 %v3706, %v4107
      %v4123 = vmul.f32 %v3707, %v4107
      %v4124 = vmul.f32 %v3708, %v4107
      %v4125 = vmul.f32 %v3709, %v4107
      %v4126 = vmul.f32 %v3710, %v4107
      %v4127 = vmul.f32 %v3711, %v4107
      %v4128 = vmul.f32 %v3712, %v4107
      %v4129 = vmul.f32 %v3713, %v4107
      %v4130 = vmul.f32 %v3714, %v4107
      %v4131 = vmul.f32 %v3715, %v4107
      %v4132 = vmul.f32 %v3716, %v4107
      %v4133 = vmul.f32 %v3717, %v4107
      %v4134 = vmul.f32 %v3718, %v4107
      %v4135 = vmul.f32 %v3719, %v4107
      %v4136 = vmul.f32 %v3720, %v4107
      %v4137 = vmul.f32 %v3721, %v4107
      %v4138 = vmul.f32 %v3722, %v4107
      %v4139 = vmul.f32 %v3723, %v4107
      %v4140 = vmul.f32 %v3724, %v4107
      %v4141 = vmul.f32 %v3725, %v4107
      %v4142 = vmul.f32 %v3726, %v4107
      %v4143 = vmul.f32 %v3727, %v4107
      %v4144 = vmul.f32 %v3728, %v4107
      %v4145 = vmul.f32 %v3729, %v4107
      %v4146 = vmul.f32 %v3730, %v4111
      %v4147 = vmul.f32 %v3731, %v4111
      %v4148 = vmul.f32 %v3732, %v4111
      %v4149 = vmul.f32 %v3733, %v4111
      %v4150 = vmul.f32 %v3734, %v4111
      %v4151 = vmul.f32 %v3735, %v4111
      %v4152 = vmul.f32 %v3736, %v4111
      %v4153 = vmul.f32 %v3737, %v4111
      %v4154 = vmul.f32 %v3738, %v4111
      %v4155 = vmul.f32 %v3739, %v4111
      %v4156 = vmul.f32 %v3740, %v4111
      %v4157 = vmul.f32 %v3741, %v4111
      %v4158 = vmul.f32 %v3742, %v4111
      %v4159 = vmul.f32 %v3743, %v4111
      %v4160 = vmul.f32 %v3744, %v4111
      %v4161 = vmul.f32 %v3745, %v4111
      %v4162 = vmul.f32 %v3746, %v4111
      %v4163 = vmul.f32 %v3747, %v4111
      %v4164 = vmul.f32 %v3748, %v4111
      %v4165 = vmul.f32 %v3749, %v4111
      %v4166 = vmul.f32 %v3750, %v4111
      %v4167 = vmul.f32 %v3751, %v4111
      %v4168 = vmul.f32 %v3752, %v4111
      %v4169 = vmul.f32 %v3753, %v4111
      %v4170 = vmul.f32 %v3754, %v4111
      %v4171 = vmul.f32 %v3755, %v4111
      %v4172 = vmul.f32 %v3756, %v4111
      %v4173 = vmul.f32 %v3757, %v4111
      %v4174 = vmul.f32 %v3758, %v4111
      %v4175 = vmul.f32 %v3759, %v4111
      %v4176 = vmul.f32 %v3760, %v4111
      %v4177 = vmul.f32 %v3761, %v4111
      %v4178 = vpack.c.bf16 %v4115, %v4114
      %v4179 = vpack.c.bf16 %v4117, %v4116
      %v4180 = vpack.c.bf16 %v4119, %v4118
      %v4181 = vpack.c.bf16 %v4121, %v4120
      %v4182 = vpack.c.bf16 %v4123, %v4122
      %v4183 = vpack.c.bf16 %v4125, %v4124
      %v4184 = vpack.c.bf16 %v4127, %v4126
      %v4185 = vpack.c.bf16 %v4129, %v4128
      %v4186 = vpack.c.bf16 %v4131, %v4130
      %v4187 = vpack.c.bf16 %v4133, %v4132
      %v4188 = vpack.c.bf16 %v4135, %v4134
      %v4189 = vpack.c.bf16 %v4137, %v4136
      %v4190 = vpack.c.bf16 %v4139, %v4138
      %v4191 = vpack.c.bf16 %v4141, %v4140
      %v4192 = vpack.c.bf16 %v4143, %v4142
      %v4193 = vpack.c.bf16 %v4145, %v4144
      %v4194 = vpack.c.bf16 %v4147, %v4146
      %v4195 = vpack.c.bf16 %v4149, %v4148
      %v4196 = vpack.c.bf16 %v4151, %v4150
      %v4197 = vpack.c.bf16 %v4153, %v4152
      %v4198 = vpack.c.bf16 %v4155, %v4154
      %v4199 = vpack.c.bf16 %v4157, %v4156
      %v4200 = vpack.c.bf16 %v4159, %v4158
      %v4201 = vpack.c.bf16 %v4161, %v4160
      %v4202 = vpack.c.bf16 %v4163, %v4162
      %v4203 = vpack.c.bf16 %v4165, %v4164
      %v4204 = vpack.c.bf16 %v4167, %v4166
      %v4205 = vpack.c.bf16 %v4169, %v4168
      %v4206 = vpack.c.bf16 %v4171, %v4170
      %v4207 = vpack.c.bf16 %v4173, %v4172
      %v4208 = vpack.c.bf16 %v4175, %v4174
      %v4209 = vpack.c.bf16 %v4177, %v4176
      %v4210 = vld [vmem:[%s11] sm:$0xf]
      %v4211 = vld [vmem:[%s11 + $0x4] sm:$0xf]
      %v4212 = vld [vmem:[%s11 + $0x8] sm:$0xf]
      %v4213 = vld [vmem:[%s11 + $0xc] sm:$0xf]
      %v4214 = vld [vmem:[%s11 + $0x10] sm:$0xf]
      %v4215 = vld [vmem:[%s11 + $0x14] sm:$0xf]
      %v4216 = vld [vmem:[%s11 + $0x18] sm:$0xf]
      %v4217 = vld [vmem:[%s11 + $0x1c] sm:$0xf]
      %v4226 = vunpack.c.l.b16 %v4210
      %v4227 = vunpack.c.l.b16 %v4211
      %v4228 = vunpack.c.l.b16 %v4212
      %v4229 = vunpack.c.l.b16 %v4213
      %v4230 = vunpack.c.l.b16 %v4214
      %v4231 = vunpack.c.l.b16 %v4215
      %v4232 = vunpack.c.l.b16 %v4216
      %v4233 = vunpack.c.l.b16 %v4217
      %v4234 = vpack.c.b16 %v4227, %v4226
      %v4235 = vpack.c.b16 %v4229, %v4228
      %v4236 = vpack.c.b16 %v4231, %v4230
      %v4237 = vpack.c.b16 %v4233, %v4232
      %v4243 = vsel %vm1388, %v4178, 0
      %v4246 = vsel %vm1388, %v4179, 0
      %v4249 = vsel %vm1388, %v4180, 0
      %v4252 = vsel %vm1388, %v4181, 0
      %v4255 = vsel %vm1388, %v4182, 0
      %v4258 = vsel %vm1388, %v4183, 0
      %v4261 = vsel %vm1388, %v4184, 0
      %v4264 = vsel %vm1388, %v4185, 0
      %v4267 = vsel %vm1388, %v4186, 0
      %v4270 = vsel %vm1388, %v4187, 0
      %v4273 = vsel %vm1388, %v4188, 0
      %v4276 = vsel %vm1388, %v4189, 0
      %v4279 = vsel %vm1388, %v4190, 0
      %v4282 = vsel %vm1388, %v4191, 0
      %v4285 = vsel %vm1388, %v4192, 0
      %v4288 = vsel %vm1388, %v4193, 0
      %v4291 = vsel %vm1388, %v4194, 0
      %v4294 = vsel %vm1388, %v4195, 0
      %v4297 = vsel %vm1388, %v4196, 0
      %v4300 = vsel %vm1388, %v4197, 0
      %v4303 = vsel %vm1388, %v4198, 0
      %v4306 = vsel %vm1388, %v4199, 0
      %v4309 = vsel %vm1388, %v4200, 0
      %v4312 = vsel %vm1388, %v4201, 0
      %v4315 = vsel %vm1388, %v4202, 0
      %v4318 = vsel %vm1388, %v4203, 0
      %v4321 = vsel %vm1388, %v4204, 0
      %v4324 = vsel %vm1388, %v4205, 0
      %v4327 = vsel %vm1388, %v4206, 0
      %v4330 = vsel %vm1388, %v4207, 0
      %v4333 = vsel %vm1388, %v4208, 0
      %v4336 = vsel %vm1388, %v4209, 0
      %4338 = vmatprep.subr.bf16.mxu0 0
      %4339 = vmatpush1.bf16.msra.mxu0 %v4234
      %4340 = vmatprep.subr.bf16.mxu0 0
      %4341 = vmatpush1.bf16.msra.mxu0 %v4235
      %4342 = vmatprep.subr.bf16.mxu0 0
      %4343 = vmatpush1.bf16.msra.mxu0 %v4236
      %4344 = vmatprep.subr.bf16.mxu0 0
      %4345 = vmatpush1.bf16.msra.mxu0 %v4237
      %4346 = vmatprep.subr.bf16.mxu0 0
      %4347 = vmatpush1.bf16.msra.mxu0 0
      %4348 = vmatprep.subr.bf16.mxu0 0
      %4349 = vmatpush1.bf16.msra.mxu0 0
      %4350 = vmatprep.subr.bf16.mxu0 0
      %4351 = vmatpush1.bf16.msra.mxu0 0
      %4352 = vmatprep.subr.bf16.mxu0 0
      %4353 = vmatpush1.bf16.msra.mxu0 0
      %4354 = vmatprep.subr.bf16.mxu0 0
      %4355 = vmatpush1.bf16.msra.mxu0 0
      %4356 = vmatprep.subr.bf16.mxu0 0
      %4357 = vmatpush1.bf16.msra.mxu0 0
      %4358 = vmatprep.subr.bf16.mxu0 0
      %4359 = vmatpush1.bf16.msra.mxu0 0
      %4360 = vmatprep.subr.bf16.mxu0 0
      %4361 = vmatpush1.bf16.msra.mxu0 0
      %4362 = vmatprep.subr.bf16.mxu0 0
      %4363 = vmatpush1.bf16.msra.mxu0 0
      %4364 = vmatprep.subr.bf16.mxu0 0
      %4365 = vmatpush1.bf16.msra.mxu0 0
      %4366 = vmatprep.subr.bf16.mxu0 0
      %4367 = vmatpush1.bf16.msra.mxu0 0
      %4368 = vmatprep.subr.bf16.mxu0 0
      %4369 = vmatpush1.bf16.msra.mxu0 0
      %4370 = vmatprep.mubr.bf16.mxu0 0
      %4371 = vmatmul.mubr.bf16.gmra.mrb[0].mxu0 %v4243
      %v4372 = vpop.f32.mrb[0].mxu0
      %v4373 = vadd.f32 0.0, %v4372
      %v4374 = vpop.f32.mrb[0].mxu0
      %v4375 = vpop.f32.mrb[0].mxu0
      %v4376 = vadd.f32 0.0, %v4375
      %v4377 = vpop.f32.mrb[0].mxu0
      %4378 = vmatprep.mubr.bf16.mxu0 0
      %4379 = vmatmul.mubr.bf16.gmra.mrb[0].mxu0 %v4246
      %v4380 = vpop.f32.mrb[0].mxu0
      %v4381 = vadd.f32 0.0, %v4380
      %v4382 = vpop.f32.mrb[0].mxu0
      %v4383 = vpop.f32.mrb[0].mxu0
      %v4384 = vadd.f32 0.0, %v4383
      %v4385 = vpop.f32.mrb[0].mxu0
      %4386 = vmatprep.mubr.bf16.mxu0 0
      %4387 = vmatmul.mubr.bf16.gmra.mrb[0].mxu0 %v4249
      %v4388 = vpop.f32.mrb[0].mxu0
      %v4389 = vadd.f32 0.0, %v4388
      %v4390 = vpop.f32.mrb[0].mxu0
      %v4391 = vpop.f32.mrb[0].mxu0
      %v4392 = vadd.f32 0.0, %v4391
      %v4393 = vpop.f32.mrb[0].mxu0
      %4394 = vmatprep.mubr.bf16.mxu0 0
      %4395 = vmatmul.mubr.bf16.gmra.mrb[0].mxu0 %v4252
      %v4396 = vpop.f32.mrb[0].mxu0
      %v4397 = vadd.f32 0.0, %v4396
      %v4398 = vpop.f32.mrb[0].mxu0
      %v4399 = vpop.f32.mrb[0].mxu0
      %v4400 = vadd.f32 0.0, %v4399
      %v4401 = vpop.f32.mrb[0].mxu0
      %4402 = vmatprep.mubr.bf16.mxu0 0
      %4403 = vmatmul.mubr.bf16.gmra.mrb[0].mxu0 %v4255
      %v4404 = vpop.f32.mrb[0].mxu0
      %v4405 = vadd.f32 0.0, %v4404
      %v4406 = vpop.f32.mrb[0].mxu0
      %v4407 = vpop.f32.mrb[0].mxu0
      %v4408 = vadd.f32 0.0, %v4407
      %v4409 = vpop.f32.mrb[0].mxu0
      %4410 = vmatprep.mubr.bf16.mxu0 0
      %4411 = vmatmul.mubr.bf16.gmra.mrb[0].mxu0 %v4258
      %v4412 = vpop.f32.mrb[0].mxu0
      %v4413 = vadd.f32 0.0, %v4412
      %v4414 = vpop.f32.mrb[0].mxu0
      %v4415 = vpop.f32.mrb[0].mxu0
      %v4416 = vadd.f32 0.0, %v4415
      %v4417 = vpop.f32.mrb[0].mxu0
      %4418 = vmatprep.mubr.bf16.mxu0 0
      %4419 = vmatmul.mubr.bf16.gmra.mrb[0].mxu0 %v4261
      %v4420 = vpop.f32.mrb[0].mxu0
      %v4421 = vadd.f32 0.0, %v4420
      %v4422 = vpop.f32.mrb[0].mxu0
      %v4423 = vpop.f32.mrb[0].mxu0
      %v4424 = vadd.f32 0.0, %v4423
      %v4425 = vpop.f32.mrb[0].mxu0
      %4426 = vmatprep.mubr.bf16.mxu0 0
      %4427 = vmatmul.mubr.bf16.gmra.mrb[0].mxu0 %v4264
      %v4428 = vpop.f32.mrb[0].mxu0
      %v4429 = vadd.f32 0.0, %v4428
      %v4430 = vpop.f32.mrb[0].mxu0
      %v4431 = vpop.f32.mrb[0].mxu0
      %v4432 = vadd.f32 0.0, %v4431
      %v4433 = vpop.f32.mrb[0].mxu0
      %4434 = vmatprep.mubr.bf16.mxu0 0
      %4435 = vmatmul.mubr.bf16.gmra.mrb[0].mxu0 %v4267
      %v4436 = vpop.f32.mrb[0].mxu0
      %v4437 = vadd.f32 0.0, %v4436
      %v4438 = vpop.f32.mrb[0].mxu0
      %v4439 = vpop.f32.mrb[0].mxu0
      %v4440 = vadd.f32 0.0, %v4439
      %v4441 = vpop.f32.mrb[0].mxu0
      %4442 = vmatprep.mubr.bf16.mxu0 0
      %4443 = vmatmul.mubr.bf16.gmra.mrb[0].mxu0 %v4270
      %v4444 = vpop.f32.mrb[0].mxu0
      %v4445 = vadd.f32 0.0, %v4444
      %v4446 = vpop.f32.mrb[0].mxu0
      %v4447 = vpop.f32.mrb[0].mxu0
      %v4448 = vadd.f32 0.0, %v4447
      %v4449 = vpop.f32.mrb[0].mxu0
      %4450 = vmatprep.mubr.bf16.mxu0 0
      %4451 = vmatmul.mubr.bf16.gmra.mrb[0].mxu0 %v4273
      %v4452 = vpop.f32.mrb[0].mxu0
      %v4453 = vadd.f32 0.0, %v4452
      %v4454 = vpop.f32.mrb[0].mxu0
      %v4455 = vpop.f32.mrb[0].mxu0
      %v4456 = vadd.f32 0.0, %v4455
      %v4457 = vpop.f32.mrb[0].mxu0
      %4458 = vmatprep.mubr.bf16.mxu0 0
      %4459 = vmatmul.mubr.bf16.gmra.mrb[0].mxu0 %v4276
      %v4460 = vpop.f32.mrb[0].mxu0
      %v4461 = vadd.f32 0.0, %v4460
      %v4462 = vpop.f32.mrb[0].mxu0
      %v4463 = vpop.f32.mrb[0].mxu0
      %v4464 = vadd.f32 0.0, %v4463
      %v4465 = vpop.f32.mrb[0].mxu0
      %4466 = vmatprep.mubr.bf16.mxu0 0
      %4467 = vmatmul.mubr.bf16.gmra.mrb[0].mxu0 %v4279
      %v4468 = vpop.f32.mrb[0].mxu0
      %v4469 = vadd.f32 0.0, %v4468
      %v4470 = vpop.f32.mrb[0].mxu0
      %v4471 = vpop.f32.mrb[0].mxu0
      %v4472 = vadd.f32 0.0, %v4471
      %v4473 = vpop.f32.mrb[0].mxu0
      %4474 = vmatprep.mubr.bf16.mxu0 0
      %4475 = vmatmul.mubr.bf16.gmra.mrb[0].mxu0 %v4282
      %v4476 = vpop.f32.mrb[0].mxu0
      %v4477 = vadd.f32 0.0, %v4476
      %v4478 = vpop.f32.mrb[0].mxu0
      %v4479 = vpop.f32.mrb[0].mxu0
      %v4480 = vadd.f32 0.0, %v4479
      %v4481 = vpop.f32.mrb[0].mxu0
      %4482 = vmatprep.mubr.bf16.mxu0 0
      %4483 = vmatmul.mubr.bf16.gmra.mrb[0].mxu0 %v4285
      %v4484 = vpop.f32.mrb[0].mxu0
      %v4485 = vadd.f32 0.0, %v4484
      %v4486 = vpop.f32.mrb[0].mxu0
      %v4487 = vpop.f32.mrb[0].mxu0
      %v4488 = vadd.f32 0.0, %v4487
      %v4489 = vpop.f32.mrb[0].mxu0
      %4490 = vmatprep.mubr.bf16.mxu0 0
      %4491 = vmatmul.mubr.bf16.gmra.mrb[0].mxu0 %v4288
      %v4492 = vpop.f32.mrb[0].mxu0
      %v4493 = vadd.f32 0.0, %v4492
      %v4494 = vpop.f32.mrb[0].mxu0
      %v4495 = vpop.f32.mrb[0].mxu0
      %v4496 = vadd.f32 0.0, %v4495
      %v4497 = vpop.f32.mrb[0].mxu0
      %4498 = vmatprep.mubr.bf16.mxu0 0
      %4499 = vmatmul.mubr.bf16.gmra.mrb[0].mxu0 %v4291
      %v4500 = vpop.f32.mrb[0].mxu0
      %v4501 = vadd.f32 0.0, %v4500
      %v4502 = vpop.f32.mrb[0].mxu0
      %v4503 = vpop.f32.mrb[0].mxu0
      %v4504 = vadd.f32 0.0, %v4503
      %v4505 = vpop.f32.mrb[0].mxu0
      %4506 = vmatprep.mubr.bf16.mxu0 0
      %4507 = vmatmul.mubr.bf16.gmra.mrb[0].mxu0 %v4294
      %v4508 = vpop.f32.mrb[0].mxu0
      %v4509 = vadd.f32 0.0, %v4508
      %v4510 = vpop.f32.mrb[0].mxu0
      %v4511 = vpop.f32.mrb[0].mxu0
      %v4512 = vadd.f32 0.0, %v4511
      %v4513 = vpop.f32.mrb[0].mxu0
      %4514 = vmatprep.mubr.bf16.mxu0 0
      %4515 = vmatmul.mubr.bf16.gmra.mrb[0].mxu0 %v4297
      %v4516 = vpop.f32.mrb[0].mxu0
      %v4517 = vadd.f32 0.0, %v4516
      %v4518 = vpop.f32.mrb[0].mxu0
      %v4519 = vpop.f32.mrb[0].mxu0
      %v4520 = vadd.f32 0.0, %v4519
      %v4521 = vpop.f32.mrb[0].mxu0
      %4522 = vmatprep.mubr.bf16.mxu0 0
      %4523 = vmatmul.mubr.bf16.gmra.mrb[0].mxu0 %v4300
      %v4524 = vpop.f32.mrb[0].mxu0
      %v4525 = vadd.f32 0.0, %v4524
      %v4526 = vpop.f32.mrb[0].mxu0
      %v4527 = vpop.f32.mrb[0].mxu0
      %v4528 = vadd.f32 0.0, %v4527
      %v4529 = vpop.f32.mrb[0].mxu0
      %4530 = vmatprep.mubr.bf16.mxu0 0
      %4531 = vmatmul.mubr.bf16.gmra.mrb[0].mxu0 %v4303
      %v4532 = vpop.f32.mrb[0].mxu0
      %v4533 = vadd.f32 0.0, %v4532
      %v4534 = vpop.f32.mrb[0].mxu0
      %v4535 = vpop.f32.mrb[0].mxu0
      %v4536 = vadd.f32 0.0, %v4535
      %v4537 = vpop.f32.mrb[0].mxu0
      %4538 = vmatprep.mubr.bf16.mxu0 0
      %4539 = vmatmul.mubr.bf16.gmra.mrb[0].mxu0 %v4306
      %v4540 = vpop.f32.mrb[0].mxu0
      %v4541 = vadd.f32 0.0, %v4540
      %v4542 = vpop.f32.mrb[0].mxu0
      %v4543 = vpop.f32.mrb[0].mxu0
      %v4544 = vadd.f32 0.0, %v4543
      %v4545 = vpop.f32.mrb[0].mxu0
      %4546 = vmatprep.mubr.bf16.mxu0 0
      %4547 = vmatmul.mubr.bf16.gmra.mrb[0].mxu0 %v4309
      %v4548 = vpop.f32.mrb[0].mxu0
      %v4549 = vadd.f32 0.0, %v4548
      %v4550 = vpop.f32.mrb[0].mxu0
      %v4551 = vpop.f32.mrb[0].mxu0
      %v4552 = vadd.f32 0.0, %v4551
      %v4553 = vpop.f32.mrb[0].mxu0
      %4554 = vmatprep.mubr.bf16.mxu0 0
      %4555 = vmatmul.mubr.bf16.gmra.mrb[0].mxu0 %v4312
      %v4556 = vpop.f32.mrb[0].mxu0
      %v4557 = vadd.f32 0.0, %v4556
      %v4558 = vpop.f32.mrb[0].mxu0
      %v4559 = vpop.f32.mrb[0].mxu0
      %v4560 = vadd.f32 0.0, %v4559
      %v4561 = vpop.f32.mrb[0].mxu0
      %4562 = vmatprep.mubr.bf16.mxu0 0
      %4563 = vmatmul.mubr.bf16.gmra.mrb[0].mxu0 %v4315
      %v4564 = vpop.f32.mrb[0].mxu0
      %v4565 = vadd.f32 0.0, %v4564
      %v4566 = vpop.f32.mrb[0].mxu0
      %v4567 = vpop.f32.mrb[0].mxu0
      %v4568 = vadd.f32 0.0, %v4567
      %v4569 = vpop.f32.mrb[0].mxu0
      %4570 = vmatprep.mubr.bf16.mxu0 0
      %4571 = vmatmul.mubr.bf16.gmra.mrb[0].mxu0 %v4318
      %v4572 = vpop.f32.mrb[0].mxu0
      %v4573 = vadd.f32 0.0, %v4572
      %v4574 = vpop.f32.mrb[0].mxu0
      %v4575 = vpop.f32.mrb[0].mxu0
      %v4576 = vadd.f32 0.0, %v4575
      %v4577 = vpop.f32.mrb[0].mxu0
      %4578 = vmatprep.mubr.bf16.mxu0 0
      %4579 = vmatmul.mubr.bf16.gmra.mrb[0].mxu0 %v4321
      %v4580 = vpop.f32.mrb[0].mxu0
      %v4581 = vadd.f32 0.0, %v4580
      %v4582 = vpop.f32.mrb[0].mxu0
      %v4583 = vpop.f32.mrb[0].mxu0
      %v4584 = vadd.f32 0.0, %v4583
      %v4585 = vpop.f32.mrb[0].mxu0
      %4586 = vmatprep.mubr.bf16.mxu0 0
      %4587 = vmatmul.mubr.bf16.gmra.mrb[0].mxu0 %v4324
      %v4588 = vpop.f32.mrb[0].mxu0
      %v4589 = vadd.f32 0.0, %v4588
      %v4590 = vpop.f32.mrb[0].mxu0
      %v4591 = vpop.f32.mrb[0].mxu0
      %v4592 = vadd.f32 0.0, %v4591
      %v4593 = vpop.f32.mrb[0].mxu0
      %4594 = vmatprep.mubr.bf16.mxu0 0
      %4595 = vmatmul.mubr.bf16.gmra.mrb[0].mxu0 %v4327
      %v4596 = vpop.f32.mrb[0].mxu0
      %v4597 = vadd.f32 0.0, %v4596
      %v4598 = vpop.f32.mrb[0].mxu0
      %v4599 = vpop.f32.mrb[0].mxu0
      %v4600 = vadd.f32 0.0, %v4599
      %v4601 = vpop.f32.mrb[0].mxu0
      %4602 = vmatprep.mubr.bf16.mxu0 0
      %4603 = vmatmul.mubr.bf16.gmra.mrb[0].mxu0 %v4330
      %v4604 = vpop.f32.mrb[0].mxu0
      %v4605 = vadd.f32 0.0, %v4604
      %v4606 = vpop.f32.mrb[0].mxu0
      %v4607 = vpop.f32.mrb[0].mxu0
      %v4608 = vadd.f32 0.0, %v4607
      %v4609 = vpop.f32.mrb[0].mxu0
      %4610 = vmatprep.mubr.bf16.mxu0 0
      %4611 = vmatmul.mubr.bf16.gmra.mrb[0].mxu0 %v4333
      %v4612 = vpop.f32.mrb[0].mxu0
      %v4613 = vadd.f32 0.0, %v4612
      %v4614 = vpop.f32.mrb[0].mxu0
      %v4615 = vpop.f32.mrb[0].mxu0
      %v4616 = vadd.f32 0.0, %v4615
      %v4617 = vpop.f32.mrb[0].mxu0
      %4618 = vmatprep.mubr.bf16.mxu0 0
      %4619 = vmatmul.mubr.bf16.gmra.mrb[0].mxu0 %v4336
      %v4620 = vpop.f32.mrb[0].mxu0
      %v4621 = vadd.f32 0.0, %v4620
      %v4622 = vpop.f32.mrb[0].mxu0
      %v4623 = vpop.f32.mrb[0].mxu0
      %v4624 = vadd.f32 0.0, %v4623
      %v4625 = vpop.f32.mrb[0].mxu0
      %4626 = vdwg.mxu0
      %v4627 = vld [vmem:[%s12] sm:$0x1]
      %v4629 = vlaneseq
      %v4630 = vshrl.u32 %v4629, 7
      %v4631 = vsub.s32 0, %v4630
      %v4632 = vrot.slane %v4627, %v4631
      %v4634 = vmul.f32 %v4373, %v4632
      %v4635 = vmul.f32 %v4376, %v4632
      %v4636 = vmul.f32 %v4381, %v4632
      %v4637 = vmul.f32 %v4384, %v4632
      %v4638 = vmul.f32 %v4389, %v4632
      %v4639 = vmul.f32 %v4392, %v4632
      %v4640 = vmul.f32 %v4397, %v4632
      %v4641 = vmul.f32 %v4400, %v4632
      %v4642 = vmul.f32 %v4405, %v4632
      %v4643 = vmul.f32 %v4408, %v4632
      %v4644 = vmul.f32 %v4413, %v4632
      %v4645 = vmul.f32 %v4416, %v4632
      %v4646 = vmul.f32 %v4421, %v4632
      %v4647 = vmul.f32 %v4424, %v4632
      %v4648 = vmul.f32 %v4429, %v4632
      %v4649 = vmul.f32 %v4432, %v4632
      %v4650 = vmul.f32 %v4437, %v4632
      %v4651 = vmul.f32 %v4440, %v4632
      %v4652 = vmul.f32 %v4445, %v4632
      %v4653 = vmul.f32 %v4448, %v4632
      %v4654 = vmul.f32 %v4453, %v4632
      %v4655 = vmul.f32 %v4456, %v4632
      %v4656 = vmul.f32 %v4461, %v4632
      %v4657 = vmul.f32 %v4464, %v4632
      %v4658 = vmul.f32 %v4469, %v4632
      %v4659 = vmul.f32 %v4472, %v4632
      %v4660 = vmul.f32 %v4477, %v4632
      %v4661 = vmul.f32 %v4480, %v4632
      %v4662 = vmul.f32 %v4485, %v4632
      %v4663 = vmul.f32 %v4488, %v4632
      %v4664 = vmul.f32 %v4493, %v4632
      %v4665 = vmul.f32 %v4496, %v4632
      %v4666 = vmul.f32 %v4501, %v4632
      %v4667 = vmul.f32 %v4504, %v4632
      %v4668 = vmul.f32 %v4509, %v4632
      %v4669 = vmul.f32 %v4512, %v4632
      %v4670 = vmul.f32 %v4517, %v4632
      %v4671 = vmul.f32 %v4520, %v4632
      %v4672 = vmul.f32 %v4525, %v4632
      %v4673 = vmul.f32 %v4528, %v4632
      %v4674 = vmul.f32 %v4533, %v4632
      %v4675 = vmul.f32 %v4536, %v4632
      %v4676 = vmul.f32 %v4541, %v4632
      %v4677 = vmul.f32 %v4544, %v4632
      %v4678 = vmul.f32 %v4549, %v4632
      %v4679 = vmul.f32 %v4552, %v4632
      %v4680 = vmul.f32 %v4557, %v4632
      %v4681 = vmul.f32 %v4560, %v4632
      %v4682 = vmul.f32 %v4565, %v4632
      %v4683 = vmul.f32 %v4568, %v4632
      %v4684 = vmul.f32 %v4573, %v4632
      %v4685 = vmul.f32 %v4576, %v4632
      %v4686 = vmul.f32 %v4581, %v4632
      %v4687 = vmul.f32 %v4584, %v4632
      %v4688 = vmul.f32 %v4589, %v4632
      %v4689 = vmul.f32 %v4592, %v4632
      %v4690 = vmul.f32 %v4597, %v4632
      %v4691 = vmul.f32 %v4600, %v4632
      %v4692 = vmul.f32 %v4605, %v4632
      %v4693 = vmul.f32 %v4608, %v4632
      %v4694 = vmul.f32 %v4613, %v4632
      %v4695 = vmul.f32 %v4616, %v4632
      %v4696 = vmul.f32 %v4621, %v4632
      %v4697 = vmul.f32 %v4624, %v4632
      %v4698 = vld [vmem:[%s13] sm:$0x1]
      %v4700 = vlaneseq
      %v4701 = vshrl.u32 %v4700, 7
      %v4702 = vsub.s32 0, %v4701
      %v4703 = vrot.slane %v4698, %v4702
      %v4705 = vadd.f32 %v4634, %v4703
      %v4706 = vadd.f32 %v4635, %v4703
      %v4707 = vadd.f32 %v4636, %v4703
      %v4708 = vadd.f32 %v4637, %v4703
      %v4709 = vadd.f32 %v4638, %v4703
      %v4710 = vadd.f32 %v4639, %v4703
      %v4711 = vadd.f32 %v4640, %v4703
      %v4712 = vadd.f32 %v4641, %v4703
      %v4713 = vadd.f32 %v4642, %v4703
      %v4714 = vadd.f32 %v4643, %v4703
      %v4715 = vadd.f32 %v4644, %v4703
      %v4716 = vadd.f32 %v4645, %v4703
      %v4717 = vadd.f32 %v4646, %v4703
      %v4718 = vadd.f32 %v4647, %v4703
      %v4719 = vadd.f32 %v4648, %v4703
      %v4720 = vadd.f32 %v4649, %v4703
      %v4721 = vadd.f32 %v4650, %v4703
      %v4722 = vadd.f32 %v4651, %v4703
      %v4723 = vadd.f32 %v4652, %v4703
      %v4724 = vadd.f32 %v4653, %v4703
      %v4725 = vadd.f32 %v4654, %v4703
      %v4726 = vadd.f32 %v4655, %v4703
      %v4727 = vadd.f32 %v4656, %v4703
      %v4728 = vadd.f32 %v4657, %v4703
      %v4729 = vadd.f32 %v4658, %v4703
      %v4730 = vadd.f32 %v4659, %v4703
      %v4731 = vadd.f32 %v4660, %v4703
      %v4732 = vadd.f32 %v4661, %v4703
      %v4733 = vadd.f32 %v4662, %v4703
      %v4734 = vadd.f32 %v4663, %v4703
      %v4735 = vadd.f32 %v4664, %v4703
      %v4736 = vadd.f32 %v4665, %v4703
      %v4737 = vadd.f32 %v4666, %v4703
      %v4738 = vadd.f32 %v4667, %v4703
      %v4739 = vadd.f32 %v4668, %v4703
      %v4740 = vadd.f32 %v4669, %v4703
      %v4741 = vadd.f32 %v4670, %v4703
      %v4742 = vadd.f32 %v4671, %v4703
      %v4743 = vadd.f32 %v4672, %v4703
      %v4744 = vadd.f32 %v4673, %v4703
      %v4745 = vadd.f32 %v4674, %v4703
      %v4746 = vadd.f32 %v4675, %v4703
      %v4747 = vadd.f32 %v4676, %v4703
      %v4748 = vadd.f32 %v4677, %v4703
      %v4749 = vadd.f32 %v4678, %v4703
      %v4750 = vadd.f32 %v4679, %v4703
      %v4751 = vadd.f32 %v4680, %v4703
      %v4752 = vadd.f32 %v4681, %v4703
      %v4753 = vadd.f32 %v4682, %v4703
      %v4754 = vadd.f32 %v4683, %v4703
      %v4755 = vadd.f32 %v4684, %v4703
      %v4756 = vadd.f32 %v4685, %v4703
      %v4757 = vadd.f32 %v4686, %v4703
      %v4758 = vadd.f32 %v4687, %v4703
      %v4759 = vadd.f32 %v4688, %v4703
      %v4760 = vadd.f32 %v4689, %v4703
      %v4761 = vadd.f32 %v4690, %v4703
      %v4762 = vadd.f32 %v4691, %v4703
      %v4763 = vadd.f32 %v4692, %v4703
      %v4764 = vadd.f32 %v4693, %v4703
      %v4765 = vadd.f32 %v4694, %v4703
      %v4766 = vadd.f32 %v4695, %v4703
      %v4767 = vadd.f32 %v4696, %v4703
      %v4768 = vadd.f32 %v4697, %v4703
      %v4769 = vld [vmem:[%s467] sm:$0xff]
      %v4770 = vld [vmem:[%s467 + $0x8] sm:$0xff]
      %v4771 = vld [vmem:[%s467 + $0x10] sm:$0xff]
      %v4772 = vld [vmem:[%s467 + $0x18] sm:$0xff]
      %v4773 = vld [vmem:[%s467 + $0x20] sm:$0xff]
      %v4774 = vld [vmem:[%s467 + $0x28] sm:$0xff]
      %v4775 = vld [vmem:[%s467 + $0x30] sm:$0xff]
      %v4776 = vld [vmem:[%s467 + $0x38] sm:$0xff]
      %v4777 = vld [vmem:[%s467 + $0x40] sm:$0xff]
      %v4778 = vld [vmem:[%s467 + $0x48] sm:$0xff]
      %v4779 = vld [vmem:[%s467 + $0x50] sm:$0xff]
      %v4780 = vld [vmem:[%s467 + $0x58] sm:$0xff]
      %v4781 = vld [vmem:[%s467 + $0x60] sm:$0xff]
      %v4782 = vld [vmem:[%s467 + $0x68] sm:$0xff]
      %v4783 = vld [vmem:[%s467 + $0x70] sm:$0xff]
      %v4784 = vld [vmem:[%s467 + $0x78] sm:$0xff]
      %v4785 = vld [vmem:[%s467 + $0x80] sm:$0xff]
      %v4786 = vld [vmem:[%s467 + $0x88] sm:$0xff]
      %v4787 = vld [vmem:[%s467 + $0x90] sm:$0xff]
      %v4788 = vld [vmem:[%s467 + $0x98] sm:$0xff]
      %v4789 = vld [vmem:[%s467 + $0xa0] sm:$0xff]
      %v4790 = vld [vmem:[%s467 + $0xa8] sm:$0xff]
      %v4791 = vld [vmem:[%s467 + $0xb0] sm:$0xff]
      %v4792 = vld [vmem:[%s467 + $0xb8] sm:$0xff]
      %v4793 = vld [vmem:[%s467 + $0xc0] sm:$0xff]
      %v4794 = vld [vmem:[%s467 + $0xc8] sm:$0xff]
      %v4795 = vld [vmem:[%s467 + $0xd0] sm:$0xff]
      %v4796 = vld [vmem:[%s467 + $0xd8] sm:$0xff]
      %v4797 = vld [vmem:[%s467 + $0xe0] sm:$0xff]
      %v4798 = vld [vmem:[%s467 + $0xe8] sm:$0xff]
      %v4799 = vld [vmem:[%s467 + $0xf0] sm:$0xff]
      %v4800 = vld [vmem:[%s467 + $0xf8] sm:$0xff]
      %v4801 = vld [vmem:[%s467 + $0x100] sm:$0xff]
      %v4802 = vld [vmem:[%s467 + $0x108] sm:$0xff]
      %v4803 = vld [vmem:[%s467 + $0x110] sm:$0xff]
      %v4804 = vld [vmem:[%s467 + $0x118] sm:$0xff]
      %v4805 = vld [vmem:[%s467 + $0x120] sm:$0xff]
      %v4806 = vld [vmem:[%s467 + $0x128] sm:$0xff]
      %v4807 = vld [vmem:[%s467 + $0x130] sm:$0xff]
      %v4808 = vld [vmem:[%s467 + $0x138] sm:$0xff]
      %v4809 = vld [vmem:[%s467 + $0x140] sm:$0xff]
      %v4810 = vld [vmem:[%s467 + $0x148] sm:$0xff]
      %v4811 = vld [vmem:[%s467 + $0x150] sm:$0xff]
      %v4812 = vld [vmem:[%s467 + $0x158] sm:$0xff]
      %v4813 = vld [vmem:[%s467 + $0x160] sm:$0xff]
      %v4814 = vld [vmem:[%s467 + $0x168] sm:$0xff]
      %v4815 = vld [vmem:[%s467 + $0x170] sm:$0xff]
      %v4816 = vld [vmem:[%s467 + $0x178] sm:$0xff]
      %v4817 = vld [vmem:[%s467 + $0x180] sm:$0xff]
      %v4818 = vld [vmem:[%s467 + $0x188] sm:$0xff]
      %v4819 = vld [vmem:[%s467 + $0x190] sm:$0xff]
      %v4820 = vld [vmem:[%s467 + $0x198] sm:$0xff]
      %v4821 = vld [vmem:[%s467 + $0x1a0] sm:$0xff]
      %v4822 = vld [vmem:[%s467 + $0x1a8] sm:$0xff]
      %v4823 = vld [vmem:[%s467 + $0x1b0] sm:$0xff]
      %v4824 = vld [vmem:[%s467 + $0x1b8] sm:$0xff]
      %v4825 = vld [vmem:[%s467 + $0x1c0] sm:$0xff]
      %v4826 = vld [vmem:[%s467 + $0x1c8] sm:$0xff]
      %v4827 = vld [vmem:[%s467 + $0x1d0] sm:$0xff]
      %v4828 = vld [vmem:[%s467 + $0x1d8] sm:$0xff]
      %v4829 = vld [vmem:[%s467 + $0x1e0] sm:$0xff]
      %v4830 = vld [vmem:[%s467 + $0x1e8] sm:$0xff]
      %v4831 = vld [vmem:[%s467 + $0x1f0] sm:$0xff]
      %v4832 = vld [vmem:[%s467 + $0x1f8] sm:$0xff]
      %v4833 = vadd.f32 %v4705, %v4769
      %v4834 = vadd.f32 %v4706, %v4770
      %v4835 = vadd.f32 %v4707, %v4771
      %v4836 = vadd.f32 %v4708, %v4772
      %v4837 = vadd.f32 %v4709, %v4773
      %v4838 = vadd.f32 %v4710, %v4774
      %v4839 = vadd.f32 %v4711, %v4775
      %v4840 = vadd.f32 %v4712, %v4776
      %v4841 = vadd.f32 %v4713, %v4777
      %v4842 = vadd.f32 %v4714, %v4778
      %v4843 = vadd.f32 %v4715, %v4779
      %v4844 = vadd.f32 %v4716, %v4780
      %v4845 = vadd.f32 %v4717, %v4781
      %v4846 = vadd.f32 %v4718, %v4782
      %v4847 = vadd.f32 %v4719, %v4783
      %v4848 = vadd.f32 %v4720, %v4784
      %v4849 = vadd.f32 %v4721, %v4785
      %v4850 = vadd.f32 %v4722, %v4786
      %v4851 = vadd.f32 %v4723, %v4787
      %v4852 = vadd.f32 %v4724, %v4788
      %v4853 = vadd.f32 %v4725, %v4789
      %v4854 = vadd.f32 %v4726, %v4790
      %v4855 = vadd.f32 %v4727, %v4791
      %v4856 = vadd.f32 %v4728, %v4792
      %v4857 = vadd.f32 %v4729, %v4793
      %v4858 = vadd.f32 %v4730, %v4794
      %v4859 = vadd.f32 %v4731, %v4795
      %v4860 = vadd.f32 %v4732, %v4796
      %v4861 = vadd.f32 %v4733, %v4797
      %v4862 = vadd.f32 %v4734, %v4798
      %v4863 = vadd.f32 %v4735, %v4799
      %v4864 = vadd.f32 %v4736, %v4800
      %v4865 = vadd.f32 %v4737, %v4801
      %v4866 = vadd.f32 %v4738, %v4802
      %v4867 = vadd.f32 %v4739, %v4803
      %v4868 = vadd.f32 %v4740, %v4804
      %v4869 = vadd.f32 %v4741, %v4805
      %v4870 = vadd.f32 %v4742, %v4806
      %v4871 = vadd.f32 %v4743, %v4807
      %v4872 = vadd.f32 %v4744, %v4808
      %v4873 = vadd.f32 %v4745, %v4809
      %v4874 = vadd.f32 %v4746, %v4810
      %v4875 = vadd.f32 %v4747, %v4811
      %v4876 = vadd.f32 %v4748, %v4812
      %v4877 = vadd.f32 %v4749, %v4813
      %v4878 = vadd.f32 %v4750, %v4814
      %v4879 = vadd.f32 %v4751, %v4815
      %v4880 = vadd.f32 %v4752, %v4816
      %v4881 = vadd.f32 %v4753, %v4817
      %v4882 = vadd.f32 %v4754, %v4818
      %v4883 = vadd.f32 %v4755, %v4819
      %v4884 = vadd.f32 %v4756, %v4820
      %v4885 = vadd.f32 %v4757, %v4821
      %v4886 = vadd.f32 %v4758, %v4822
      %v4887 = vadd.f32 %v4759, %v4823
      %v4888 = vadd.f32 %v4760, %v4824
      %v4889 = vadd.f32 %v4761, %v4825
      %v4890 = vadd.f32 %v4762, %v4826
      %v4891 = vadd.f32 %v4763, %v4827
      %v4892 = vadd.f32 %v4764, %v4828
      %v4893 = vadd.f32 %v4765, %v4829
      %v4894 = vadd.f32 %v4766, %v4830
      %v4895 = vadd.f32 %v4767, %v4831
      %v4896 = vadd.f32 %v4768, %v4832
      %4897 = vst [vmem:[%s474] sm:$0xff] %v4833
      %4898 = vst [vmem:[%s474 + $0x8] sm:$0xff] %v4834
      %4899 = vst [vmem:[%s474 + $0x10] sm:$0xff] %v4835
      %4900 = vst [vmem:[%s474 + $0x18] sm:$0xff] %v4836
      %4901 = vst [vmem:[%s474 + $0x20] sm:$0xff] %v4837
      %4902 = vst [vmem:[%s474 + $0x28] sm:$0xff] %v4838
      %4903 = vst [vmem:[%s474 + $0x30] sm:$0xff] %v4839
      %4904 = vst [vmem:[%s474 + $0x38] sm:$0xff] %v4840
      %4905 = vst [vmem:[%s474 + $0x40] sm:$0xff] %v4841
      %4906 = vst [vmem:[%s474 + $0x48] sm:$0xff] %v4842
      %4907 = vst [vmem:[%s474 + $0x50] sm:$0xff] %v4843
      %4908 = vst [vmem:[%s474 + $0x58] sm:$0xff] %v4844
      %4909 = vst [vmem:[%s474 + $0x60] sm:$0xff] %v4845
      %4910 = vst [vmem:[%s474 + $0x68] sm:$0xff] %v4846
      %4911 = vst [vmem:[%s474 + $0x70] sm:$0xff] %v4847
      %4912 = vst [vmem:[%s474 + $0x78] sm:$0xff] %v4848
      %4913 = vst [vmem:[%s474 + $0x80] sm:$0xff] %v4849
      %4914 = vst [vmem:[%s474 + $0x88] sm:$0xff] %v4850
      %4915 = vst [vmem:[%s474 + $0x90] sm:$0xff] %v4851
      %4916 = vst [vmem:[%s474 + $0x98] sm:$0xff] %v4852
      %4917 = vst [vmem:[%s474 + $0xa0] sm:$0xff] %v4853
      %4918 = vst [vmem:[%s474 + $0xa8] sm:$0xff] %v4854
      %4919 = vst [vmem:[%s474 + $0xb0] sm:$0xff] %v4855
      %4920 = vst [vmem:[%s474 + $0xb8] sm:$0xff] %v4856
      %4921 = vst [vmem:[%s474 + $0xc0] sm:$0xff] %v4857
      %4922 = vst [vmem:[%s474 + $0xc8] sm:$0xff] %v4858
      %4923 = vst [vmem:[%s474 + $0xd0] sm:$0xff] %v4859
      %4924 = vst [vmem:[%s474 + $0xd8] sm:$0xff] %v4860
      %4925 = vst [vmem:[%s474 + $0xe0] sm:$0xff] %v4861
      %4926 = vst [vmem:[%s474 + $0xe8] sm:$0xff] %v4862
      %4927 = vst [vmem:[%s474 + $0xf0] sm:$0xff] %v4863
      %4928 = vst [vmem:[%s474 + $0xf8] sm:$0xff] %v4864
      %4929 = vst [vmem:[%s474 + $0x100] sm:$0xff] %v4865
      %4930 = vst [vmem:[%s474 + $0x108] sm:$0xff] %v4866
      %4931 = vst [vmem:[%s474 + $0x110] sm:$0xff] %v4867
      %4932 = vst [vmem:[%s474 + $0x118] sm:$0xff] %v4868
      %4933 = vst [vmem:[%s474 + $0x120] sm:$0xff] %v4869
      %4934 = vst [vmem:[%s474 + $0x128] sm:$0xff] %v4870
      %4935 = vst [vmem:[%s474 + $0x130] sm:$0xff] %v4871
      %4936 = vst [vmem:[%s474 + $0x138] sm:$0xff] %v4872
      %4937 = vst [vmem:[%s474 + $0x140] sm:$0xff] %v4873
      %4938 = vst [vmem:[%s474 + $0x148] sm:$0xff] %v4874
      %4939 = vst [vmem:[%s474 + $0x150] sm:$0xff] %v4875
      %4940 = vst [vmem:[%s474 + $0x158] sm:$0xff] %v4876
      %4941 = vst [vmem:[%s474 + $0x160] sm:$0xff] %v4877
      %4942 = vst [vmem:[%s474 + $0x168] sm:$0xff] %v4878
      %4943 = vst [vmem:[%s474 + $0x170] sm:$0xff] %v4879
      %4944 = vst [vmem:[%s474 + $0x178] sm:$0xff] %v4880
      %4945 = vst [vmem:[%s474 + $0x180] sm:$0xff] %v4881
      %4946 = vst [vmem:[%s474 + $0x188] sm:$0xff] %v4882
      %4947 = vst [vmem:[%s474 + $0x190] sm:$0xff] %v4883
      %4948 = vst [vmem:[%s474 + $0x198] sm:$0xff] %v4884
      %4949 = vst [vmem:[%s474 + $0x1a0] sm:$0xff] %v4885
      %4950 = vst [vmem:[%s474 + $0x1a8] sm:$0xff] %v4886
      %4951 = vst [vmem:[%s474 + $0x1b0] sm:$0xff] %v4887
      %4952 = vst [vmem:[%s474 + $0x1b8] sm:$0xff] %v4888
      %4953 = vst [vmem:[%s474 + $0x1c0] sm:$0xff] %v4889
      %4954 = vst [vmem:[%s474 + $0x1c8] sm:$0xff] %v4890
      %4955 = vst [vmem:[%s474 + $0x1d0] sm:$0xff] %v4891
      %4956 = vst [vmem:[%s474 + $0x1d8] sm:$0xff] %v4892
      %4957 = vst [vmem:[%s474 + $0x1e0] sm:$0xff] %v4893
      %4958 = vst [vmem:[%s474 + $0x1e8] sm:$0xff] %v4894
      %4959 = vst [vmem:[%s474 + $0x1f0] sm:$0xff] %v4895
      %4960 = vst [vmem:[%s474 + $0x1f8] sm:$0xff] %v4896
      %s4961 = smul.u32 2, %s25
      %p4962 = scmp.lt.s32.totalorder %s4961, 3
      %s4963 = scalar_select %p4962, %s4961, 3
      %s4964 = smul.addr %s4963, 32
      %s4965 = smul.addr %s4964, 8
      %s4966 = scalar_lea.vmem %s14, %s4965
      // Predicated region
      $region77: #{bneck_forward.1} parent=75 // pred_check
        %p4967 = pneg %p342
      $region78: #{bneck_forward.1} parent=75 // pred_check_branch
        %4969 = sbr.rel (%p4967) target = $region80
      $region79: #{bneck_forward.1} parent=75 // pred_region
        %s4970 = smul.u32 2, %s25
      $region80: #{bneck_forward.1} parent=75 // pred_fallthru
        _
    $region76: #{bneck_forward.1} parent=5 // pred_fallthru
      _
    %p4971 = scmp.le.s32.totalorder 2, %s20
    // Predicated region
    $region81: #{bneck_forward.1} parent=5 // pred_check
      %p4972 = pneg %p4971
    $region82: #{bneck_forward.1} parent=5 // pred_check_branch
      %4974 = sbr.rel (%p4972) target = $region84
    $region83: #{bneck_forward.1} parent=5 // pred_region
      %s4975 = ssub.s32 %s20, 2
      // Predicated region
      $region85: #{bneck_forward.1} parent=83 // pred_check
        %p4976 = pneg %p348
      $region86: #{bneck_forward.1} parent=83 // pred_check_branch
        %4978 = sbr.rel (%p4976) target = $region88
      $region87: #{bneck_forward.1} parent=83 // pred_region
        %s4979 = smul.u32 2, %s26
        %p4980 = scmp.lt.s32.totalorder %s4979, 3
        %s4981 = scalar_select %p4980, %s4979, 3
        %s4982 = smul.addr %s4981, 32
        %s4983 = smul.addr %s4982, 8
        %s4984 = scalar_lea.vmem %s14, %s4983
      $region88: #{bneck_forward.1} parent=83 // pred_fallthru
        _
    $region84: #{bneck_forward.1} parent=5 // pred_fallthru
      _
  $region6: #{bneck_forward.1} parent=0 // loop_footer
    %s24 = sadd.s32 1, %s20
  $region7: #{bneck_forward.1} parent=0 // loop_footer_branch
    %19 = sbr.rel target = $region3
  $region8: #{bneck_forward.1} parent=0 // loop_exit
    _

</llo_original>
